<compile_context>
chip_gen: v5e
topology: v5e:2x2
jax: 0.10.0
libtpu: 0.0.40
codegen_flags: <defaults>
</compile_context>

<pallas_src>
import functools

import jax
import jax.numpy as jnp
from jax.experimental import pallas as pl
from jax.experimental.pallas import tpu as pltpu

_VMEM = pltpu.MemorySpace.VMEM


# ----------------------------- generation-gated limits ---------------------------

@functools.lru_cache(maxsize=None)
def _vmem_capacity_bytes():
    # Conservative default: v7x has the smallest VMEM (64 MiB / TensorCore).
    try:
        return int(pltpu.get_tpu_info().vmem_capacity_bytes)
    except Exception:
        return 64 * 1024 * 1024


def _vmem_limit_bytes():
    # v5e/v6e: 128 MiB physical -> 96 MiB scoped.  v7x: 64 MiB -> 48 MiB scoped.
    return int(min(_vmem_capacity_bytes() * 3 // 4, 96 * 1024 * 1024))


def _is_v7x():
    # v7x is the only generation with <=64 MiB VMEM (and 2 TensorCores per chip).
    return _vmem_capacity_bytes() <= 64 * 1024 * 1024


def _compiler_params(dimension_semantics=None):
    return pltpu.CompilerParams(dimension_semantics=dimension_semantics,
                                vmem_limit_bytes=_vmem_limit_bytes())


def _rup(x, m):
    return ((x + m - 1) // m) * m


def _pick_tile(dim, quantum, cap):
    """Largest multiple of `quantum` (<= cap) dividing rup(dim, quantum)."""
    dp = _rup(dim, quantum)
    best = quantum
    t = quantum
    while t <= cap:
        if dp % t == 0:
            best = t
        t += quantum
    return best, dp


# ----------------------------- fused conv/matmul kernel --------------------------
# Tiled MXU matmul in bf16 with f32 accumulation and a fused epilogue
# (BatchNorm scale/shift, optional residual add, optional ReLU).
# Used for the stem and the three stride-2 bottleneck blocks.

def _fused_matmul_kernel(relu, has_residual):
    if has_residual:
        def kernel(x_ref, w_ref, s_ref, b_ref, r_ref, o_ref, acc_ref):
            @pl.when(pl.program_id(2) == 0)
            def _():
                acc_ref[...] = jnp.zeros_like(acc_ref)

            acc_ref[...] += jnp.dot(x_ref[...], w_ref[...],
                                    preferred_element_type=jnp.float32)

            @pl.when(pl.program_id(2) == pl.num_programs(2) - 1)
            def _():
                y = (acc_ref[...] * s_ref[...] + b_ref[...]
                     + r_ref[...].astype(jnp.float32))
                if relu:
                    y = jnp.maximum(y, 0.0)
                o_ref[...] = y.astype(o_ref.dtype)
    else:
        def kernel(x_ref, w_ref, s_ref, b_ref, o_ref, acc_ref):
            @pl.when(pl.program_id(2) == 0)
            def _():
                acc_ref[...] = jnp.zeros_like(acc_ref)

            acc_ref[...] += jnp.dot(x_ref[...], w_ref[...],
                                    preferred_element_type=jnp.float32)

            @pl.when(pl.program_id(2) == pl.num_programs(2) - 1)
            def _():
                y = acc_ref[...] * s_ref[...] + b_ref[...]
                if relu:
                    y = jnp.maximum(y, 0.0)
                o_ref[...] = y.astype(o_ref.dtype)
    return kernel


def fused_matmul(x, w, scale, shift, residual=None, relu=True,
                 out_dtype=jnp.bfloat16):
    """(M,K)x(K,N) bf16 MXU matmul with fused scale/shift/residual/ReLU epilogue."""
    M, K = x.shape
    N = w.shape[1]
    # bf16 packs 16 sublanes per vreg -> 16-row M quantum; big caps to amortize the
    # ~0.35us/grid-step overhead and collapse the K loop to 1-2 steps for deep layers.
    tm, Mp = _pick_tile(M, 16, 1024)
    tk, Kp = _pick_tile(K, 128, 2048)
    tn_cap = 512
    if _is_v7x() and (Mp // tm) == 1:
        # Keep >=2 blocks on a 'parallel' grid axis so the 2 TensorCores both work.
        tn_cap = max(128, _rup(N, 128) // 2)
    tn, Np = _pick_tile(N, 128, tn_cap)

    xb = jnp.pad(x.astype(jnp.bfloat16), ((0, Mp - M), (0, Kp - K)))
    wb = jnp.pad(w.astype(jnp.bfloat16), ((0, Kp - K), (0, Np - N)))
    sc = jnp.pad(scale.astype(jnp.float32), ((0, 0), (0, Np - N)),
                 constant_values=1.0)
    sh = jnp.pad(shift.astype(jnp.float32), ((0, 0), (0, Np - N)))

    in_specs = [
        pl.BlockSpec((tm, tk), lambda i, j, k: (i, k)),
        pl.BlockSpec((tk, tn), lambda i, j, k: (k, j)),
        pl.BlockSpec((1, tn), lambda i, j, k: (0, j)),
        pl.BlockSpec((1, tn), lambda i, j, k: (0, j)),
    ]
    args = [xb, wb, sc, sh]
    if residual is not None:
        rb = jnp.pad(residual.astype(jnp.bfloat16), ((0, Mp - M), (0, Np - N)))
        in_specs.append(pl.BlockSpec((tm, tn), lambda i, j, k: (i, j)))
        args.append(rb)

    out = pl.pallas_call(
        _fused_matmul_kernel(relu, residual is not None),
        out_shape=jax.ShapeDtypeStruct((Mp, Np), out_dtype),
        grid=(Mp // tm, Np // tn, Kp // tk),
        in_specs=in_specs,
        out_specs=pl.BlockSpec((tm, tn), lambda i, j, k: (i, j)),
        scratch_shapes=[pltpu.VMEM((tm, tn), jnp.float32)],
        compiler_params=_compiler_params(("parallel", "parallel", "arbitrary")),
    )(*args)
    if Mp != M or Np != N:
        out = out[:M, :N]
    return out


def conv_bn(x, w_mat, scale, shift, kh, kw, stride, pad, relu=True, residual=None):
    """NHWC conv (as im2col matmul) with fused BN scale/shift, residual add and ReLU."""
    B, H, W, C = x.shape
    Ho = (H + 2 * pad - kh) // stride + 1
    Wo = (W + 2 * pad - kw) // stride + 1
    if kh == 1 and kw == 1:
        xs = x[:, ::stride, ::stride, :] if stride > 1 else x
        patches = xs.reshape(B * Ho * Wo, C)
    else:
        # TODO(synk): the 7x7 stem (and the three strided 3x3 convs) still build an
        # im2col patch tensor; a space-to-depth reformulation or lax.conv would avoid
        # the 49x/9x read amplification.  Stride-1 3x3 convs no longer come here —
        # they run inside the fused bottleneck kernel with no im2col at all.
        xp = jnp.pad(x, ((0, 0), (pad, pad), (pad, pad), (0, 0))) if pad else x
        cols = []
        for i in range(kh):
            for j in range(kw):
                cols.append(xp[:, i:i + Ho * stride:stride, j:j + Wo * stride:stride, :])
        patches = jnp.stack(cols, axis=3).reshape(B * Ho * Wo, kh * kw * C)
    res = None if residual is None else residual.reshape(B * Ho * Wo, -1)
    y = fused_matmul(patches, w_mat, scale, shift, residual=res, relu=relu)
    return y.reshape(B, Ho, Wo, w_mat.shape[1])


def maxpool_3x3_s2_p1(x):
    # Strided-window max fused by XLA inside the stem jit.
    B, H, W, C = x.shape
    Ho = (H - 1) // 2 + 1
    Wo = (W - 1) // 2 + 1
    neg = float(jnp.finfo(x.dtype).min)
    xp = jnp.pad(x, ((0, 0), (1, 1), (1, 1), (0, 0)), constant_values=neg)
    out = None
    for i in range(3):
        for j in range(3):
            win = xp[:, i:i + 2 * Ho:2, j:j + 2 * Wo:2, :]
            out = win if out is None else jnp.maximum(out, win)
    return out


# ----------------------------- fused whole-bottleneck kernel ---------------------
# One pallas_call per stride-1 bottleneck: conv1(1x1)+BN+ReLU -> conv2(3x3)+BN+ReLU
# -> conv3(1x1)+BN (+identity or downsample) + ReLU.  Intermediates stay in VMEM.
# The 3x3 conv reads shifted row-windows of a zero-padded flat scratch buffer
# (no im2col tensor); image/batch-boundary taps are masked with an iota mask.

def _make_bottleneck_kernel(B, H, W, has_ds):
    M = B * H * W
    pad_lo = _rup(W + 1, 16)          # aligned store offset for conv1's output rows

    def kernel(*refs):
        if has_ds:
            (x_ref, w1_ref, s1_ref, b1_ref, w2_ref, s2_ref, b2_ref,
             w3_ref, s3_ref, b3_ref, wd_ref, sd_ref, bd_ref, o_ref, hbuf) = refs
        else:
            (x_ref, w1_ref, s1_ref, b1_ref, w2_ref, s2_ref, b2_ref,
             w3_ref, s3_ref, b3_ref, o_ref, hbuf) = refs
            wd_ref = sd_ref = bd_ref = None

        x = x_ref[...]                                           # (M, Cin) bf16

        # ---- conv1 (1x1) + BN + ReLU ----
        h1 = jnp.dot(x, w1_ref[...], preferred_element_type=jnp.float32)
        h1 = jnp.maximum(h1 * s1_ref[...] + b1_ref[...], 0.0)

        hbuf[...] = jnp.zeros_like(hbuf)
        hbuf[pad_lo:pad_lo + M, :] = h1.astype(hbuf.dtype)

        # ---- conv2 (3x3, stride 1, pad 1) + BN + ReLU, no im2col ----
        row = jax.lax.broadcasted_iota(jnp.int32, (M, 1), 0)
        hh = (row // W) % H
        ww = row % W
        cmid = w2_ref.shape[-1]
        acc = jnp.zeros((M, cmid), jnp.float32)
        for di in (-1, 0, 1):
            for dj in (-1, 0, 1):
                tap = (di + 1) * 3 + (dj + 1)
                start = pad_lo + di * W + dj
                src = hbuf[start:start + M, :]
                conds = []
                if di < 0:
                    conds.append(hh >= -di)
                if di > 0:
                    conds.append(hh < H - di)
                if dj < 0:
                    conds.append(ww >= -dj)
                if dj > 0:
                    conds.append(ww < W - dj)
                if conds:
                    valid = conds[0]
                    for c in conds[1:]:
                        valid = valid & c
                    src = jnp.where(valid, src, jnp.zeros_like(src))
                acc = acc + jnp.dot(src, w2_ref[tap],
                                    preferred_element_type=jnp.float32)
        h2 = jnp.maximum(acc * s2_ref[...] + b2_ref[...], 0.0).astype(jnp.bfloat16)

        # ---- conv3 (1x1) + BN + residual add + ReLU ----
        y = jnp.dot(h2, w3_ref[...], preferred_element_type=jnp.float32)
        y = y * s3_ref[...] + b3_ref[...]
        if has_ds:
            idn = jnp.dot(x, wd_ref[...], preferred_element_type=jnp.float32)
            idn = idn * sd_ref[...] + bd_ref[...]
        else:
            idn = x.astype(jnp.float32)
        o_ref[...] = jnp.maximum(y + idn, 0.0).astype(o_ref.dtype)

    return kernel


@jax.jit
def _fused_bottleneck_forward(x, p):
    B, H, W, C = x.shape
    M = B * H * W
    has_ds = "ds_conv" in p
    cmid = p["conv2"].shape[-1]
    cout = p["conv3"].shape[-1]
    pad_lo = _rup(W + 1, 16)
    rows = pad_lo + M + W + 1

    args = [x.reshape(M, C).astype(jnp.bfloat16),
            p["conv1"], p["bn1"][0], p["bn1"][1],
            p["conv2"], p["bn2"][0], p["bn2"][1],
            p["conv3"], p["bn3"][0], p["bn3"][1]]
    if has_ds:
        args += [p["ds_conv"], p["ds_bn"][0], p["ds_bn"][1]]

    out = pl.pallas_call(
        _make_bottleneck_kernel(B, H, W, has_ds),
        out_shape=jax.ShapeDtypeStruct((M, cout), jnp.bfloat16),
        in_specs=[pl.BlockSpec(memory_space=_VMEM)] * len(args),
        out_specs=pl.BlockSpec(memory_space=_VMEM),
        scratch_shapes=[pltpu.VMEM((rows, cmid), jnp.bfloat16)],
        compiler_params=_compiler_params(),
    )(*args)
    return out.reshape(B, H, W, cout)


def _fused_block_fits_vmem(x_shape, p):
    """Static VMEM footprint estimate for the single-invocation fused block."""
    B, H, W, C = x_shape
    M = B * H * W
    cmid = p["conv2"].shape[-1]
    cout = p["conv3"].shape[-1]
    nbytes = 0
    for name in ("conv1", "conv2", "conv3", "ds_conv"):
        if name in p:
            nbytes += p[name].size * 2                       # bf16 weights
    for name in ("bn1", "bn2", "bn3", "ds_bn"):
        if name in p:
            nbytes += sum(a.size * 4 for a in p[name])       # f32 scale/shift
    nbytes += M * C * 2 + M * cout * 2                       # x / out
    nbytes += (_rup(W + 1, 16) + M + W + 1) * cmid * 2       # conv2 scratch buffer
    nbytes += M * (3 * cmid + 2 * cout) * 4                  # live f32 intermediates
    return nbytes < 0.6 * _vmem_limit_bytes()


# ----------------------------- fused classifier head -----------------------------
# global avg-pool + resnet fc(2048->1000) + fc_(1000->200) + fc(200->num_classes)
# in a single Pallas kernel; all dims lane-padded (1024 / 256), cropped in wrapper.

def _head_kernel(x_ref, w1_ref, b1_ref, w2_ref, b2_ref, w3_ref, b3_ref,
                 feat_ref, out_ref):
    pooled = jnp.mean(x_ref[...].astype(jnp.float32), axis=1)            # (B, 2048)
    h = jnp.dot(pooled.astype(jnp.bfloat16), w1_ref[...],
                preferred_element_type=jnp.float32) + b1_ref[...]        # resnet fc
    feat = jnp.dot(h.astype(jnp.bfloat16), w2_ref[...],
                   preferred_element_type=jnp.float32) + b2_ref[...]     # fc_
    out = jnp.dot(feat.astype(jnp.bfloat16), w3_ref[...],
                  preferred_element_type=jnp.float32) + b3_ref[...]      # fc
    feat_ref[...] = feat
    out_ref[...] = out


@functools.partial(jax.jit, static_argnums=(7, 8))
def _head_forward(x, w1, b1, w2, b2, w3, b3, feat_dim, out_dim):
    B = x.shape[0]
    feat_p, out_p = pl.pallas_call(
        _head_kernel,
        out_shape=(jax.ShapeDtypeStruct((B, w2.shape[1]), jnp.float32),
                   jax.ShapeDtypeStruct((B, w3.shape[1]), jnp.float32)),
        in_specs=[pl.BlockSpec(memory_space=_VMEM)] * 7,
        out_specs=(pl.BlockSpec(memory_space=_VMEM),
                   pl.BlockSpec(memory_space=_VMEM)),
        compiler_params=_compiler_params(),
    )(x, w1, b1, w2, b2, w3, b3)
    return feat_p[:, :feat_dim], out_p[:, :out_dim]


# ----------------------------- network pieces (jit per stage) --------------------

@jax.jit
def _stem_forward(x, conv1_w, bn1_scale, bn1_shift):
    x = conv_bn(x, conv1_w, bn1_scale, bn1_shift, 7, 7, 2, 3, relu=True)
    return maxpool_3x3_s2_p1(x)


@functools.partial(jax.jit, static_argnums=(2,))
def _bottleneck_forward(x, p, stride):
    # Fallback path (stride-2 blocks, or blocks too large for single-shot VMEM):
    # separate fused conv+BN(+residual)(+ReLU) matmul kernels, im2col for the 3x3.
    w2 = p["conv2"].reshape(-1, p["conv2"].shape[-1])
    out = conv_bn(x, p["conv1"], *p["bn1"], 1, 1, 1, 0, relu=True)
    out = conv_bn(out, w2, *p["bn2"], 3, 3, stride, 1, relu=True)
    if "ds_conv" in p:
        identity = conv_bn(x, p["ds_conv"], *p["ds_bn"], 1, 1, stride, 0, relu=False)
    else:
        identity = x
    # conv3 + bn3 + residual-add + ReLU fused in one kernel epilogue
    return conv_bn(out, p["conv3"], *p["bn3"], 1, 1, 1, 0, relu=True,
                   residual=identity)


# ----------------------------- deterministic parameters --------------------------

class _KeyGen:
    def __init__(self, key):
        self._key = key
        self._n = 0

    def __call__(self):
        self._n += 1
        return jax.random.fold_in(self._key, self._n)


def _cp(c):
    """Pad an activation channel count up to a 128-lane multiple (64 -> 128)."""
    return _rup(c, 128)


def _conv_param(kg, kh, kw, cin, cout, cin_p, cout_p, keep_taps=False):
    # He-like init, scaled down so 50 residual blocks of random weights stay well-conditioned.
    std = 0.5 * (2.0 / (kh * kw * cin)) ** 0.5
    w = std * jax.random.normal(kg(), (kh, kw, cin, cout), jnp.float32)      # HWIO
    w = jnp.pad(w, ((0, 0), (0, 0), (0, cin_p - cin), (0, cout_p - cout)))   # lane-pad
    w = w.reshape(kh * kw, cin_p, cout_p)
    if not keep_taps:
        w = w.reshape(kh * kw * cin_p, cout_p)
    return w.astype(jnp.bfloat16)


def _bn_param(kg, c, c_p, eps=1e-5):
    # eval-mode BatchNorm folded into per-channel scale/shift; padded channels act as 0
    gamma = 1.0 + 0.01 * jax.random.normal(kg(), (c,), jnp.float32)
    beta = 0.01 * jax.random.normal(kg(), (c,), jnp.float32)
    mean = 0.01 * jax.random.normal(kg(), (c,), jnp.float32)
    var = 1.0 + 0.01 * jnp.abs(jax.random.normal(kg(), (c,), jnp.float32))
    scale = gamma * jax.lax.rsqrt(var + eps)
    shift = beta - mean * scale
    scale = jnp.pad(scale, (0, c_p - c), constant_values=1.0)
    shift = jnp.pad(shift, (0, c_p - c))
    return scale.reshape(1, c_p), shift.reshape(1, c_p)


def _linear_param(kg, cin, cout, cin_p, cout_p, std=0.01):
    w = std * jax.random.normal(kg(), (cin, cout), jnp.float32)
    w = jnp.pad(w, ((0, cin_p - cin), (0, cout_p - cout))).astype(jnp.bfloat16)
    b = jnp.zeros((1, cout_p), jnp.float32)
    return w, b


def _bottleneck_params(kg, inplanes, planes, stride, downsample):
    p = {
        "conv1": _conv_param(kg, 1, 1, inplanes, planes, _cp(inplanes), _cp(planes)),
        "bn1": _bn_param(kg, planes, _cp(planes)),
        "conv2": _conv_param(kg, 3, 3, planes, planes, _cp(planes), _cp(planes),
                             keep_taps=True),
        "bn2": _bn_param(kg, planes, _cp(planes)),
        "conv3": _conv_param(kg, 1, 1, planes, planes * 4, _cp(planes), _cp(planes * 4)),
        "bn3": _bn_param(kg, planes * 4, _cp(planes * 4)),
    }
    if downsample:
        p["ds_conv"] = _conv_param(kg, 1, 1, inplanes, planes * 4,
                                   _cp(inplanes), _cp(planes * 4))
        p["ds_bn"] = _bn_param(kg, planes * 4, _cp(planes * 4))
    return {"p": p, "stride": stride}


def make_params(key, num_classes=1000):
    kg = _KeyGen(key)
    params = {
        "conv1": _conv_param(kg, 7, 7, 3, 64, 3, _cp(64)),   # image channels stay at 3
        "bn1": _bn_param(kg, 64, _cp(64)),
    }
    cfg = [(64, 3, 1), (128, 8, 2), (256, 36, 2), (512, 3, 2)]   # resnet152: [3, 8, 36, 3]
    inplanes = 64
    layers = []
    for planes, nblocks, stride in cfg:
        blocks = []
        for b in range(nblocks):
            s = stride if b == 0 else 1
            ds = (b == 0) and (s != 1 or inplanes != planes * 4)
            blocks.append(_bottleneck_params(kg, inplanes, planes, s, ds))
            inplanes = planes * 4
        layers.append(blocks)
    params["layers"] = layers
    params["resnet_fc"] = _linear_param(kg, 2048, 1000, 2048, 1024,
                                        std=(1.0 / 2048) ** 0.5)
    params["fc_"] = _linear_param(kg, 1000, 200, 1024, 256)      # Linear(1000, 200)
    params["fc"] = _linear_param(kg, 200, num_classes, 256, _rup(num_classes, 128))
    params["head_dims"] = (200, num_classes)
    return params


# ----------------------------- forward pass ---------------------------------------

def resnet152_hico_forward(params, x_nchw):
    """Equivalent of Resnet152.forward; x_nchw: (B, 3, H, W) float32 (PyTorch NCHW)."""
    x = jnp.transpose(x_nchw, (0, 2, 3, 1)).astype(jnp.bfloat16)   # -> NHWC bf16
    x = _stem_forward(x, params["conv1"], *params["bn1"])
    for layer in params["layers"]:
        for blk in layer:
            p, stride = blk["p"], blk["stride"]
            if stride == 1 and _fused_block_fits_vmem(x.shape, p):
                x = _fused_bottleneck_forward(x, p)
            else:
                x = _bottleneck_forward(x, p, stride)
    B, H, W, C = x.shape
    feat_dim, out_dim = params["head_dims"]
    feat, output = _head_forward(x.reshape(B, H * W, C),
                                 *params["resnet_fc"], *params["fc_"], *params["fc"],
                                 feat_dim, out_dim)
    return feat, output                          # matches `return (x, output)`


if __name__ == "__main__":
    key = jax.random.PRNGKey(0)
    pkey, xkey = jax.random.split(key)

    num_classes = 1000
    params = make_params(pkey, num_classes=num_classes)

    # Small input consistent with the module: batch=2, RGB, 64x64 (survives the five
    # stride-2 stages of resnet152 and exercises both the fused-bottleneck and the
    # tiled-matmul paths).
    x = jax.random.normal(xkey, (2, 3, 64, 64), jnp.float32)

    feat, out = resnet152_hico_forward(params, x)
    jax.block_until_ready((feat, out))

    assert feat.shape == (2, 200), feat.shape
    assert out.shape == (2, num_classes), out.shape
    assert bool(jnp.all(jnp.isfinite(feat))) and bool(jnp.all(jnp.isfinite(out)))
    print("KERNEL_OK")
</pallas_src>

<mosaic_0001>
module attributes {stable_mosaic.version = 11 : i64} {
  func.func @kernel(%arg0: i32, %arg1: i32, %arg2: i32, %arg3: memref<1024x256xbf16, #tpu.memory_space<vmem>>, %arg4: memref<256x128xbf16, #tpu.memory_space<vmem>>, %arg5: memref<1x128xf32, #tpu.memory_space<vmem>>, %arg6: memref<1x128xf32, #tpu.memory_space<vmem>>, %arg7: memref<1024x128xbf16, #tpu.memory_space<vmem>>, %arg8: memref<1024x128xf32, #tpu.memory_space<vmem>>) attributes {dimension_semantics = [#tpu.dimension_semantics<parallel>, #tpu.dimension_semantics<parallel>, #tpu.dimension_semantics<arbitrary>], iteration_bounds = array<i64: 2, 1, 1>, scalar_prefetch = 0 : i64, scratch_operands = 1 : i64, tpu.core_type = #tpu.core_type<tc>, window_params = [{transform_indices = @transform_0, window_bounds = array<i64: 1024, 256>}, {transform_indices = @transform_1, window_bounds = array<i64: 256, 128>}, {transform_indices = @transform_2, window_bounds = array<i64: 1, 128>}, {transform_indices = @transform_3, window_bounds = array<i64: 1, 128>}, {transform_indices = @transform_4, window_bounds = array<i64: 1024, 128>}]} {
    %c0_i32 = arith.constant 0 : i32
    %0 = arith.cmpi eq, %arg2, %c0_i32 : i32
    %1 = arith.extui %0 : i1 to i32
    %c0_i32_0 = arith.constant 0 : i32
    %2 = arith.cmpi ne, %1, %c0_i32_0 : i32
    scf.if %2 {
      %cst_10 = arith.constant 0.000000e+00 : f32
      %12 = vector.broadcast %cst_10 : f32 to vector<1024x128xf32>
      %c0_11 = arith.constant 0 : index
      %c0_12 = arith.constant 0 : index
      %13 = vector.load %arg8[%c0_11, %c0_12] : memref<1024x128xf32, #tpu.memory_space<vmem>>, vector<1024x128xf32>
      tpu.vector_store %arg8[%c0_11, %c0_12], %12 {strides = array<i32>} : memref<1024x128xf32, #tpu.memory_space<vmem>>, vector<1024x128xf32>,
    } else {
    }
    %c0 = arith.constant 0 : index
    %c0_1 = arith.constant 0 : index
    %3 = vector.load %arg8[%c0, %c0_1] : memref<1024x128xf32, #tpu.memory_space<vmem>>, vector<1024x128xf32>
    %c0_2 = arith.constant 0 : index
    %c0_3 = arith.constant 0 : index
    %4 = vector.load %arg3[%c0_2, %c0_3] : memref<1024x256xbf16, #tpu.memory_space<vmem>>, vector<1024x256xbf16>
    %c0_4 = arith.constant 0 : index
    %c0_5 = arith.constant 0 : index
    %5 = vector.load %arg4[%c0_4, %c0_5] : memref<256x128xbf16, #tpu.memory_space<vmem>>, vector<256x128xbf16>
    %cst = arith.constant dense<0.000000e+00> : vector<1024x128xf32>
    %6 = tpu.matmul %4, %5, %cst {dimension_numbers = #tpu.dot_dimension_numbers<[1], [0], [0], [1], [0, 0, 1, 1], [], []>} : vector<1024x256xbf16>, vector<256x128xbf16>, vector<1024x128xf32> -> vector<1024x128xf32>
    %7 = arith.addf %3, %6 : vector<1024x128xf32>
    %c0_6 = arith.constant 0 : index
    %c0_7 = arith.constant 0 : index
    %8 = vector.load %arg8[%c0_6, %c0_7] : memref<1024x128xf32, #tpu.memory_space<vmem>>, vector<1024x128xf32>
    tpu.vector_store %arg8[%c0_6, %c0_7], %7 {strides = array<i32>} : memref<1024x128xf32, #tpu.memory_space<vmem>>, vector<1024x128xf32>,
    %c0_i32_8 = arith.constant 0 : i32
    %9 = arith.cmpi eq, %arg2, %c0_i32_8 : i32
    %10 = arith.extui %9 : i1 to i32
    %c0_i32_9 = arith.constant 0 : i32
    %11 = arith.cmpi ne, %10, %c0_i32_9 : i32
    scf.if %11 {
      %c0_10 = arith.constant 0 : index
      %c0_11 = arith.constant 0 : index
      %12 = vector.load %arg8[%c0_10, %c0_11] : memref<1024x128xf32, #tpu.memory_space<vmem>>, vector<1024x128xf32>
      %c0_12 = arith.constant 0 : index
      %c0_13 = arith.constant 0 : index
      %13 = vector.load %arg5[%c0_12, %c0_13] : memref<1x128xf32, #tpu.memory_space<vmem>>, vector<1x128xf32>
      %14 = vector.broadcast %13 : vector<1x128xf32> to vector<1024x128xf32>
      %15 = arith.mulf %12, %14 : vector<1024x128xf32>
      %c0_14 = arith.constant 0 : index
      %c0_15 = arith.constant 0 : index
      %16 = vector.load %arg6[%c0_14, %c0_15] : memref<1x128xf32, #tpu.memory_space<vmem>>, vector<1x128xf32>
      %17 = vector.broadcast %16 : vector<1x128xf32> to vector<1024x128xf32>
      %18 = arith.addf %15, %17 : vector<1024x128xf32>
      %cst_16 = arith.constant 0.000000e+00 : f32
      %19 = vector.broadcast %cst_16 : f32 to vector<1024x128xf32>
      %20 = arith.maximumf %18, %19 : vector<1024x128xf32>
      %21 = arith.truncf %20 : vector<1024x128xf32> to vector<1024x128xbf16>
      %c0_17 = arith.constant 0 : index
      %c0_18 = arith.constant 0 : index
      %22 = vector.load %arg7[%c0_17, %c0_18] : memref<1024x128xbf16, #tpu.memory_space<vmem>>, vector<1024x128xbf16>
      tpu.vector_store %arg7[%c0_17, %c0_18], %21 {strides = array<i32>} : memref<1024x128xbf16, #tpu.memory_space<vmem>>, vector<1024x128xbf16>,
    } else {
    }
    return
  }
  func.func @transform_0(%arg0: i32, %arg1: i32, %arg2: i32) -> (i32, i32) {
    %c0_i32 = arith.constant 0 : i32
    return %arg0, %arg2 : i32, i32
  }
  func.func @transform_1(%arg0: i32, %arg1: i32, %arg2: i32) -> (i32, i32) {
    %c0_i32 = arith.constant 0 : i32
    return %arg2, %arg1 : i32, i32
  }
  func.func @transform_2(%arg0: i32, %arg1: i32, %arg2: i32) -> (i32, i32) {
    %c0_i32 = arith.constant 0 : i32
    %c0_i32_0 = arith.constant 0 : i32
    return %c0_i32, %arg1 : i32, i32
  }
  func.func @transform_3(%arg0: i32, %arg1: i32, %arg2: i32) -> (i32, i32) {
    %c0_i32 = arith.constant 0 : i32
    %c0_i32_0 = arith.constant 0 : i32
    return %c0_i32, %arg1 : i32, i32
  }
  func.func @transform_4(%arg0: i32, %arg1: i32, %arg2: i32) -> (i32, i32) {
    %c0_i32 = arith.constant 0 : i32
    return %arg0, %arg1 : i32, i32
  }
}

</mosaic_0001>

<llo_original>
// kernel: _stem_forward.1
$region0: #{_stem_forward.1}
  #allocation0 [shape = 'u32[]', space=smem, size = 0x4, offset = 0x4, fixed_abs, tag = 'smem constant byte address 0x4 - core index']
  #allocation1 [shape = 'u32[72,128]{1,0:T(1,128)}', space=vmem, size = 0x9000, scoped, tag = 'internal scratch']
  #allocation2 [shape = 'f32[1024,128]{1,0:T(8,128)}', space=vmem, size = 0x80000, scoped, tag = 'scratch operand']
  %s0 = inlined_call_operand.vmem [shape: bf16[2048,256], index: 0, kind: input, shape index: {}]
  %s1 = inlined_call_operand.vmem [shape: bf16[256,128], index: 1, kind: input, shape index: {}]
  %s2 = inlined_call_operand.vmem [shape: f32[1,128], index: 2, kind: input, shape index: {}]
  %s3 = inlined_call_operand.vmem [shape: f32[1,128], index: 3, kind: input, shape index: {}]
  %s4 = inlined_call_operand.vmem [shape: bf16[2048,128], index: 4, kind: output, shape index: {}]
  %s5 = sld [smem:[#allocation0]]
  $region57: #{_stem_forward.1} parent=0
    _
  %s7 = ssub.s32 1, %s5
  %s8 = scalar_select 0, %s7, %s5
  loop: start=0, step=1, limit=4
  $region2: #{_stem_forward.1} parent=0 // loop_pre_header
    _
  $region3: #{_stem_forward.1} parent=0 // loop_header
    %s10 = sphi 0, %s14
    %p11 = scmp.ge.s32.totalorder %s10, 4
    %s17 = sphi 0, %s36
    %s18 = sphi 0, %s32
    %s19 = sphi 0, %s28
    %s20 = sphi 0, %s17
    %s21 = sphi 0, %s18
    %s22 = sphi 0, %s19
    %s23 = sphi 0, %s20
    %s24 = sphi 0, %s21
    %s25 = sphi 0, %s22
    %s41 = sphi 0, %s43
    %s44 = sphi 0, %s41
    %s45 = sphi 0, %s44
    %s61 = sphi 0, %s45
    %s69 = sphi 0, %s71
    %s72 = sphi 0, %s69
    %s73 = sphi 0, %s72
    %s89 = sphi 0, %s73
    %s95 = sphi 0, %s97
    %s98 = sphi 0, %s95
    %s99 = sphi 0, %s98
    %s115 = sphi 0, %s99
    %s121 = sphi 0, %s123
    %s124 = sphi 0, %s121
    %s125 = sphi 0, %s124
    %s141 = sphi 0, %s125
    %s149 = sphi 0, %s151
    %s152 = sphi 0, %s149
    %s153 = sphi 0, %s152
    %s169 = sphi 0, %s153
  $region4: #{_stem_forward.1} parent=0 // loop_header_branch
    %13 = sbr.rel (%p11) target = $region8
  $region5: #{_stem_forward.1} parent=0 // loop_body
    %s15 = ssub.s32 %s10, 1
    %s16 = ssub.s32 %s10, 2
    %s26 = sadd.s32 1, %s19
    %p27 = scmp.ge.s32.totalorder %s26, 1
    %s28 = scalar_select %p27, 0, %s26
    %s29 = sadd.s32 1, %s18
    %s30 = scalar_select %p27, %s29, %s18
    %p31 = scmp.ge.s32.totalorder %s30, 1
    %s32 = scalar_select %p31, 0, %s30
    %s33 = sadd.s32 1, %s17
    %s34 = scalar_select %p31, %s33, %s17
    %p35 = scmp.ge.s32.totalorder %s34, 2
    %s36 = scalar_select %p35, 0, %s34
    %s37 = ssub.s32 %s17, %s36
    %s38 = ssub.s32 %s19, %s28
    %s39 = sor.u32 %s37, %s38
    %p40 = scmp.eq.s32.totalorder %s39, 0
    %s42 = sadd.s32 %s41, 1
    %s43 = scalar_select %p40, %s41, %s42
    %p46 = pneg %p40
    %p47 = scmp.eq.s32.totalorder %s10, 1
    %p48 = por %p46, %p47
    %p49 = scmp.ne.s32.totalorder %s41, %s44
    %p50 = scmp.eq.s32.totalorder %s10, 0
    %p51 = por %p49, %p50
    %p52 = scmp.ne.s32.totalorder %s41, %s44
    %p53 = scmp.eq.s32.totalorder %s15, 1
    %p54 = por %p52, %p53
    %p55 = scmp.ne.s32.totalorder %s44, %s45
    %p56 = scmp.eq.s32.totalorder %s15, 0
    %p57 = por %p55, %p56
    %p58 = scmp.ne.s32.totalorder %s44, %s45
    %p59 = scmp.eq.s32.totalorder %s16, 1
    %p60 = por %p58, %p59
    %p62 = scmp.ne.s32.totalorder %s45, %s61
    %p63 = scmp.eq.s32.totalorder %s16, 0
    %p64 = por %p62, %p63
    %s65 = ssub.s32 %s19, %s28
    %s66 = ssub.s32 %s18, %s32
    %s67 = sor.u32 %s65, %s66
    %p68 = scmp.eq.s32.totalorder %s67, 0
    %s70 = sadd.s32 %s69, 1
    %s71 = scalar_select %p68, %s69, %s70
    %p74 = pneg %p68
    %p75 = scmp.eq.s32.totalorder %s10, 1
    %p76 = por %p74, %p75
    %p77 = scmp.ne.s32.totalorder %s69, %s72
    %p78 = scmp.eq.s32.totalorder %s10, 0
    %p79 = por %p77, %p78
    %p80 = scmp.ne.s32.totalorder %s69, %s72
    %p81 = scmp.eq.s32.totalorder %s15, 1
    %p82 = por %p80, %p81
    %p83 = scmp.ne.s32.totalorder %s72, %s73
    %p84 = scmp.eq.s32.totalorder %s15, 0
    %p85 = por %p83, %p84
    %p86 = scmp.ne.s32.totalorder %s72, %s73
    %p87 = scmp.eq.s32.totalorder %s16, 1
    %p88 = por %p86, %p87
    %p90 = scmp.ne.s32.totalorder %s73, %s89
    %p91 = scmp.eq.s32.totalorder %s16, 0
    %p92 = por %p90, %p91
    %s93 = ssub.s32 %s18, %s32
    %p94 = scmp.eq.s32.totalorder %s93, 0
    %s96 = sadd.s32 %s95, 1
    %s97 = scalar_select %p94, %s95, %s96
    %p100 = pneg %p94
    %p101 = scmp.eq.s32.totalorder %s10, 1
    %p102 = por %p100, %p101
    %p103 = scmp.ne.s32.totalorder %s95, %s98
    %p104 = scmp.eq.s32.totalorder %s10, 0
    %p105 = por %p103, %p104
    %p106 = scmp.ne.s32.totalorder %s95, %s98
    %p107 = scmp.eq.s32.totalorder %s15, 1
    %p108 = por %p106, %p107
    %p109 = scmp.ne.s32.totalorder %s98, %s99
    %p110 = scmp.eq.s32.totalorder %s15, 0
    %p111 = por %p109, %p110
    %p112 = scmp.ne.s32.totalorder %s98, %s99
    %p113 = scmp.eq.s32.totalorder %s16, 1
    %p114 = por %p112, %p113
    %p116 = scmp.ne.s32.totalorder %s99, %s115
    %p117 = scmp.eq.s32.totalorder %s16, 0
    %p118 = por %p116, %p117
    %s119 = ssub.s32 %s18, %s32
    %p120 = scmp.eq.s32.totalorder %s119, 0
    %s122 = sadd.s32 %s121, 1
    %s123 = scalar_select %p120, %s121, %s122
    %p126 = pneg %p120
    %p127 = scmp.eq.s32.totalorder %s10, 1
    %p128 = por %p126, %p127
    %p129 = scmp.ne.s32.totalorder %s121, %s124
    %p130 = scmp.eq.s32.totalorder %s10, 0
    %p131 = por %p129, %p130
    %p132 = scmp.ne.s32.totalorder %s121, %s124
    %p133 = scmp.eq.s32.totalorder %s15, 1
    %p134 = por %p132, %p133
    %p135 = scmp.ne.s32.totalorder %s124, %s125
    %p136 = scmp.eq.s32.totalorder %s15, 0
    %p137 = por %p135, %p136
    %p138 = scmp.ne.s32.totalorder %s124, %s125
    %p139 = scmp.eq.s32.totalorder %s16, 1
    %p140 = por %p138, %p139
    %p142 = scmp.ne.s32.totalorder %s125, %s141
    %p143 = scmp.eq.s32.totalorder %s16, 0
    %p144 = por %p142, %p143
    %s145 = ssub.s32 %s17, %s36
    %s146 = ssub.s32 %s18, %s32
    %s147 = sor.u32 %s145, %s146
    %p148 = scmp.eq.s32.totalorder %s147, 0
    %s150 = sadd.s32 %s149, 1
    %s151 = scalar_select %p148, %s149, %s150
    %p154 = pneg %p148
    %p155 = scmp.eq.s32.totalorder %s10, 1
    %p156 = por %p154, %p155
    %p157 = scmp.ne.s32.totalorder %s149, %s152
    %p158 = scmp.eq.s32.totalorder %s10, 0
    %p159 = por %p157, %p158
    %p160 = scmp.ne.s32.totalorder %s149, %s152
    %p161 = scmp.eq.s32.totalorder %s15, 1
    %p162 = por %p160, %p161
    %p163 = scmp.ne.s32.totalorder %s152, %s153
    %p164 = scmp.eq.s32.totalorder %s15, 0
    %p165 = por %p163, %p164
    %p166 = scmp.ne.s32.totalorder %s152, %s153
    %p167 = scmp.eq.s32.totalorder %s16, 1
    %p168 = por %p166, %p167
    %p170 = scmp.ne.s32.totalorder %s153, %s169
    %p171 = scmp.eq.s32.totalorder %s16, 0
    %p172 = por %p170, %p171
    %p173 = scmp.le.s32.totalorder 1, %s10
    %p174 = scmp.lt.s32.totalorder %s10, 3
    %p175 = pnand %p173, %p174
    %p176 = pneg %p175
    // Predicated region
    $region9: #{_stem_forward.1} parent=5 // pred_check
      _
    $region10: #{_stem_forward.1} parent=5 // pred_check_branch
      %178 = sbr.rel (%p175) target = $region12
    $region11: #{_stem_forward.1} parent=5 // pred_region
      %s179 = ssub.s32 %s10, 1
      // Predicated region
      $region13: #{_stem_forward.1} parent=11 // pred_check
        %p180 = pneg %p85
      $region14: #{_stem_forward.1} parent=11 // pred_check_branch
        %182 = sbr.rel (%p180) target = $region16
      $region15: #{_stem_forward.1} parent=11 // pred_region
        %s183 = smul.u32 32, %s22
        %p184 = scmp.lt.s32.totalorder %s183, 31
        %s185 = scalar_select %p184, %s183, 31
        %p186 = scmp.lt.s32.totalorder %s21, 0
        %s187 = scalar_select %p186, %s21, 0
        %s188 = sadd.s32 %s187, %s185
        %s189 = smul.addr %s188, 4
        %s190 = scalar_lea.vmem %s1, %s189
        %s191 = smul.u32 32, %s22
      $region16: #{_stem_forward.1} parent=11 // pred_fallthru
        _
      // Predicated region
      $region17: #{_stem_forward.1} parent=11 // pred_check
        %p192 = pneg %p111
      $region18: #{_stem_forward.1} parent=11 // pred_check_branch
        %194 = sbr.rel (%p192) target = $region20
      $region19: #{_stem_forward.1} parent=11 // pred_region
        %p195 = scmp.lt.s32.totalorder %s21, 0
        %s196 = scalar_select %p195, %s21, 0
        %s197 = scalar_lea.vmem %s2, %s196
      $region20: #{_stem_forward.1} parent=11 // pred_fallthru
        _
      // Predicated region
      $region21: #{_stem_forward.1} parent=11 // pred_check
        %p198 = pneg %p137
      $region22: #{_stem_forward.1} parent=11 // pred_check_branch
        %200 = sbr.rel (%p198) target = $region24
      $region23: #{_stem_forward.1} parent=11 // pred_region
        %p201 = scmp.lt.s32.totalorder %s21, 0
        %s202 = scalar_select %p201, %s21, 0
        %s203 = scalar_lea.vmem %s3, %s202
      $region24: #{_stem_forward.1} parent=11 // pred_fallthru
        _
    $region12: #{_stem_forward.1} parent=5 // pred_fallthru
      _
    %p204 = scmp.lt.s32.totalorder %s10, 2
    // Predicated region
    $region25: #{_stem_forward.1} parent=5 // pred_check
      %p205 = pneg %p204
    $region26: #{_stem_forward.1} parent=5 // pred_check_branch
      %207 = sbr.rel (%p205) target = $region28
    $region27: #{_stem_forward.1} parent=5 // pred_region
      // Predicated region
      $region29: #{_stem_forward.1} parent=27 // pred_check
        %p208 = pneg %p51
      $region30: #{_stem_forward.1} parent=27 // pred_check_branch
        %210 = sbr.rel (%p208) target = $region32
      $region31: #{_stem_forward.1} parent=27 // pred_region
        %s211 = smul.u32 128, %s17
        %s212 = smul.u32 2, %s19
        %p213 = scmp.lt.s32.totalorder %s211, 255
        %s214 = scalar_select %p213, %s211, 255
        %p215 = scmp.lt.s32.totalorder %s212, 1
        %s216 = scalar_select %p215, %s212, 1
        %s217 = smul.addr %s214, 2
        %s218 = sadd.s32 %s216, %s217
        %s219 = smul.addr %s218, 4
        %s220 = scalar_lea.vmem %s0, %s219
        %s221 = smul.u32 128, %s17
        %s222 = smul.u32 2, %s19
      $region32: #{_stem_forward.1} parent=27 // pred_fallthru
        _
    $region28: #{_stem_forward.1} parent=5 // pred_fallthru
      _
    %p223 = scmp.le.s32.totalorder 1, %s10
    %p224 = scmp.lt.s32.totalorder %s10, 3
    %p225 = pnand %p223, %p224
    %p226 = pneg %p225
    // Predicated region
    $region33: #{_stem_forward.1} parent=5 // pred_check
      _
    $region34: #{_stem_forward.1} parent=5 // pred_check_branch
      %228 = sbr.rel (%p225) target = $region36
    $region35: #{_stem_forward.1} parent=5 // pred_region
      %s229 = ssub.s32 %s10, 1
      %s230 = smul.u32 128, %s20
      %s231 = smul.u32 2, %s22
      %p232 = scmp.lt.s32.totalorder %s230, 255
      %s233 = scalar_select %p232, %s230, 255
      %p234 = scmp.lt.s32.totalorder %s231, 1
      %s235 = scalar_select %p234, %s231, 1
      %s236 = smul.addr %s233, 2
      %s237 = sadd.s32 %s235, %s236
      %s238 = smul.addr %s237, 4
      %s239 = scalar_lea.vmem %s0, %s238
      %p240 = pneg %p57
      %p241 = pneg %p54
      %s242 = smul.u32 32, %s22
      %p243 = scmp.lt.s32.totalorder %s242, 31
      %s244 = scalar_select %p243, %s242, 31
      %p245 = scmp.lt.s32.totalorder %s21, 0
      %s246 = scalar_select %p245, %s21, 0
      %s247 = sadd.s32 %s246, %s244
      %s248 = smul.addr %s247, 4
      %s249 = scalar_lea.vmem %s1, %s248
      %p250 = pneg %p85
      %p251 = pneg %p82
      %p252 = scmp.lt.s32.totalorder %s21, 0
      %s253 = scalar_select %p252, %s21, 0
      %s254 = scalar_lea.vmem %s2, %s253
      %p255 = pneg %p111
      %p256 = pneg %p108
      %p257 = scmp.lt.s32.totalorder %s21, 0
      %s258 = scalar_select %p257, %s21, 0
      %s259 = scalar_lea.vmem %s3, %s258
      %p260 = pneg %p137
      %p261 = pneg %p134
      %p262 = pneg %p165
      %p263 = pneg %p162
      %s264 = smul.u32 128, %s20
      %p265 = scmp.lt.s32.totalorder %s264, 255
      %s266 = scalar_select %p265, %s264, 255
      %p267 = scmp.lt.s32.totalorder %s21, 0
      %s268 = scalar_select %p267, %s21, 0
      %s269 = sadd.s32 %s268, %s266
      %s270 = smul.addr %s269, 4
      %s271 = scalar_lea.vmem %s4, %s270
      %s272 = smul.u32 128, %s20
      %s273 = smul.u32 2, %s22
      %p274 = scmp.lt.s32.totalorder %s272, 255
      %s275 = scalar_select %p274, %s272, 255
      %p276 = scmp.lt.s32.totalorder %s273, 1
      %s277 = scalar_select %p276, %s273, 1
      %s278 = smul.addr %s275, 2
      %s279 = sadd.s32 %s277, %s278
      %s280 = smul.addr %s279, 4
      %s281 = scalar_lea.vmem %s0, %s280
      %s282 = smul.u32 128, %s20
      %s283 = smul.u32 2, %s22
      %s284 = smul.u32 32, %s22
      %p285 = scmp.lt.s32.totalorder %s284, 31
      %s286 = scalar_select %p285, %s284, 31
      %p287 = scmp.lt.s32.totalorder %s21, 0
      %s288 = scalar_select %p287, %s21, 0
      %s289 = sadd.s32 %s288, %s286
      %s290 = smul.addr %s289, 4
      %s291 = scalar_lea.vmem %s1, %s290
      %s292 = smul.u32 32, %s22
      %p293 = scmp.lt.s32.totalorder %s21, 0
      %s294 = scalar_select %p293, %s21, 0
      %s295 = scalar_lea.vmem %s2, %s294
      %p296 = scmp.lt.s32.totalorder %s21, 0
      %s297 = scalar_select %p296, %s21, 0
      %s298 = scalar_lea.vmem %s3, %s297
      %s299 = smul.u32 128, %s20
      %p300 = scmp.lt.s32.totalorder %s299, 255
      %s301 = scalar_select %p300, %s299, 255
      %p302 = scmp.lt.s32.totalorder %s21, 0
      %s303 = scalar_select %p302, %s21, 0
      %s304 = sadd.s32 %s303, %s301
      %s305 = smul.addr %s304, 4
      %s306 = scalar_lea.vmem %s4, %s305
      %s307 = smul.u32 128, %s20
      %p308 = scmp.eq.s32.totalorder %s22, 0
      // Predicated region
      $region37: #{_stem_forward.1} parent=35 // pred_check
        %p309 = pneg %p308
      $region38: #{_stem_forward.1} parent=35 // pred_check_branch
        %311 = sbr.rel (%p309) target = $region40
      $region39: #{_stem_forward.1} parent=35 // pred_region
        %312 = vst [vmem:[#allocation2] sm:$0xff] 0.0
        %313 = vst [vmem:[#allocation2 + $0x8] sm:$0xff] 0.0
        %314 = vst [vmem:[#allocation2 + $0x10] sm:$0xff] 0.0
        %315 = vst [vmem:[#allocation2 + $0x18] sm:$0xff] 0.0
        %316 = vst [vmem:[#allocation2 + $0x20] sm:$0xff] 0.0
        %317 = vst [vmem:[#allocation2 + $0x28] sm:$0xff] 0.0
        %318 = vst [vmem:[#allocation2 + $0x30] sm:$0xff] 0.0
        %319 = vst [vmem:[#allocation2 + $0x38] sm:$0xff] 0.0
        %320 = vst [vmem:[#allocation2 + $0x40] sm:$0xff] 0.0
        %321 = vst [vmem:[#allocation2 + $0x48] sm:$0xff] 0.0
        %322 = vst [vmem:[#allocation2 + $0x50] sm:$0xff] 0.0
        %323 = vst [vmem:[#allocation2 + $0x58] sm:$0xff] 0.0
        %324 = vst [vmem:[#allocation2 + $0x60] sm:$0xff] 0.0
        %325 = vst [vmem:[#allocation2 + $0x68] sm:$0xff] 0.0
        %326 = vst [vmem:[#allocation2 + $0x70] sm:$0xff] 0.0
        %327 = vst [vmem:[#allocation2 + $0x78] sm:$0xff] 0.0
        %328 = vst [vmem:[#allocation2 + $0x80] sm:$0xff] 0.0
        %329 = vst [vmem:[#allocation2 + $0x88] sm:$0xff] 0.0
        %330 = vst [vmem:[#allocation2 + $0x90] sm:$0xff] 0.0
        %331 = vst [vmem:[#allocation2 + $0x98] sm:$0xff] 0.0
        %332 = vst [vmem:[#allocation2 + $0xa0] sm:$0xff] 0.0
        %333 = vst [vmem:[#allocation2 + $0xa8] sm:$0xff] 0.0
        %334 = vst [vmem:[#allocation2 + $0xb0] sm:$0xff] 0.0
        %335 = vst [vmem:[#allocation2 + $0xb8] sm:$0xff] 0.0
        %336 = vst [vmem:[#allocation2 + $0xc0] sm:$0xff] 0.0
        %337 = vst [vmem:[#allocation2 + $0xc8] sm:$0xff] 0.0
        %338 = vst [vmem:[#allocation2 + $0xd0] sm:$0xff] 0.0
        %339 = vst [vmem:[#allocation2 + $0xd8] sm:$0xff] 0.0
        %340 = vst [vmem:[#allocation2 + $0xe0] sm:$0xff] 0.0
        %341 = vst [vmem:[#allocation2 + $0xe8] sm:$0xff] 0.0
        %342 = vst [vmem:[#allocation2 + $0xf0] sm:$0xff] 0.0
        %343 = vst [vmem:[#allocation2 + $0xf8] sm:$0xff] 0.0
        %344 = vst [vmem:[#allocation2 + $0x100] sm:$0xff] 0.0
        %345 = vst [vmem:[#allocation2 + $0x108] sm:$0xff] 0.0
        %346 = vst [vmem:[#allocation2 + $0x110] sm:$0xff] 0.0
        %347 = vst [vmem:[#allocation2 + $0x118] sm:$0xff] 0.0
        %348 = vst [vmem:[#allocation2 + $0x120] sm:$0xff] 0.0
        %349 = vst [vmem:[#allocation2 + $0x128] sm:$0xff] 0.0
        %350 = vst [vmem:[#allocation2 + $0x130] sm:$0xff] 0.0
        %351 = vst [vmem:[#allocation2 + $0x138] sm:$0xff] 0.0
        %352 = vst [vmem:[#allocation2 + $0x140] sm:$0xff] 0.0
        %353 = vst [vmem:[#allocation2 + $0x148] sm:$0xff] 0.0
        %354 = vst [vmem:[#allocation2 + $0x150] sm:$0xff] 0.0
        %355 = vst [vmem:[#allocation2 + $0x158] sm:$0xff] 0.0
        %356 = vst [vmem:[#allocation2 + $0x160] sm:$0xff] 0.0
        %357 = vst [vmem:[#allocation2 + $0x168] sm:$0xff] 0.0
        %358 = vst [vmem:[#allocation2 + $0x170] sm:$0xff] 0.0
        %359 = vst [vmem:[#allocation2 + $0x178] sm:$0xff] 0.0
        %360 = vst [vmem:[#allocation2 + $0x180] sm:$0xff] 0.0
        %361 = vst [vmem:[#allocation2 + $0x188] sm:$0xff] 0.0
        %362 = vst [vmem:[#allocation2 + $0x190] sm:$0xff] 0.0
        %363 = vst [vmem:[#allocation2 + $0x198] sm:$0xff] 0.0
        %364 = vst [vmem:[#allocation2 + $0x1a0] sm:$0xff] 0.0
        %365 = vst [vmem:[#allocation2 + $0x1a8] sm:$0xff] 0.0
        %366 = vst [vmem:[#allocation2 + $0x1b0] sm:$0xff] 0.0
        %367 = vst [vmem:[#allocation2 + $0x1b8] sm:$0xff] 0.0
        %368 = vst [vmem:[#allocation2 + $0x1c0] sm:$0xff] 0.0
        %369 = vst [vmem:[#allocation2 + $0x1c8] sm:$0xff] 0.0
        %370 = vst [vmem:[#allocation2 + $0x1d0] sm:$0xff] 0.0
        %371 = vst [vmem:[#allocation2 + $0x1d8] sm:$0xff] 0.0
        %372 = vst [vmem:[#allocation2 + $0x1e0] sm:$0xff] 0.0
        %373 = vst [vmem:[#allocation2 + $0x1e8] sm:$0xff] 0.0
        %374 = vst [vmem:[#allocation2 + $0x1f0] sm:$0xff] 0.0
        %375 = vst [vmem:[#allocation2 + $0x1f8] sm:$0xff] 0.0
        %376 = vst [vmem:[#allocation2 + $0x200] sm:$0xff] 0.0
        %377 = vst [vmem:[#allocation2 + $0x208] sm:$0xff] 0.0
        %378 = vst [vmem:[#allocation2 + $0x210] sm:$0xff] 0.0
        %379 = vst [vmem:[#allocation2 + $0x218] sm:$0xff] 0.0
        %380 = vst [vmem:[#allocation2 + $0x220] sm:$0xff] 0.0
        %381 = vst [vmem:[#allocation2 + $0x228] sm:$0xff] 0.0
        %382 = vst [vmem:[#allocation2 + $0x230] sm:$0xff] 0.0
        %383 = vst [vmem:[#allocation2 + $0x238] sm:$0xff] 0.0
        %384 = vst [vmem:[#allocation2 + $0x240] sm:$0xff] 0.0
        %385 = vst [vmem:[#allocation2 + $0x248] sm:$0xff] 0.0
        %386 = vst [vmem:[#allocation2 + $0x250] sm:$0xff] 0.0
        %387 = vst [vmem:[#allocation2 + $0x258] sm:$0xff] 0.0
        %388 = vst [vmem:[#allocation2 + $0x260] sm:$0xff] 0.0
        %389 = vst [vmem:[#allocation2 + $0x268] sm:$0xff] 0.0
        %390 = vst [vmem:[#allocation2 + $0x270] sm:$0xff] 0.0
        %391 = vst [vmem:[#allocation2 + $0x278] sm:$0xff] 0.0
        %392 = vst [vmem:[#allocation2 + $0x280] sm:$0xff] 0.0
        %393 = vst [vmem:[#allocation2 + $0x288] sm:$0xff] 0.0
        %394 = vst [vmem:[#allocation2 + $0x290] sm:$0xff] 0.0
        %395 = vst [vmem:[#allocation2 + $0x298] sm:$0xff] 0.0
        %396 = vst [vmem:[#allocation2 + $0x2a0] sm:$0xff] 0.0
        %397 = vst [vmem:[#allocation2 + $0x2a8] sm:$0xff] 0.0
        %398 = vst [vmem:[#allocation2 + $0x2b0] sm:$0xff] 0.0
        %399 = vst [vmem:[#allocation2 + $0x2b8] sm:$0xff] 0.0
        %400 = vst [vmem:[#allocation2 + $0x2c0] sm:$0xff] 0.0
        %401 = vst [vmem:[#allocation2 + $0x2c8] sm:$0xff] 0.0
        %402 = vst [vmem:[#allocation2 + $0x2d0] sm:$0xff] 0.0
        %403 = vst [vmem:[#allocation2 + $0x2d8] sm:$0xff] 0.0
        %404 = vst [vmem:[#allocation2 + $0x2e0] sm:$0xff] 0.0
        %405 = vst [vmem:[#allocation2 + $0x2e8] sm:$0xff] 0.0
        %406 = vst [vmem:[#allocation2 + $0x2f0] sm:$0xff] 0.0
        %407 = vst [vmem:[#allocation2 + $0x2f8] sm:$0xff] 0.0
        %408 = vst [vmem:[#allocation2 + $0x300] sm:$0xff] 0.0
        %409 = vst [vmem:[#allocation2 + $0x308] sm:$0xff] 0.0
        %410 = vst [vmem:[#allocation2 + $0x310] sm:$0xff] 0.0
        %411 = vst [vmem:[#allocation2 + $0x318] sm:$0xff] 0.0
        %412 = vst [vmem:[#allocation2 + $0x320] sm:$0xff] 0.0
        %413 = vst [vmem:[#allocation2 + $0x328] sm:$0xff] 0.0
        %414 = vst [vmem:[#allocation2 + $0x330] sm:$0xff] 0.0
        %415 = vst [vmem:[#allocation2 + $0x338] sm:$0xff] 0.0
        %416 = vst [vmem:[#allocation2 + $0x340] sm:$0xff] 0.0
        %417 = vst [vmem:[#allocation2 + $0x348] sm:$0xff] 0.0
        %418 = vst [vmem:[#allocation2 + $0x350] sm:$0xff] 0.0
        %419 = vst [vmem:[#allocation2 + $0x358] sm:$0xff] 0.0
        %420 = vst [vmem:[#allocation2 + $0x360] sm:$0xff] 0.0
        %421 = vst [vmem:[#allocation2 + $0x368] sm:$0xff] 0.0
        %422 = vst [vmem:[#allocation2 + $0x370] sm:$0xff] 0.0
        %423 = vst [vmem:[#allocation2 + $0x378] sm:$0xff] 0.0
        %424 = vst [vmem:[#allocation2 + $0x380] sm:$0xff] 0.0
        %425 = vst [vmem:[#allocation2 + $0x388] sm:$0xff] 0.0
        %426 = vst [vmem:[#allocation2 + $0x390] sm:$0xff] 0.0
        %427 = vst [vmem:[#allocation2 + $0x398] sm:$0xff] 0.0
        %428 = vst [vmem:[#allocation2 + $0x3a0] sm:$0xff] 0.0
        %429 = vst [vmem:[#allocation2 + $0x3a8] sm:$0xff] 0.0
        %430 = vst [vmem:[#allocation2 + $0x3b0] sm:$0xff] 0.0
        %431 = vst [vmem:[#allocation2 + $0x3b8] sm:$0xff] 0.0
        %432 = vst [vmem:[#allocation2 + $0x3c0] sm:$0xff] 0.0
        %433 = vst [vmem:[#allocation2 + $0x3c8] sm:$0xff] 0.0
        %434 = vst [vmem:[#allocation2 + $0x3d0] sm:$0xff] 0.0
        %435 = vst [vmem:[#allocation2 + $0x3d8] sm:$0xff] 0.0
        %436 = vst [vmem:[#allocation2 + $0x3e0] sm:$0xff] 0.0
        %437 = vst [vmem:[#allocation2 + $0x3e8] sm:$0xff] 0.0
        %438 = vst [vmem:[#allocation2 + $0x3f0] sm:$0xff] 0.0
        %439 = vst [vmem:[#allocation2 + $0x3f8] sm:$0xff] 0.0
      $region40: #{_stem_forward.1} parent=35 // pred_fallthru
        _
      %v440 = vld [vmem:[#allocation2] sm:$0xff]
      %v441 = vld [vmem:[#allocation2 + $0x8] sm:$0xff]
      %v442 = vld [vmem:[#allocation2 + $0x10] sm:$0xff]
      %v443 = vld [vmem:[#allocation2 + $0x18] sm:$0xff]
      %v444 = vld [vmem:[#allocation2 + $0x20] sm:$0xff]
      %v445 = vld [vmem:[#allocation2 + $0x28] sm:$0xff]
      %v446 = vld [vmem:[#allocation2 + $0x30] sm:$0xff]
      %v447 = vld [vmem:[#allocation2 + $0x38] sm:$0xff]
      %v448 = vld [vmem:[#allocation2 + $0x40] sm:$0xff]
      %v449 = vld [vmem:[#allocation2 + $0x48] sm:$0xff]
      %v450 = vld [vmem:[#allocation2 + $0x50] sm:$0xff]
      %v451 = vld [vmem:[#allocation2 + $0x58] sm:$0xff]
      %v452 = vld [vmem:[#allocation2 + $0x60] sm:$0xff]
      %v453 = vld [vmem:[#allocation2 + $0x68] sm:$0xff]
      %v454 = vld [vmem:[#allocation2 + $0x70] sm:$0xff]
      %v455 = vld [vmem:[#allocation2 + $0x78] sm:$0xff]
      %v456 = vld [vmem:[#allocation2 + $0x80] sm:$0xff]
      %v457 = vld [vmem:[#allocation2 + $0x88] sm:$0xff]
      %v458 = vld [vmem:[#allocation2 + $0x90] sm:$0xff]
      %v459 = vld [vmem:[#allocation2 + $0x98] sm:$0xff]
      %v460 = vld [vmem:[#allocation2 + $0xa0] sm:$0xff]
      %v461 = vld [vmem:[#allocation2 + $0xa8] sm:$0xff]
      %v462 = vld [vmem:[#allocation2 + $0xb0] sm:$0xff]
      %v463 = vld [vmem:[#allocation2 + $0xb8] sm:$0xff]
      %v464 = vld [vmem:[#allocation2 + $0xc0] sm:$0xff]
      %v465 = vld [vmem:[#allocation2 + $0xc8] sm:$0xff]
      %v466 = vld [vmem:[#allocation2 + $0xd0] sm:$0xff]
      %v467 = vld [vmem:[#allocation2 + $0xd8] sm:$0xff]
      %v468 = vld [vmem:[#allocation2 + $0xe0] sm:$0xff]
      %v469 = vld [vmem:[#allocation2 + $0xe8] sm:$0xff]
      %v470 = vld [vmem:[#allocation2 + $0xf0] sm:$0xff]
      %v471 = vld [vmem:[#allocation2 + $0xf8] sm:$0xff]
      %v472 = vld [vmem:[#allocation2 + $0x100] sm:$0xff]
      %v473 = vld [vmem:[#allocation2 + $0x108] sm:$0xff]
      %v474 = vld [vmem:[#allocation2 + $0x110] sm:$0xff]
      %v475 = vld [vmem:[#allocation2 + $0x118] sm:$0xff]
      %v476 = vld [vmem:[#allocation2 + $0x120] sm:$0xff]
      %v477 = vld [vmem:[#allocation2 + $0x128] sm:$0xff]
      %v478 = vld [vmem:[#allocation2 + $0x130] sm:$0xff]
      %v479 = vld [vmem:[#allocation2 + $0x138] sm:$0xff]
      %v480 = vld [vmem:[#allocation2 + $0x140] sm:$0xff]
      %v481 = vld [vmem:[#allocation2 + $0x148] sm:$0xff]
      %v482 = vld [vmem:[#allocation2 + $0x150] sm:$0xff]
      %v483 = vld [vmem:[#allocation2 + $0x158] sm:$0xff]
      %v484 = vld [vmem:[#allocation2 + $0x160] sm:$0xff]
      %v485 = vld [vmem:[#allocation2 + $0x168] sm:$0xff]
      %v486 = vld [vmem:[#allocation2 + $0x170] sm:$0xff]
      %v487 = vld [vmem:[#allocation2 + $0x178] sm:$0xff]
      %v488 = vld [vmem:[#allocation2 + $0x180] sm:$0xff]
      %v489 = vld [vmem:[#allocation2 + $0x188] sm:$0xff]
      %v490 = vld [vmem:[#allocation2 + $0x190] sm:$0xff]
      %v491 = vld [vmem:[#allocation2 + $0x198] sm:$0xff]
      %v492 = vld [vmem:[#allocation2 + $0x1a0] sm:$0xff]
      %v493 = vld [vmem:[#allocation2 + $0x1a8] sm:$0xff]
      %v494 = vld [vmem:[#allocation2 + $0x1b0] sm:$0xff]
      %v495 = vld [vmem:[#allocation2 + $0x1b8] sm:$0xff]
      %v496 = vld [vmem:[#allocation2 + $0x1c0] sm:$0xff]
      %v497 = vld [vmem:[#allocation2 + $0x1c8] sm:$0xff]
      %v498 = vld [vmem:[#allocation2 + $0x1d0] sm:$0xff]
      %v499 = vld [vmem:[#allocation2 + $0x1d8] sm:$0xff]
      %v500 = vld [vmem:[#allocation2 + $0x1e0] sm:$0xff]
      %v501 = vld [vmem:[#allocation2 + $0x1e8] sm:$0xff]
      %v502 = vld [vmem:[#allocation2 + $0x1f0] sm:$0xff]
      %v503 = vld [vmem:[#allocation2 + $0x1f8] sm:$0xff]
      %v504 = vld [vmem:[#allocation2 + $0x200] sm:$0xff]
      %v505 = vld [vmem:[#allocation2 + $0x208] sm:$0xff]
      %v506 = vld [vmem:[#allocation2 + $0x210] sm:$0xff]
      %v507 = vld [vmem:[#allocation2 + $0x218] sm:$0xff]
      %v508 = vld [vmem:[#allocation2 + $0x220] sm:$0xff]
      %v509 = vld [vmem:[#allocation2 + $0x228] sm:$0xff]
      %v510 = vld [vmem:[#allocation2 + $0x230] sm:$0xff]
      %v511 = vld [vmem:[#allocation2 + $0x238] sm:$0xff]
      %v512 = vld [vmem:[#allocation2 + $0x240] sm:$0xff]
      %v513 = vld [vmem:[#allocation2 + $0x248] sm:$0xff]
      %v514 = vld [vmem:[#allocation2 + $0x250] sm:$0xff]
      %v515 = vld [vmem:[#allocation2 + $0x258] sm:$0xff]
      %v516 = vld [vmem:[#allocation2 + $0x260] sm:$0xff]
      %v517 = vld [vmem:[#allocation2 + $0x268] sm:$0xff]
      %v518 = vld [vmem:[#allocation2 + $0x270] sm:$0xff]
      %v519 = vld [vmem:[#allocation2 + $0x278] sm:$0xff]
      %v520 = vld [vmem:[#allocation2 + $0x280] sm:$0xff]
      %v521 = vld [vmem:[#allocation2 + $0x288] sm:$0xff]
      %v522 = vld [vmem:[#allocation2 + $0x290] sm:$0xff]
      %v523 = vld [vmem:[#allocation2 + $0x298] sm:$0xff]
      %v524 = vld [vmem:[#allocation2 + $0x2a0] sm:$0xff]
      %v525 = vld [vmem:[#allocation2 + $0x2a8] sm:$0xff]
      %v526 = vld [vmem:[#allocation2 + $0x2b0] sm:$0xff]
      %v527 = vld [vmem:[#allocation2 + $0x2b8] sm:$0xff]
      %v528 = vld [vmem:[#allocation2 + $0x2c0] sm:$0xff]
      %v529 = vld [vmem:[#allocation2 + $0x2c8] sm:$0xff]
      %v530 = vld [vmem:[#allocation2 + $0x2d0] sm:$0xff]
      %v531 = vld [vmem:[#allocation2 + $0x2d8] sm:$0xff]
      %v532 = vld [vmem:[#allocation2 + $0x2e0] sm:$0xff]
      %v533 = vld [vmem:[#allocation2 + $0x2e8] sm:$0xff]
      %v534 = vld [vmem:[#allocation2 + $0x2f0] sm:$0xff]
      %v535 = vld [vmem:[#allocation2 + $0x2f8] sm:$0xff]
      %v536 = vld [vmem:[#allocation2 + $0x300] sm:$0xff]
      %v537 = vld [vmem:[#allocation2 + $0x308] sm:$0xff]
      %v538 = vld [vmem:[#allocation2 + $0x310] sm:$0xff]
      %v539 = vld [vmem:[#allocation2 + $0x318] sm:$0xff]
      %v540 = vld [vmem:[#allocation2 + $0x320] sm:$0xff]
      %v541 = vld [vmem:[#allocation2 + $0x328] sm:$0xff]
      %v542 = vld [vmem:[#allocation2 + $0x330] sm:$0xff]
      %v543 = vld [vmem:[#allocation2 + $0x338] sm:$0xff]
      %v544 = vld [vmem:[#allocation2 + $0x340] sm:$0xff]
      %v545 = vld [vmem:[#allocation2 + $0x348] sm:$0xff]
      %v546 = vld [vmem:[#allocation2 + $0x350] sm:$0xff]
      %v547 = vld [vmem:[#allocation2 + $0x358] sm:$0xff]
      %v548 = vld [vmem:[#allocation2 + $0x360] sm:$0xff]
      %v549 = vld [vmem:[#allocation2 + $0x368] sm:$0xff]
      %v550 = vld [vmem:[#allocation2 + $0x370] sm:$0xff]
      %v551 = vld [vmem:[#allocation2 + $0x378] sm:$0xff]
      %v552 = vld [vmem:[#allocation2 + $0x380] sm:$0xff]
      %v553 = vld [vmem:[#allocation2 + $0x388] sm:$0xff]
      %v554 = vld [vmem:[#allocation2 + $0x390] sm:$0xff]
      %v555 = vld [vmem:[#allocation2 + $0x398] sm:$0xff]
      %v556 = vld [vmem:[#allocation2 + $0x3a0] sm:$0xff]
      %v557 = vld [vmem:[#allocation2 + $0x3a8] sm:$0xff]
      %v558 = vld [vmem:[#allocation2 + $0x3b0] sm:$0xff]
      %v559 = vld [vmem:[#allocation2 + $0x3b8] sm:$0xff]
      %v560 = vld [vmem:[#allocation2 + $0x3c0] sm:$0xff]
      %v561 = vld [vmem:[#allocation2 + $0x3c8] sm:$0xff]
      %v562 = vld [vmem:[#allocation2 + $0x3d0] sm:$0xff]
      %v563 = vld [vmem:[#allocation2 + $0x3d8] sm:$0xff]
      %v564 = vld [vmem:[#allocation2 + $0x3e0] sm:$0xff]
      %v565 = vld [vmem:[#allocation2 + $0x3e8] sm:$0xff]
      %v566 = vld [vmem:[#allocation2 + $0x3f0] sm:$0xff]
      %v567 = vld [vmem:[#allocation2 + $0x3f8] sm:$0xff]
      %v568 = vld [vmem:[%s281] sm:$0xff]
      %v569 = vld [vmem:[%s281 + $0x8] sm:$0xff]
      %v570 = vld [vmem:[%s281 + $0x10] sm:$0xff]
      %v571 = vld [vmem:[%s281 + $0x18] sm:$0xff]
      %v572 = vld [vmem:[%s281 + $0x20] sm:$0xff]
      %v573 = vld [vmem:[%s281 + $0x28] sm:$0xff]
      %v574 = vld [vmem:[%s281 + $0x30] sm:$0xff]
      %v575 = vld [vmem:[%s281 + $0x38] sm:$0xff]
      %v576 = vld [vmem:[%s281 + $0x40] sm:$0xff]
      %v577 = vld [vmem:[%s281 + $0x48] sm:$0xff]
      %v578 = vld [vmem:[%s281 + $0x50] sm:$0xff]
      %v579 = vld [vmem:[%s281 + $0x58] sm:$0xff]
      %v580 = vld [vmem:[%s281 + $0x60] sm:$0xff]
      %v581 = vld [vmem:[%s281 + $0x68] sm:$0xff]
      %v582 = vld [vmem:[%s281 + $0x70] sm:$0xff]
      %v583 = vld [vmem:[%s281 + $0x78] sm:$0xff]
      %v584 = vld [vmem:[%s281 + $0x80] sm:$0xff]
      %v585 = vld [vmem:[%s281 + $0x88] sm:$0xff]
      %v586 = vld [vmem:[%s281 + $0x90] sm:$0xff]
      %v587 = vld [vmem:[%s281 + $0x98] sm:$0xff]
      %v588 = vld [vmem:[%s281 + $0xa0] sm:$0xff]
      %v589 = vld [vmem:[%s281 + $0xa8] sm:$0xff]
      %v590 = vld [vmem:[%s281 + $0xb0] sm:$0xff]
      %v591 = vld [vmem:[%s281 + $0xb8] sm:$0xff]
      %v592 = vld [vmem:[%s281 + $0xc0] sm:$0xff]
      %v593 = vld [vmem:[%s281 + $0xc8] sm:$0xff]
      %v594 = vld [vmem:[%s281 + $0xd0] sm:$0xff]
      %v595 = vld [vmem:[%s281 + $0xd8] sm:$0xff]
      %v596 = vld [vmem:[%s281 + $0xe0] sm:$0xff]
      %v597 = vld [vmem:[%s281 + $0xe8] sm:$0xff]
      %v598 = vld [vmem:[%s281 + $0xf0] sm:$0xff]
      %v599 = vld [vmem:[%s281 + $0xf8] sm:$0xff]
      %v600 = vld [vmem:[%s281 + $0x100] sm:$0xff]
      %v601 = vld [vmem:[%s281 + $0x108] sm:$0xff]
      %v602 = vld [vmem:[%s281 + $0x110] sm:$0xff]
      %v603 = vld [vmem:[%s281 + $0x118] sm:$0xff]
      %v604 = vld [vmem:[%s281 + $0x120] sm:$0xff]
      %v605 = vld [vmem:[%s281 + $0x128] sm:$0xff]
      %v606 = vld [vmem:[%s281 + $0x130] sm:$0xff]
      %v607 = vld [vmem:[%s281 + $0x138] sm:$0xff]
      %v608 = vld [vmem:[%s281 + $0x140] sm:$0xff]
      %v609 = vld [vmem:[%s281 + $0x148] sm:$0xff]
      %v610 = vld [vmem:[%s281 + $0x150] sm:$0xff]
      %v611 = vld [vmem:[%s281 + $0x158] sm:$0xff]
      %v612 = vld [vmem:[%s281 + $0x160] sm:$0xff]
      %v613 = vld [vmem:[%s281 + $0x168] sm:$0xff]
      %v614 = vld [vmem:[%s281 + $0x170] sm:$0xff]
      %v615 = vld [vmem:[%s281 + $0x178] sm:$0xff]
      %v616 = vld [vmem:[%s281 + $0x180] sm:$0xff]
      %v617 = vld [vmem:[%s281 + $0x188] sm:$0xff]
      %v618 = vld [vmem:[%s281 + $0x190] sm:$0xff]
      %v619 = vld [vmem:[%s281 + $0x198] sm:$0xff]
      %v620 = vld [vmem:[%s281 + $0x1a0] sm:$0xff]
      %v621 = vld [vmem:[%s281 + $0x1a8] sm:$0xff]
      %v622 = vld [vmem:[%s281 + $0x1b0] sm:$0xff]
      %v623 = vld [vmem:[%s281 + $0x1b8] sm:$0xff]
      %v624 = vld [vmem:[%s281 + $0x1c0] sm:$0xff]
      %v625 = vld [vmem:[%s281 + $0x1c8] sm:$0xff]
      %v626 = vld [vmem:[%s281 + $0x1d0] sm:$0xff]
      %v627 = vld [vmem:[%s281 + $0x1d8] sm:$0xff]
      %v628 = vld [vmem:[%s281 + $0x1e0] sm:$0xff]
      %v629 = vld [vmem:[%s281 + $0x1e8] sm:$0xff]
      %v630 = vld [vmem:[%s281 + $0x1f0] sm:$0xff]
      %v631 = vld [vmem:[%s281 + $0x1f8] sm:$0xff]
      %v632 = vld [vmem:[%s281 + $0x200] sm:$0xff]
      %v633 = vld [vmem:[%s281 + $0x208] sm:$0xff]
      %v634 = vld [vmem:[%s281 + $0x210] sm:$0xff]
      %v635 = vld [vmem:[%s281 + $0x218] sm:$0xff]
      %v636 = vld [vmem:[%s281 + $0x220] sm:$0xff]
      %v637 = vld [vmem:[%s281 + $0x228] sm:$0xff]
      %v638 = vld [vmem:[%s281 + $0x230] sm:$0xff]
      %v639 = vld [vmem:[%s281 + $0x238] sm:$0xff]
      %v640 = vld [vmem:[%s281 + $0x240] sm:$0xff]
      %v641 = vld [vmem:[%s281 + $0x248] sm:$0xff]
      %v642 = vld [vmem:[%s281 + $0x250] sm:$0xff]
      %v643 = vld [vmem:[%s281 + $0x258] sm:$0xff]
      %v644 = vld [vmem:[%s281 + $0x260] sm:$0xff]
      %v645 = vld [vmem:[%s281 + $0x268] sm:$0xff]
      %v646 = vld [vmem:[%s281 + $0x270] sm:$0xff]
      %v647 = vld [vmem:[%s281 + $0x278] sm:$0xff]
      %v648 = vld [vmem:[%s281 + $0x280] sm:$0xff]
      %v649 = vld [vmem:[%s281 + $0x288] sm:$0xff]
      %v650 = vld [vmem:[%s281 + $0x290] sm:$0xff]
      %v651 = vld [vmem:[%s281 + $0x298] sm:$0xff]
      %v652 = vld [vmem:[%s281 + $0x2a0] sm:$0xff]
      %v653 = vld [vmem:[%s281 + $0x2a8] sm:$0xff]
      %v654 = vld [vmem:[%s281 + $0x2b0] sm:$0xff]
      %v655 = vld [vmem:[%s281 + $0x2b8] sm:$0xff]
      %v656 = vld [vmem:[%s281 + $0x2c0] sm:$0xff]
      %v657 = vld [vmem:[%s281 + $0x2c8] sm:$0xff]
      %v658 = vld [vmem:[%s281 + $0x2d0] sm:$0xff]
      %v659 = vld [vmem:[%s281 + $0x2d8] sm:$0xff]
      %v660 = vld [vmem:[%s281 + $0x2e0] sm:$0xff]
      %v661 = vld [vmem:[%s281 + $0x2e8] sm:$0xff]
      %v662 = vld [vmem:[%s281 + $0x2f0] sm:$0xff]
      %v663 = vld [vmem:[%s281 + $0x2f8] sm:$0xff]
      %v664 = vld [vmem:[%s281 + $0x300] sm:$0xff]
      %v665 = vld [vmem:[%s281 + $0x308] sm:$0xff]
      %v666 = vld [vmem:[%s281 + $0x310] sm:$0xff]
      %v667 = vld [vmem:[%s281 + $0x318] sm:$0xff]
      %v668 = vld [vmem:[%s281 + $0x320] sm:$0xff]
      %v669 = vld [vmem:[%s281 + $0x328] sm:$0xff]
      %v670 = vld [vmem:[%s281 + $0x330] sm:$0xff]
      %v671 = vld [vmem:[%s281 + $0x338] sm:$0xff]
      %v672 = vld [vmem:[%s281 + $0x340] sm:$0xff]
      %v673 = vld [vmem:[%s281 + $0x348] sm:$0xff]
      %v674 = vld [vmem:[%s281 + $0x350] sm:$0xff]
      %v675 = vld [vmem:[%s281 + $0x358] sm:$0xff]
      %v676 = vld [vmem:[%s281 + $0x360] sm:$0xff]
      %v677 = vld [vmem:[%s281 + $0x368] sm:$0xff]
      %v678 = vld [vmem:[%s281 + $0x370] sm:$0xff]
      %v679 = vld [vmem:[%s281 + $0x378] sm:$0xff]
      %v680 = vld [vmem:[%s281 + $0x380] sm:$0xff]
      %v681 = vld [vmem:[%s281 + $0x388] sm:$0xff]
      %v682 = vld [vmem:[%s281 + $0x390] sm:$0xff]
      %v683 = vld [vmem:[%s281 + $0x398] sm:$0xff]
      %v684 = vld [vmem:[%s281 + $0x3a0] sm:$0xff]
      %v685 = vld [vmem:[%s281 + $0x3a8] sm:$0xff]
      %v686 = vld [vmem:[%s281 + $0x3b0] sm:$0xff]
      %v687 = vld [vmem:[%s281 + $0x3b8] sm:$0xff]
      %v688 = vld [vmem:[%s281 + $0x3c0] sm:$0xff]
      %v689 = vld [vmem:[%s281 + $0x3c8] sm:$0xff]
      %v690 = vld [vmem:[%s281 + $0x3d0] sm:$0xff]
      %v691 = vld [vmem:[%s281 + $0x3d8] sm:$0xff]
      %v692 = vld [vmem:[%s281 + $0x3e0] sm:$0xff]
      %v693 = vld [vmem:[%s281 + $0x3e8] sm:$0xff]
      %v694 = vld [vmem:[%s281 + $0x3f0] sm:$0xff]
      %v695 = vld [vmem:[%s281 + $0x3f8] sm:$0xff]
      %v696 = vld [vmem:[%s291] sm:$0xf]
      %v697 = vld [vmem:[%s291 + $0x4] sm:$0xf]
      %v698 = vld [vmem:[%s291 + $0x8] sm:$0xf]
      %v699 = vld [vmem:[%s291 + $0xc] sm:$0xf]
      %v700 = vld [vmem:[%s291 + $0x10] sm:$0xf]
      %v701 = vld [vmem:[%s291 + $0x14] sm:$0xf]
      %v702 = vld [vmem:[%s291 + $0x18] sm:$0xf]
      %v703 = vld [vmem:[%s291 + $0x1c] sm:$0xf]
      %v704 = vld [vmem:[%s291 + $0x20] sm:$0xf]
      %v705 = vld [vmem:[%s291 + $0x24] sm:$0xf]
      %v706 = vld [vmem:[%s291 + $0x28] sm:$0xf]
      %v707 = vld [vmem:[%s291 + $0x2c] sm:$0xf]
      %v708 = vld [vmem:[%s291 + $0x30] sm:$0xf]
      %v709 = vld [vmem:[%s291 + $0x34] sm:$0xf]
      %v710 = vld [vmem:[%s291 + $0x38] sm:$0xf]
      %v711 = vld [vmem:[%s291 + $0x3c] sm:$0xf]
      %v712 = vld [vmem:[%s291 + $0x40] sm:$0xf]
      %v713 = vld [vmem:[%s291 + $0x44] sm:$0xf]
      %v714 = vld [vmem:[%s291 + $0x48] sm:$0xf]
      %v715 = vld [vmem:[%s291 + $0x4c] sm:$0xf]
      %v716 = vld [vmem:[%s291 + $0x50] sm:$0xf]
      %v717 = vld [vmem:[%s291 + $0x54] sm:$0xf]
      %v718 = vld [vmem:[%s291 + $0x58] sm:$0xf]
      %v719 = vld [vmem:[%s291 + $0x5c] sm:$0xf]
      %v720 = vld [vmem:[%s291 + $0x60] sm:$0xf]
      %v721 = vld [vmem:[%s291 + $0x64] sm:$0xf]
      %v722 = vld [vmem:[%s291 + $0x68] sm:$0xf]
      %v723 = vld [vmem:[%s291 + $0x6c] sm:$0xf]
      %v724 = vld [vmem:[%s291 + $0x70] sm:$0xf]
      %v725 = vld [vmem:[%s291 + $0x74] sm:$0xf]
      %v726 = vld [vmem:[%s291 + $0x78] sm:$0xf]
      %v727 = vld [vmem:[%s291 + $0x7c] sm:$0xf]
      %v856 = vunpack.c.l.b16 %v568
      %v857 = vunpack.c.h.b16 %v568
      %v858 = vunpack.c.l.b16 %v569
      %v859 = vunpack.c.h.b16 %v569
      %v860 = vunpack.c.l.b16 %v570
      %v861 = vunpack.c.h.b16 %v570
      %v862 = vunpack.c.l.b16 %v571
      %v863 = vunpack.c.h.b16 %v571
      %v864 = vunpack.c.l.b16 %v572
      %v865 = vunpack.c.h.b16 %v572
      %v866 = vunpack.c.l.b16 %v573
      %v867 = vunpack.c.h.b16 %v573
      %v868 = vunpack.c.l.b16 %v574
      %v869 = vunpack.c.h.b16 %v574
      %v870 = vunpack.c.l.b16 %v575
      %v871 = vunpack.c.h.b16 %v575
      %v872 = vunpack.c.l.b16 %v576
      %v873 = vunpack.c.h.b16 %v576
      %v874 = vunpack.c.l.b16 %v577
      %v875 = vunpack.c.h.b16 %v577
      %v876 = vunpack.c.l.b16 %v578
      %v877 = vunpack.c.h.b16 %v578
      %v878 = vunpack.c.l.b16 %v579
      %v879 = vunpack.c.h.b16 %v579
      %v880 = vunpack.c.l.b16 %v580
      %v881 = vunpack.c.h.b16 %v580
      %v882 = vunpack.c.l.b16 %v581
      %v883 = vunpack.c.h.b16 %v581
      %v884 = vunpack.c.l.b16 %v582
      %v885 = vunpack.c.h.b16 %v582
      %v886 = vunpack.c.l.b16 %v583
      %v887 = vunpack.c.h.b16 %v583
      %v888 = vunpack.c.l.b16 %v584
      %v889 = vunpack.c.h.b16 %v584
      %v890 = vunpack.c.l.b16 %v585
      %v891 = vunpack.c.h.b16 %v585
      %v892 = vunpack.c.l.b16 %v586
      %v893 = vunpack.c.h.b16 %v586
      %v894 = vunpack.c.l.b16 %v587
      %v895 = vunpack.c.h.b16 %v587
      %v896 = vunpack.c.l.b16 %v588
      %v897 = vunpack.c.h.b16 %v588
      %v898 = vunpack.c.l.b16 %v589
      %v899 = vunpack.c.h.b16 %v589
      %v900 = vunpack.c.l.b16 %v590
      %v901 = vunpack.c.h.b16 %v590
      %v902 = vunpack.c.l.b16 %v591
      %v903 = vunpack.c.h.b16 %v591
      %v904 = vunpack.c.l.b16 %v592
      %v905 = vunpack.c.h.b16 %v592
      %v906 = vunpack.c.l.b16 %v593
      %v907 = vunpack.c.h.b16 %v593
      %v908 = vunpack.c.l.b16 %v594
      %v909 = vunpack.c.h.b16 %v594
      %v910 = vunpack.c.l.b16 %v595
      %v911 = vunpack.c.h.b16 %v595
      %v912 = vunpack.c.l.b16 %v596
      %v913 = vunpack.c.h.b16 %v596
      %v914 = vunpack.c.l.b16 %v597
      %v915 = vunpack.c.h.b16 %v597
      %v916 = vunpack.c.l.b16 %v598
      %v917 = vunpack.c.h.b16 %v598
      %v918 = vunpack.c.l.b16 %v599
      %v919 = vunpack.c.h.b16 %v599
      %v920 = vunpack.c.l.b16 %v600
      %v921 = vunpack.c.h.b16 %v600
      %v922 = vunpack.c.l.b16 %v601
      %v923 = vunpack.c.h.b16 %v601
      %v924 = vunpack.c.l.b16 %v602
      %v925 = vunpack.c.h.b16 %v602
      %v926 = vunpack.c.l.b16 %v603
      %v927 = vunpack.c.h.b16 %v603
      %v928 = vunpack.c.l.b16 %v604
      %v929 = vunpack.c.h.b16 %v604
      %v930 = vunpack.c.l.b16 %v605
      %v931 = vunpack.c.h.b16 %v605
      %v932 = vunpack.c.l.b16 %v606
      %v933 = vunpack.c.h.b16 %v606
      %v934 = vunpack.c.l.b16 %v607
      %v935 = vunpack.c.h.b16 %v607
      %v936 = vunpack.c.l.b16 %v608
      %v937 = vunpack.c.h.b16 %v608
      %v938 = vunpack.c.l.b16 %v609
      %v939 = vunpack.c.h.b16 %v609
      %v940 = vunpack.c.l.b16 %v610
      %v941 = vunpack.c.h.b16 %v610
      %v942 = vunpack.c.l.b16 %v611
      %v943 = vunpack.c.h.b16 %v611
      %v944 = vunpack.c.l.b16 %v612
      %v945 = vunpack.c.h.b16 %v612
      %v946 = vunpack.c.l.b16 %v613
      %v947 = vunpack.c.h.b16 %v613
      %v948 = vunpack.c.l.b16 %v614
      %v949 = vunpack.c.h.b16 %v614
      %v950 = vunpack.c.l.b16 %v615
      %v951 = vunpack.c.h.b16 %v615
      %v952 = vunpack.c.l.b16 %v616
      %v953 = vunpack.c.h.b16 %v616
      %v954 = vunpack.c.l.b16 %v617
      %v955 = vunpack.c.h.b16 %v617
      %v956 = vunpack.c.l.b16 %v618
      %v957 = vunpack.c.h.b16 %v618
      %v958 = vunpack.c.l.b16 %v619
      %v959 = vunpack.c.h.b16 %v619
      %v960 = vunpack.c.l.b16 %v620
      %v961 = vunpack.c.h.b16 %v620
      %v962 = vunpack.c.l.b16 %v621
      %v963 = vunpack.c.h.b16 %v621
      %v964 = vunpack.c.l.b16 %v622
      %v965 = vunpack.c.h.b16 %v622
      %v966 = vunpack.c.l.b16 %v623
      %v967 = vunpack.c.h.b16 %v623
      %v968 = vunpack.c.l.b16 %v624
      %v969 = vunpack.c.h.b16 %v624
      %v970 = vunpack.c.l.b16 %v625
      %v971 = vunpack.c.h.b16 %v625
      %v972 = vunpack.c.l.b16 %v626
      %v973 = vunpack.c.h.b16 %v626
      %v974 = vunpack.c.l.b16 %v627
      %v975 = vunpack.c.h.b16 %v627
      %v976 = vunpack.c.l.b16 %v628
      %v977 = vunpack.c.h.b16 %v628
      %v978 = vunpack.c.l.b16 %v629
      %v979 = vunpack.c.h.b16 %v629
      %v980 = vunpack.c.l.b16 %v630
      %v981 = vunpack.c.h.b16 %v630
      %v982 = vunpack.c.l.b16 %v631
      %v983 = vunpack.c.h.b16 %v631
      %v984 = vunpack.c.l.b16 %v632
      %v985 = vunpack.c.h.b16 %v632
      %v986 = vunpack.c.l.b16 %v633
      %v987 = vunpack.c.h.b16 %v633
      %v988 = vunpack.c.l.b16 %v634
      %v989 = vunpack.c.h.b16 %v634
      %v990 = vunpack.c.l.b16 %v635
      %v991 = vunpack.c.h.b16 %v635
      %v992 = vunpack.c.l.b16 %v636
      %v993 = vunpack.c.h.b16 %v636
      %v994 = vunpack.c.l.b16 %v637
      %v995 = vunpack.c.h.b16 %v637
      %v996 = vunpack.c.l.b16 %v638
      %v997 = vunpack.c.h.b16 %v638
      %v998 = vunpack.c.l.b16 %v639
      %v999 = vunpack.c.h.b16 %v639
      %v1000 = vunpack.c.l.b16 %v640
      %v1001 = vunpack.c.h.b16 %v640
      %v1002 = vunpack.c.l.b16 %v641
      %v1003 = vunpack.c.h.b16 %v641
      %v1004 = vunpack.c.l.b16 %v642
      %v1005 = vunpack.c.h.b16 %v642
      %v1006 = vunpack.c.l.b16 %v643
      %v1007 = vunpack.c.h.b16 %v643
      %v1008 = vunpack.c.l.b16 %v644
      %v1009 = vunpack.c.h.b16 %v644
      %v1010 = vunpack.c.l.b16 %v645
      %v1011 = vunpack.c.h.b16 %v645
      %v1012 = vunpack.c.l.b16 %v646
      %v1013 = vunpack.c.h.b16 %v646
      %v1014 = vunpack.c.l.b16 %v647
      %v1015 = vunpack.c.h.b16 %v647
      %v1016 = vunpack.c.l.b16 %v648
      %v1017 = vunpack.c.h.b16 %v648
      %v1018 = vunpack.c.l.b16 %v649
      %v1019 = vunpack.c.h.b16 %v649
      %v1020 = vunpack.c.l.b16 %v650
      %v1021 = vunpack.c.h.b16 %v650
      %v1022 = vunpack.c.l.b16 %v651
      %v1023 = vunpack.c.h.b16 %v651
      %v1024 = vunpack.c.l.b16 %v652
      %v1025 = vunpack.c.h.b16 %v652
      %v1026 = vunpack.c.l.b16 %v653
      %v1027 = vunpack.c.h.b16 %v653
      %v1028 = vunpack.c.l.b16 %v654
      %v1029 = vunpack.c.h.b16 %v654
      %v1030 = vunpack.c.l.b16 %v655
      %v1031 = vunpack.c.h.b16 %v655
      %v1032 = vunpack.c.l.b16 %v656
      %v1033 = vunpack.c.h.b16 %v656
      %v1034 = vunpack.c.l.b16 %v657
      %v1035 = vunpack.c.h.b16 %v657
      %v1036 = vunpack.c.l.b16 %v658
      %v1037 = vunpack.c.h.b16 %v658
      %v1038 = vunpack.c.l.b16 %v659
      %v1039 = vunpack.c.h.b16 %v659
      %v1040 = vunpack.c.l.b16 %v660
      %v1041 = vunpack.c.h.b16 %v660
      %v1042 = vunpack.c.l.b16 %v661
      %v1043 = vunpack.c.h.b16 %v661
      %v1044 = vunpack.c.l.b16 %v662
      %v1045 = vunpack.c.h.b16 %v662
      %v1046 = vunpack.c.l.b16 %v663
      %v1047 = vunpack.c.h.b16 %v663
      %v1048 = vunpack.c.l.b16 %v664
      %v1049 = vunpack.c.h.b16 %v664
      %v1050 = vunpack.c.l.b16 %v665
      %v1051 = vunpack.c.h.b16 %v665
      %v1052 = vunpack.c.l.b16 %v666
      %v1053 = vunpack.c.h.b16 %v666
      %v1054 = vunpack.c.l.b16 %v667
      %v1055 = vunpack.c.h.b16 %v667
      %v1056 = vunpack.c.l.b16 %v668
      %v1057 = vunpack.c.h.b16 %v668
      %v1058 = vunpack.c.l.b16 %v669
      %v1059 = vunpack.c.h.b16 %v669
      %v1060 = vunpack.c.l.b16 %v670
      %v1061 = vunpack.c.h.b16 %v670
      %v1062 = vunpack.c.l.b16 %v671
      %v1063 = vunpack.c.h.b16 %v671
      %v1064 = vunpack.c.l.b16 %v672
      %v1065 = vunpack.c.h.b16 %v672
      %v1066 = vunpack.c.l.b16 %v673
      %v1067 = vunpack.c.h.b16 %v673
      %v1068 = vunpack.c.l.b16 %v674
      %v1069 = vunpack.c.h.b16 %v674
      %v1070 = vunpack.c.l.b16 %v675
      %v1071 = vunpack.c.h.b16 %v675
      %v1072 = vunpack.c.l.b16 %v676
      %v1073 = vunpack.c.h.b16 %v676
      %v1074 = vunpack.c.l.b16 %v677
      %v1075 = vunpack.c.h.b16 %v677
      %v1076 = vunpack.c.l.b16 %v678
      %v1077 = vunpack.c.h.b16 %v678
      %v1078 = vunpack.c.l.b16 %v679
      %v1079 = vunpack.c.h.b16 %v679
      %v1080 = vunpack.c.l.b16 %v680
      %v1081 = vunpack.c.h.b16 %v680
      %v1082 = vunpack.c.l.b16 %v681
      %v1083 = vunpack.c.h.b16 %v681
      %v1084 = vunpack.c.l.b16 %v682
      %v1085 = vunpack.c.h.b16 %v682
      %v1086 = vunpack.c.l.b16 %v683
      %v1087 = vunpack.c.h.b16 %v683
      %v1088 = vunpack.c.l.b16 %v684
      %v1089 = vunpack.c.h.b16 %v684
      %v1090 = vunpack.c.l.b16 %v685
      %v1091 = vunpack.c.h.b16 %v685
      %v1092 = vunpack.c.l.b16 %v686
      %v1093 = vunpack.c.h.b16 %v686
      %v1094 = vunpack.c.l.b16 %v687
      %v1095 = vunpack.c.h.b16 %v687
      %v1096 = vunpack.c.l.b16 %v688
      %v1097 = vunpack.c.h.b16 %v688
      %v1098 = vunpack.c.l.b16 %v689
      %v1099 = vunpack.c.h.b16 %v689
      %v1100 = vunpack.c.l.b16 %v690
      %v1101 = vunpack.c.h.b16 %v690
      %v1102 = vunpack.c.l.b16 %v691
      %v1103 = vunpack.c.h.b16 %v691
      %v1104 = vunpack.c.l.b16 %v692
      %v1105 = vunpack.c.h.b16 %v692
      %v1106 = vunpack.c.l.b16 %v693
      %v1107 = vunpack.c.h.b16 %v693
      %v1108 = vunpack.c.l.b16 %v694
      %v1109 = vunpack.c.h.b16 %v694
      %v1110 = vunpack.c.l.b16 %v695
      %v1111 = vunpack.c.h.b16 %v695
      %v1112 = vpack.c.b16 %v858, %v856
      %v1113 = vpack.c.b16 %v859, %v857
      %v1114 = vpack.c.b16 %v862, %v860
      %v1115 = vpack.c.b16 %v863, %v861
      %v1116 = vpack.c.b16 %v866, %v864
      %v1117 = vpack.c.b16 %v867, %v865
      %v1118 = vpack.c.b16 %v870, %v868
      %v1119 = vpack.c.b16 %v871, %v869
      %v1120 = vpack.c.b16 %v874, %v872
      %v1121 = vpack.c.b16 %v875, %v873
      %v1122 = vpack.c.b16 %v878, %v876
      %v1123 = vpack.c.b16 %v879, %v877
      %v1124 = vpack.c.b16 %v882, %v880
      %v1125 = vpack.c.b16 %v883, %v881
      %v1126 = vpack.c.b16 %v886, %v884
      %v1127 = vpack.c.b16 %v887, %v885
      %v1128 = vpack.c.b16 %v890, %v888
      %v1129 = vpack.c.b16 %v891, %v889
      %v1130 = vpack.c.b16 %v894, %v892
      %v1131 = vpack.c.b16 %v895, %v893
      %v1132 = vpack.c.b16 %v898, %v896
      %v1133 = vpack.c.b16 %v899, %v897
      %v1134 = vpack.c.b16 %v902, %v900
      %v1135 = vpack.c.b16 %v903, %v901
      %v1136 = vpack.c.b16 %v906, %v904
      %v1137 = vpack.c.b16 %v907, %v905
      %v1138 = vpack.c.b16 %v910, %v908
      %v1139 = vpack.c.b16 %v911, %v909
      %v1140 = vpack.c.b16 %v914, %v912
      %v1141 = vpack.c.b16 %v915, %v913
      %v1142 = vpack.c.b16 %v918, %v916
      %v1143 = vpack.c.b16 %v919, %v917
      %v1144 = vpack.c.b16 %v922, %v920
      %v1145 = vpack.c.b16 %v923, %v921
      %v1146 = vpack.c.b16 %v926, %v924
      %v1147 = vpack.c.b16 %v927, %v925
      %v1148 = vpack.c.b16 %v930, %v928
      %v1149 = vpack.c.b16 %v931, %v929
      %v1150 = vpack.c.b16 %v934, %v932
      %v1151 = vpack.c.b16 %v935, %v933
      %v1152 = vpack.c.b16 %v938, %v936
      %v1153 = vpack.c.b16 %v939, %v937
      %v1154 = vpack.c.b16 %v942, %v940
      %v1155 = vpack.c.b16 %v943, %v941
      %v1156 = vpack.c.b16 %v946, %v944
      %v1157 = vpack.c.b16 %v947, %v945
      %v1158 = vpack.c.b16 %v950, %v948
      %v1159 = vpack.c.b16 %v951, %v949
      %v1160 = vpack.c.b16 %v954, %v952
      %v1161 = vpack.c.b16 %v955, %v953
      %v1162 = vpack.c.b16 %v958, %v956
      %v1163 = vpack.c.b16 %v959, %v957
      %v1164 = vpack.c.b16 %v962, %v960
      %v1165 = vpack.c.b16 %v963, %v961
      %v1166 = vpack.c.b16 %v966, %v964
      %v1167 = vpack.c.b16 %v967, %v965
      %v1168 = vpack.c.b16 %v970, %v968
      %v1169 = vpack.c.b16 %v971, %v969
      %v1170 = vpack.c.b16 %v974, %v972
      %v1171 = vpack.c.b16 %v975, %v973
      %v1172 = vpack.c.b16 %v978, %v976
      %v1173 = vpack.c.b16 %v979, %v977
      %v1174 = vpack.c.b16 %v982, %v980
      %v1175 = vpack.c.b16 %v983, %v981
      %v1176 = vpack.c.b16 %v986, %v984
      %v1177 = vpack.c.b16 %v987, %v985
      %v1178 = vpack.c.b16 %v990, %v988
      %v1179 = vpack.c.b16 %v991, %v989
      %v1180 = vpack.c.b16 %v994, %v992
      %v1181 = vpack.c.b16 %v995, %v993
      %v1182 = vpack.c.b16 %v998, %v996
      %v1183 = vpack.c.b16 %v999, %v997
      %v1184 = vpack.c.b16 %v1002, %v1000
      %v1185 = vpack.c.b16 %v1003, %v1001
      %v1186 = vpack.c.b16 %v1006, %v1004
      %v1187 = vpack.c.b16 %v1007, %v1005
      %v1188 = vpack.c.b16 %v1010, %v1008
      %v1189 = vpack.c.b16 %v1011, %v1009
      %v1190 = vpack.c.b16 %v1014, %v1012
      %v1191 = vpack.c.b16 %v1015, %v1013
      %v1192 = vpack.c.b16 %v1018, %v1016
      %v1193 = vpack.c.b16 %v1019, %v1017
      %v1194 = vpack.c.b16 %v1022, %v1020
      %v1195 = vpack.c.b16 %v1023, %v1021
      %v1196 = vpack.c.b16 %v1026, %v1024
      %v1197 = vpack.c.b16 %v1027, %v1025
      %v1198 = vpack.c.b16 %v1030, %v1028
      %v1199 = vpack.c.b16 %v1031, %v1029
      %v1200 = vpack.c.b16 %v1034, %v1032
      %v1201 = vpack.c.b16 %v1035, %v1033
      %v1202 = vpack.c.b16 %v1038, %v1036
      %v1203 = vpack.c.b16 %v1039, %v1037
      %v1204 = vpack.c.b16 %v1042, %v1040
      %v1205 = vpack.c.b16 %v1043, %v1041
      %v1206 = vpack.c.b16 %v1046, %v1044
      %v1207 = vpack.c.b16 %v1047, %v1045
      %v1208 = vpack.c.b16 %v1050, %v1048
      %v1209 = vpack.c.b16 %v1051, %v1049
      %v1210 = vpack.c.b16 %v1054, %v1052
      %v1211 = vpack.c.b16 %v1055, %v1053
      %v1212 = vpack.c.b16 %v1058, %v1056
      %v1213 = vpack.c.b16 %v1059, %v1057
      %v1214 = vpack.c.b16 %v1062, %v1060
      %v1215 = vpack.c.b16 %v1063, %v1061
      %v1216 = vpack.c.b16 %v1066, %v1064
      %v1217 = vpack.c.b16 %v1067, %v1065
      %v1218 = vpack.c.b16 %v1070, %v1068
      %v1219 = vpack.c.b16 %v1071, %v1069
      %v1220 = vpack.c.b16 %v1074, %v1072
      %v1221 = vpack.c.b16 %v1075, %v1073
      %v1222 = vpack.c.b16 %v1078, %v1076
      %v1223 = vpack.c.b16 %v1079, %v1077
      %v1224 = vpack.c.b16 %v1082, %v1080
      %v1225 = vpack.c.b16 %v1083, %v1081
      %v1226 = vpack.c.b16 %v1086, %v1084
      %v1227 = vpack.c.b16 %v1087, %v1085
      %v1228 = vpack.c.b16 %v1090, %v1088
      %v1229 = vpack.c.b16 %v1091, %v1089
      %v1230 = vpack.c.b16 %v1094, %v1092
      %v1231 = vpack.c.b16 %v1095, %v1093
      %v1232 = vpack.c.b16 %v1098, %v1096
      %v1233 = vpack.c.b16 %v1099, %v1097
      %v1234 = vpack.c.b16 %v1102, %v1100
      %v1235 = vpack.c.b16 %v1103, %v1101
      %v1236 = vpack.c.b16 %v1106, %v1104
      %v1237 = vpack.c.b16 %v1107, %v1105
      %v1238 = vpack.c.b16 %v1110, %v1108
      %v1239 = vpack.c.b16 %v1111, %v1109
      %v1400 = vunpack.c.l.b16 %v696
      %v1401 = vunpack.c.l.b16 %v697
      %v1402 = vunpack.c.l.b16 %v698
      %v1403 = vunpack.c.l.b16 %v699
      %v1404 = vunpack.c.l.b16 %v700
      %v1405 = vunpack.c.l.b16 %v701
      %v1406 = vunpack.c.l.b16 %v702
      %v1407 = vunpack.c.l.b16 %v703
      %v1408 = vunpack.c.l.b16 %v704
      %v1409 = vunpack.c.l.b16 %v705
      %v1410 = vunpack.c.l.b16 %v706
      %v1411 = vunpack.c.l.b16 %v707
      %v1412 = vunpack.c.l.b16 %v708
      %v1413 = vunpack.c.l.b16 %v709
      %v1414 = vunpack.c.l.b16 %v710
      %v1415 = vunpack.c.l.b16 %v711
      %v1416 = vunpack.c.l.b16 %v712
      %v1417 = vunpack.c.l.b16 %v713
      %v1418 = vunpack.c.l.b16 %v714
      %v1419 = vunpack.c.l.b16 %v715
      %v1420 = vunpack.c.l.b16 %v716
      %v1421 = vunpack.c.l.b16 %v717
      %v1422 = vunpack.c.l.b16 %v718
      %v1423 = vunpack.c.l.b16 %v719
      %v1424 = vunpack.c.l.b16 %v720
      %v1425 = vunpack.c.l.b16 %v721
      %v1426 = vunpack.c.l.b16 %v722
      %v1427 = vunpack.c.l.b16 %v723
      %v1428 = vunpack.c.l.b16 %v724
      %v1429 = vunpack.c.l.b16 %v725
      %v1430 = vunpack.c.l.b16 %v726
      %v1431 = vunpack.c.l.b16 %v727
      %v1432 = vpack.c.b16 %v1401, %v1400
      %v1433 = vpack.c.b16 %v1403, %v1402
      %v1434 = vpack.c.b16 %v1405, %v1404
      %v1435 = vpack.c.b16 %v1407, %v1406
      %v1436 = vpack.c.b16 %v1409, %v1408
      %v1437 = vpack.c.b16 %v1411, %v1410
      %v1438 = vpack.c.b16 %v1413, %v1412
      %v1439 = vpack.c.b16 %v1415, %v1414
      %v1440 = vpack.c.b16 %v1417, %v1416
      %v1441 = vpack.c.b16 %v1419, %v1418
      %v1442 = vpack.c.b16 %v1421, %v1420
      %v1443 = vpack.c.b16 %v1423, %v1422
      %v1444 = vpack.c.b16 %v1425, %v1424
      %v1445 = vpack.c.b16 %v1427, %v1426
      %v1446 = vpack.c.b16 %v1429, %v1428
      %v1447 = vpack.c.b16 %v1431, %v1430
      %1464 = vmatpush.bf16.msra.mxu0 %v1439
      %1465 = vmatpush.bf16.msra.mxu0 %v1438
      %1466 = vmatpush.bf16.msra.mxu0 %v1437
      %1467 = vmatpush.bf16.msra.mxu0 %v1436
      %1468 = vmatpush.bf16.msra.mxu0 %v1435
      %1469 = vmatpush.bf16.msra.mxu0 %v1434
      %1470 = vmatpush.bf16.msra.mxu0 %v1433
      %1471 = vmatpush.bf16.msra.mxu0 %v1432
      %1472 = vmatmul.bf16.gmra.mxu0 %v1112
      %v1473 = vpop.f32.mrf.mxu0
      %v1474 = vadd.f32 0.0, %v1473
      %v1475 = vpop.f32.mrf.mxu0
      %v1476 = vadd.f32 0.0, %v1475
      %1477 = vmatmul.bf16.gmra.mxu0 %v1114
      %v1478 = vpop.f32.mrf.mxu0
      %v1479 = vadd.f32 0.0, %v1478
      %v1480 = vpop.f32.mrf.mxu0
      %v1481 = vadd.f32 0.0, %v1480
      %1482 = vmatmul.bf16.gmra.mxu0 %v1116
      %v1483 = vpop.f32.mrf.mxu0
      %v1484 = vadd.f32 0.0, %v1483
      %v1485 = vpop.f32.mrf.mxu0
      %v1486 = vadd.f32 0.0, %v1485
      %1487 = vmatmul.bf16.gmra.mxu0 %v1118
      %v1488 = vpop.f32.mrf.mxu0
      %v1489 = vadd.f32 0.0, %v1488
      %v1490 = vpop.f32.mrf.mxu0
      %v1491 = vadd.f32 0.0, %v1490
      %1492 = vmatmul.bf16.gmra.mxu0 %v1120
      %v1493 = vpop.f32.mrf.mxu0
      %v1494 = vadd.f32 0.0, %v1493
      %v1495 = vpop.f32.mrf.mxu0
      %v1496 = vadd.f32 0.0, %v1495
      %1497 = vmatmul.bf16.gmra.mxu0 %v1122
      %v1498 = vpop.f32.mrf.mxu0
      %v1499 = vadd.f32 0.0, %v1498
      %v1500 = vpop.f32.mrf.mxu0
      %v1501 = vadd.f32 0.0, %v1500
      %1502 = vmatmul.bf16.gmra.mxu0 %v1124
      %v1503 = vpop.f32.mrf.mxu0
      %v1504 = vadd.f32 0.0, %v1503
      %v1505 = vpop.f32.mrf.mxu0
      %v1506 = vadd.f32 0.0, %v1505
      %1507 = vmatmul.bf16.gmra.mxu0 %v1126
      %v1508 = vpop.f32.mrf.mxu0
      %v1509 = vadd.f32 0.0, %v1508
      %v1510 = vpop.f32.mrf.mxu0
      %v1511 = vadd.f32 0.0, %v1510
      %1512 = vmatmul.bf16.gmra.mxu0 %v1128
      %v1513 = vpop.f32.mrf.mxu0
      %v1514 = vadd.f32 0.0, %v1513
      %v1515 = vpop.f32.mrf.mxu0
      %v1516 = vadd.f32 0.0, %v1515
      %1517 = vmatmul.bf16.gmra.mxu0 %v1130
      %v1518 = vpop.f32.mrf.mxu0
      %v1519 = vadd.f32 0.0, %v1518
      %v1520 = vpop.f32.mrf.mxu0
      %v1521 = vadd.f32 0.0, %v1520
      %1522 = vmatmul.bf16.gmra.mxu0 %v1132
      %v1523 = vpop.f32.mrf.mxu0
      %v1524 = vadd.f32 0.0, %v1523
      %v1525 = vpop.f32.mrf.mxu0
      %v1526 = vadd.f32 0.0, %v1525
      %1527 = vmatmul.bf16.gmra.mxu0 %v1134
      %v1528 = vpop.f32.mrf.mxu0
      %v1529 = vadd.f32 0.0, %v1528
      %v1530 = vpop.f32.mrf.mxu0
      %v1531 = vadd.f32 0.0, %v1530
      %1532 = vmatmul.bf16.gmra.mxu0 %v1136
      %v1533 = vpop.f32.mrf.mxu0
      %v1534 = vadd.f32 0.0, %v1533
      %v1535 = vpop.f32.mrf.mxu0
      %v1536 = vadd.f32 0.0, %v1535
      %1537 = vmatmul.bf16.gmra.mxu0 %v1138
      %v1538 = vpop.f32.mrf.mxu0
      %v1539 = vadd.f32 0.0, %v1538
      %v1540 = vpop.f32.mrf.mxu0
      %v1541 = vadd.f32 0.0, %v1540
      %1542 = vmatmul.bf16.gmra.mxu0 %v1140
      %v1543 = vpop.f32.mrf.mxu0
      %v1544 = vadd.f32 0.0, %v1543
      %v1545 = vpop.f32.mrf.mxu0
      %v1546 = vadd.f32 0.0, %v1545
      %1547 = vmatmul.bf16.gmra.mxu0 %v1142
      %v1548 = vpop.f32.mrf.mxu0
      %v1549 = vadd.f32 0.0, %v1548
      %v1550 = vpop.f32.mrf.mxu0
      %v1551 = vadd.f32 0.0, %v1550
      %1552 = vmatmul.bf16.gmra.mxu0 %v1144
      %v1553 = vpop.f32.mrf.mxu0
      %v1554 = vadd.f32 0.0, %v1553
      %v1555 = vpop.f32.mrf.mxu0
      %v1556 = vadd.f32 0.0, %v1555
      %1557 = vmatmul.bf16.gmra.mxu0 %v1146
      %v1558 = vpop.f32.mrf.mxu0
      %v1559 = vadd.f32 0.0, %v1558
      %v1560 = vpop.f32.mrf.mxu0
      %v1561 = vadd.f32 0.0, %v1560
      %1562 = vmatmul.bf16.gmra.mxu0 %v1148
      %v1563 = vpop.f32.mrf.mxu0
      %v1564 = vadd.f32 0.0, %v1563
      %v1565 = vpop.f32.mrf.mxu0
      %v1566 = vadd.f32 0.0, %v1565
      %1567 = vmatmul.bf16.gmra.mxu0 %v1150
      %v1568 = vpop.f32.mrf.mxu0
      %v1569 = vadd.f32 0.0, %v1568
      %v1570 = vpop.f32.mrf.mxu0
      %v1571 = vadd.f32 0.0, %v1570
      %1572 = vmatmul.bf16.gmra.mxu0 %v1152
      %v1573 = vpop.f32.mrf.mxu0
      %v1574 = vadd.f32 0.0, %v1573
      %v1575 = vpop.f32.mrf.mxu0
      %v1576 = vadd.f32 0.0, %v1575
      %1577 = vmatmul.bf16.gmra.mxu0 %v1154
      %v1578 = vpop.f32.mrf.mxu0
      %v1579 = vadd.f32 0.0, %v1578
      %v1580 = vpop.f32.mrf.mxu0
      %v1581 = vadd.f32 0.0, %v1580
      %1582 = vmatmul.bf16.gmra.mxu0 %v1156
      %v1583 = vpop.f32.mrf.mxu0
      %v1584 = vadd.f32 0.0, %v1583
      %v1585 = vpop.f32.mrf.mxu0
      %v1586 = vadd.f32 0.0, %v1585
      %1587 = vmatmul.bf16.gmra.mxu0 %v1158
      %v1588 = vpop.f32.mrf.mxu0
      %v1589 = vadd.f32 0.0, %v1588
      %v1590 = vpop.f32.mrf.mxu0
      %v1591 = vadd.f32 0.0, %v1590
      %1592 = vmatmul.bf16.gmra.mxu0 %v1160
      %v1593 = vpop.f32.mrf.mxu0
      %v1594 = vadd.f32 0.0, %v1593
      %v1595 = vpop.f32.mrf.mxu0
      %v1596 = vadd.f32 0.0, %v1595
      %1597 = vmatmul.bf16.gmra.mxu0 %v1162
      %v1598 = vpop.f32.mrf.mxu0
      %v1599 = vadd.f32 0.0, %v1598
      %v1600 = vpop.f32.mrf.mxu0
      %v1601 = vadd.f32 0.0, %v1600
      %1602 = vmatmul.bf16.gmra.mxu0 %v1164
      %v1603 = vpop.f32.mrf.mxu0
      %v1604 = vadd.f32 0.0, %v1603
      %v1605 = vpop.f32.mrf.mxu0
      %v1606 = vadd.f32 0.0, %v1605
      %1607 = vmatmul.bf16.gmra.mxu0 %v1166
      %v1608 = vpop.f32.mrf.mxu0
      %v1609 = vadd.f32 0.0, %v1608
      %v1610 = vpop.f32.mrf.mxu0
      %v1611 = vadd.f32 0.0, %v1610
      %1612 = vmatmul.bf16.gmra.mxu0 %v1168
      %v1613 = vpop.f32.mrf.mxu0
      %v1614 = vadd.f32 0.0, %v1613
      %v1615 = vpop.f32.mrf.mxu0
      %v1616 = vadd.f32 0.0, %v1615
      %1617 = vmatmul.bf16.gmra.mxu0 %v1170
      %v1618 = vpop.f32.mrf.mxu0
      %v1619 = vadd.f32 0.0, %v1618
      %v1620 = vpop.f32.mrf.mxu0
      %v1621 = vadd.f32 0.0, %v1620
      %1622 = vmatmul.bf16.gmra.mxu0 %v1172
      %v1623 = vpop.f32.mrf.mxu0
      %v1624 = vadd.f32 0.0, %v1623
      %v1625 = vpop.f32.mrf.mxu0
      %v1626 = vadd.f32 0.0, %v1625
      %1627 = vmatmul.bf16.gmra.mxu0 %v1174
      %v1628 = vpop.f32.mrf.mxu0
      %v1629 = vadd.f32 0.0, %v1628
      %v1630 = vpop.f32.mrf.mxu0
      %v1631 = vadd.f32 0.0, %v1630
      %1632 = vmatmul.bf16.gmra.mxu0 %v1176
      %v1633 = vpop.f32.mrf.mxu0
      %v1634 = vadd.f32 0.0, %v1633
      %v1635 = vpop.f32.mrf.mxu0
      %v1636 = vadd.f32 0.0, %v1635
      %1637 = vmatmul.bf16.gmra.mxu0 %v1178
      %v1638 = vpop.f32.mrf.mxu0
      %v1639 = vadd.f32 0.0, %v1638
      %v1640 = vpop.f32.mrf.mxu0
      %v1641 = vadd.f32 0.0, %v1640
      %1642 = vmatmul.bf16.gmra.mxu0 %v1180
      %v1643 = vpop.f32.mrf.mxu0
      %v1644 = vadd.f32 0.0, %v1643
      %v1645 = vpop.f32.mrf.mxu0
      %v1646 = vadd.f32 0.0, %v1645
      %1647 = vmatmul.bf16.gmra.mxu0 %v1182
      %v1648 = vpop.f32.mrf.mxu0
      %v1649 = vadd.f32 0.0, %v1648
      %v1650 = vpop.f32.mrf.mxu0
      %v1651 = vadd.f32 0.0, %v1650
      %1652 = vmatmul.bf16.gmra.mxu0 %v1184
      %v1653 = vpop.f32.mrf.mxu0
      %v1654 = vadd.f32 0.0, %v1653
      %v1655 = vpop.f32.mrf.mxu0
      %v1656 = vadd.f32 0.0, %v1655
      %1657 = vmatmul.bf16.gmra.mxu0 %v1186
      %v1658 = vpop.f32.mrf.mxu0
      %v1659 = vadd.f32 0.0, %v1658
      %v1660 = vpop.f32.mrf.mxu0
      %v1661 = vadd.f32 0.0, %v1660
      %1662 = vmatmul.bf16.gmra.mxu0 %v1188
      %v1663 = vpop.f32.mrf.mxu0
      %v1664 = vadd.f32 0.0, %v1663
      %v1665 = vpop.f32.mrf.mxu0
      %v1666 = vadd.f32 0.0, %v1665
      %1667 = vmatmul.bf16.gmra.mxu0 %v1190
      %v1668 = vpop.f32.mrf.mxu0
      %v1669 = vadd.f32 0.0, %v1668
      %v1670 = vpop.f32.mrf.mxu0
      %v1671 = vadd.f32 0.0, %v1670
      %1672 = vmatmul.bf16.gmra.mxu0 %v1192
      %v1673 = vpop.f32.mrf.mxu0
      %v1674 = vadd.f32 0.0, %v1673
      %v1675 = vpop.f32.mrf.mxu0
      %v1676 = vadd.f32 0.0, %v1675
      %1677 = vmatmul.bf16.gmra.mxu0 %v1194
      %v1678 = vpop.f32.mrf.mxu0
      %v1679 = vadd.f32 0.0, %v1678
      %v1680 = vpop.f32.mrf.mxu0
      %v1681 = vadd.f32 0.0, %v1680
      %1682 = vmatmul.bf16.gmra.mxu0 %v1196
      %v1683 = vpop.f32.mrf.mxu0
      %v1684 = vadd.f32 0.0, %v1683
      %v1685 = vpop.f32.mrf.mxu0
      %v1686 = vadd.f32 0.0, %v1685
      %1687 = vmatmul.bf16.gmra.mxu0 %v1198
      %v1688 = vpop.f32.mrf.mxu0
      %v1689 = vadd.f32 0.0, %v1688
      %v1690 = vpop.f32.mrf.mxu0
      %v1691 = vadd.f32 0.0, %v1690
      %1692 = vmatmul.bf16.gmra.mxu0 %v1200
      %v1693 = vpop.f32.mrf.mxu0
      %v1694 = vadd.f32 0.0, %v1693
      %v1695 = vpop.f32.mrf.mxu0
      %v1696 = vadd.f32 0.0, %v1695
      %1697 = vmatmul.bf16.gmra.mxu0 %v1202
      %v1698 = vpop.f32.mrf.mxu0
      %v1699 = vadd.f32 0.0, %v1698
      %v1700 = vpop.f32.mrf.mxu0
      %v1701 = vadd.f32 0.0, %v1700
      %1702 = vmatmul.bf16.gmra.mxu0 %v1204
      %v1703 = vpop.f32.mrf.mxu0
      %v1704 = vadd.f32 0.0, %v1703
      %v1705 = vpop.f32.mrf.mxu0
      %v1706 = vadd.f32 0.0, %v1705
      %1707 = vmatmul.bf16.gmra.mxu0 %v1206
      %v1708 = vpop.f32.mrf.mxu0
      %v1709 = vadd.f32 0.0, %v1708
      %v1710 = vpop.f32.mrf.mxu0
      %v1711 = vadd.f32 0.0, %v1710
      %1712 = vmatmul.bf16.gmra.mxu0 %v1208
      %v1713 = vpop.f32.mrf.mxu0
      %v1714 = vadd.f32 0.0, %v1713
      %v1715 = vpop.f32.mrf.mxu0
      %v1716 = vadd.f32 0.0, %v1715
      %1717 = vmatmul.bf16.gmra.mxu0 %v1210
      %v1718 = vpop.f32.mrf.mxu0
      %v1719 = vadd.f32 0.0, %v1718
      %v1720 = vpop.f32.mrf.mxu0
      %v1721 = vadd.f32 0.0, %v1720
      %1722 = vmatmul.bf16.gmra.mxu0 %v1212
      %v1723 = vpop.f32.mrf.mxu0
      %v1724 = vadd.f32 0.0, %v1723
      %v1725 = vpop.f32.mrf.mxu0
      %v1726 = vadd.f32 0.0, %v1725
      %1727 = vmatmul.bf16.gmra.mxu0 %v1214
      %v1728 = vpop.f32.mrf.mxu0
      %v1729 = vadd.f32 0.0, %v1728
      %v1730 = vpop.f32.mrf.mxu0
      %v1731 = vadd.f32 0.0, %v1730
      %1732 = vmatmul.bf16.gmra.mxu0 %v1216
      %v1733 = vpop.f32.mrf.mxu0
      %v1734 = vadd.f32 0.0, %v1733
      %v1735 = vpop.f32.mrf.mxu0
      %v1736 = vadd.f32 0.0, %v1735
      %1737 = vmatmul.bf16.gmra.mxu0 %v1218
      %v1738 = vpop.f32.mrf.mxu0
      %v1739 = vadd.f32 0.0, %v1738
      %v1740 = vpop.f32.mrf.mxu0
      %v1741 = vadd.f32 0.0, %v1740
      %1742 = vmatmul.bf16.gmra.mxu0 %v1220
      %v1743 = vpop.f32.mrf.mxu0
      %v1744 = vadd.f32 0.0, %v1743
      %v1745 = vpop.f32.mrf.mxu0
      %v1746 = vadd.f32 0.0, %v1745
      %1747 = vmatmul.bf16.gmra.mxu0 %v1222
      %v1748 = vpop.f32.mrf.mxu0
      %v1749 = vadd.f32 0.0, %v1748
      %v1750 = vpop.f32.mrf.mxu0
      %v1751 = vadd.f32 0.0, %v1750
      %1752 = vmatmul.bf16.gmra.mxu0 %v1224
      %v1753 = vpop.f32.mrf.mxu0
      %v1754 = vadd.f32 0.0, %v1753
      %v1755 = vpop.f32.mrf.mxu0
      %v1756 = vadd.f32 0.0, %v1755
      %1757 = vmatmul.bf16.gmra.mxu0 %v1226
      %v1758 = vpop.f32.mrf.mxu0
      %v1759 = vadd.f32 0.0, %v1758
      %v1760 = vpop.f32.mrf.mxu0
      %v1761 = vadd.f32 0.0, %v1760
      %1762 = vmatmul.bf16.gmra.mxu0 %v1228
      %v1763 = vpop.f32.mrf.mxu0
      %v1764 = vadd.f32 0.0, %v1763
      %v1765 = vpop.f32.mrf.mxu0
      %v1766 = vadd.f32 0.0, %v1765
      %1767 = vmatmul.bf16.gmra.mxu0 %v1230
      %v1768 = vpop.f32.mrf.mxu0
      %v1769 = vadd.f32 0.0, %v1768
      %v1770 = vpop.f32.mrf.mxu0
      %v1771 = vadd.f32 0.0, %v1770
      %1772 = vmatmul.bf16.gmra.mxu0 %v1232
      %v1773 = vpop.f32.mrf.mxu0
      %v1774 = vadd.f32 0.0, %v1773
      %v1775 = vpop.f32.mrf.mxu0
      %v1776 = vadd.f32 0.0, %v1775
      %1777 = vmatmul.bf16.gmra.mxu0 %v1234
      %v1778 = vpop.f32.mrf.mxu0
      %v1779 = vadd.f32 0.0, %v1778
      %v1780 = vpop.f32.mrf.mxu0
      %v1781 = vadd.f32 0.0, %v1780
      %1782 = vmatmul.bf16.gmra.mxu0 %v1236
      %v1783 = vpop.f32.mrf.mxu0
      %v1784 = vadd.f32 0.0, %v1783
      %v1785 = vpop.f32.mrf.mxu0
      %v1786 = vadd.f32 0.0, %v1785
      %1787 = vmatmul.bf16.gmra.mxu0 %v1238
      %v1788 = vpop.f32.mrf.mxu0
      %v1789 = vadd.f32 0.0, %v1788
      %v1790 = vpop.f32.mrf.mxu0
      %v1791 = vadd.f32 0.0, %v1790
      %1792 = vdwg.mxu0
      %1793 = vmatpush.bf16.msra.mxu0 %v1447
      %1794 = vmatpush.bf16.msra.mxu0 %v1446
      %1795 = vmatpush.bf16.msra.mxu0 %v1445
      %1796 = vmatpush.bf16.msra.mxu0 %v1444
      %1797 = vmatpush.bf16.msra.mxu0 %v1443
      %1798 = vmatpush.bf16.msra.mxu0 %v1442
      %1799 = vmatpush.bf16.msra.mxu0 %v1441
      %1800 = vmatpush.bf16.msra.mxu0 %v1440
      %1801 = vmatmul.bf16.gmra.mxu0 %v1113
      %v1802 = vpop.f32.mrf.mxu0
      %v1803 = vadd.f32 %v1474, %v1802
      %v1804 = vpop.f32.mrf.mxu0
      %v1805 = vadd.f32 %v1476, %v1804
      %1806 = vmatmul.bf16.gmra.mxu0 %v1115
      %v1807 = vpop.f32.mrf.mxu0
      %v1808 = vadd.f32 %v1479, %v1807
      %v1809 = vpop.f32.mrf.mxu0
      %v1810 = vadd.f32 %v1481, %v1809
      %1811 = vmatmul.bf16.gmra.mxu0 %v1117
      %v1812 = vpop.f32.mrf.mxu0
      %v1813 = vadd.f32 %v1484, %v1812
      %v1814 = vpop.f32.mrf.mxu0
      %v1815 = vadd.f32 %v1486, %v1814
      %1816 = vmatmul.bf16.gmra.mxu0 %v1119
      %v1817 = vpop.f32.mrf.mxu0
      %v1818 = vadd.f32 %v1489, %v1817
      %v1819 = vpop.f32.mrf.mxu0
      %v1820 = vadd.f32 %v1491, %v1819
      %1821 = vmatmul.bf16.gmra.mxu0 %v1121
      %v1822 = vpop.f32.mrf.mxu0
      %v1823 = vadd.f32 %v1494, %v1822
      %v1824 = vpop.f32.mrf.mxu0
      %v1825 = vadd.f32 %v1496, %v1824
      %1826 = vmatmul.bf16.gmra.mxu0 %v1123
      %v1827 = vpop.f32.mrf.mxu0
      %v1828 = vadd.f32 %v1499, %v1827
      %v1829 = vpop.f32.mrf.mxu0
      %v1830 = vadd.f32 %v1501, %v1829
      %1831 = vmatmul.bf16.gmra.mxu0 %v1125
      %v1832 = vpop.f32.mrf.mxu0
      %v1833 = vadd.f32 %v1504, %v1832
      %v1834 = vpop.f32.mrf.mxu0
      %v1835 = vadd.f32 %v1506, %v1834
      %1836 = vmatmul.bf16.gmra.mxu0 %v1127
      %v1837 = vpop.f32.mrf.mxu0
      %v1838 = vadd.f32 %v1509, %v1837
      %v1839 = vpop.f32.mrf.mxu0
      %v1840 = vadd.f32 %v1511, %v1839
      %1841 = vmatmul.bf16.gmra.mxu0 %v1129
      %v1842 = vpop.f32.mrf.mxu0
      %v1843 = vadd.f32 %v1514, %v1842
      %v1844 = vpop.f32.mrf.mxu0
      %v1845 = vadd.f32 %v1516, %v1844
      %1846 = vmatmul.bf16.gmra.mxu0 %v1131
      %v1847 = vpop.f32.mrf.mxu0
      %v1848 = vadd.f32 %v1519, %v1847
      %v1849 = vpop.f32.mrf.mxu0
      %v1850 = vadd.f32 %v1521, %v1849
      %1851 = vmatmul.bf16.gmra.mxu0 %v1133
      %v1852 = vpop.f32.mrf.mxu0
      %v1853 = vadd.f32 %v1524, %v1852
      %v1854 = vpop.f32.mrf.mxu0
      %v1855 = vadd.f32 %v1526, %v1854
      %1856 = vmatmul.bf16.gmra.mxu0 %v1135
      %v1857 = vpop.f32.mrf.mxu0
      %v1858 = vadd.f32 %v1529, %v1857
      %v1859 = vpop.f32.mrf.mxu0
      %v1860 = vadd.f32 %v1531, %v1859
      %1861 = vmatmul.bf16.gmra.mxu0 %v1137
      %v1862 = vpop.f32.mrf.mxu0
      %v1863 = vadd.f32 %v1534, %v1862
      %v1864 = vpop.f32.mrf.mxu0
      %v1865 = vadd.f32 %v1536, %v1864
      %1866 = vmatmul.bf16.gmra.mxu0 %v1139
      %v1867 = vpop.f32.mrf.mxu0
      %v1868 = vadd.f32 %v1539, %v1867
      %v1869 = vpop.f32.mrf.mxu0
      %v1870 = vadd.f32 %v1541, %v1869
      %1871 = vmatmul.bf16.gmra.mxu0 %v1141
      %v1872 = vpop.f32.mrf.mxu0
      %v1873 = vadd.f32 %v1544, %v1872
      %v1874 = vpop.f32.mrf.mxu0
      %v1875 = vadd.f32 %v1546, %v1874
      %1876 = vmatmul.bf16.gmra.mxu0 %v1143
      %v1877 = vpop.f32.mrf.mxu0
      %v1878 = vadd.f32 %v1549, %v1877
      %v1879 = vpop.f32.mrf.mxu0
      %v1880 = vadd.f32 %v1551, %v1879
      %1881 = vmatmul.bf16.gmra.mxu0 %v1145
      %v1882 = vpop.f32.mrf.mxu0
      %v1883 = vadd.f32 %v1554, %v1882
      %v1884 = vpop.f32.mrf.mxu0
      %v1885 = vadd.f32 %v1556, %v1884
      %1886 = vmatmul.bf16.gmra.mxu0 %v1147
      %v1887 = vpop.f32.mrf.mxu0
      %v1888 = vadd.f32 %v1559, %v1887
      %v1889 = vpop.f32.mrf.mxu0
      %v1890 = vadd.f32 %v1561, %v1889
      %1891 = vmatmul.bf16.gmra.mxu0 %v1149
      %v1892 = vpop.f32.mrf.mxu0
      %v1893 = vadd.f32 %v1564, %v1892
      %v1894 = vpop.f32.mrf.mxu0
      %v1895 = vadd.f32 %v1566, %v1894
      %1896 = vmatmul.bf16.gmra.mxu0 %v1151
      %v1897 = vpop.f32.mrf.mxu0
      %v1898 = vadd.f32 %v1569, %v1897
      %v1899 = vpop.f32.mrf.mxu0
      %v1900 = vadd.f32 %v1571, %v1899
      %1901 = vmatmul.bf16.gmra.mxu0 %v1153
      %v1902 = vpop.f32.mrf.mxu0
      %v1903 = vadd.f32 %v1574, %v1902
      %v1904 = vpop.f32.mrf.mxu0
      %v1905 = vadd.f32 %v1576, %v1904
      %1906 = vmatmul.bf16.gmra.mxu0 %v1155
      %v1907 = vpop.f32.mrf.mxu0
      %v1908 = vadd.f32 %v1579, %v1907
      %v1909 = vpop.f32.mrf.mxu0
      %v1910 = vadd.f32 %v1581, %v1909
      %1911 = vmatmul.bf16.gmra.mxu0 %v1157
      %v1912 = vpop.f32.mrf.mxu0
      %v1913 = vadd.f32 %v1584, %v1912
      %v1914 = vpop.f32.mrf.mxu0
      %v1915 = vadd.f32 %v1586, %v1914
      %1916 = vmatmul.bf16.gmra.mxu0 %v1159
      %v1917 = vpop.f32.mrf.mxu0
      %v1918 = vadd.f32 %v1589, %v1917
      %v1919 = vpop.f32.mrf.mxu0
      %v1920 = vadd.f32 %v1591, %v1919
      %1921 = vmatmul.bf16.gmra.mxu0 %v1161
      %v1922 = vpop.f32.mrf.mxu0
      %v1923 = vadd.f32 %v1594, %v1922
      %v1924 = vpop.f32.mrf.mxu0
      %v1925 = vadd.f32 %v1596, %v1924
      %1926 = vmatmul.bf16.gmra.mxu0 %v1163
      %v1927 = vpop.f32.mrf.mxu0
      %v1928 = vadd.f32 %v1599, %v1927
      %v1929 = vpop.f32.mrf.mxu0
      %v1930 = vadd.f32 %v1601, %v1929
      %1931 = vmatmul.bf16.gmra.mxu0 %v1165
      %v1932 = vpop.f32.mrf.mxu0
      %v1933 = vadd.f32 %v1604, %v1932
      %v1934 = vpop.f32.mrf.mxu0
      %v1935 = vadd.f32 %v1606, %v1934
      %1936 = vmatmul.bf16.gmra.mxu0 %v1167
      %v1937 = vpop.f32.mrf.mxu0
      %v1938 = vadd.f32 %v1609, %v1937
      %v1939 = vpop.f32.mrf.mxu0
      %v1940 = vadd.f32 %v1611, %v1939
      %1941 = vmatmul.bf16.gmra.mxu0 %v1169
      %v1942 = vpop.f32.mrf.mxu0
      %v1943 = vadd.f32 %v1614, %v1942
      %v1944 = vpop.f32.mrf.mxu0
      %v1945 = vadd.f32 %v1616, %v1944
      %1946 = vmatmul.bf16.gmra.mxu0 %v1171
      %v1947 = vpop.f32.mrf.mxu0
      %v1948 = vadd.f32 %v1619, %v1947
      %v1949 = vpop.f32.mrf.mxu0
      %v1950 = vadd.f32 %v1621, %v1949
      %1951 = vmatmul.bf16.gmra.mxu0 %v1173
      %v1952 = vpop.f32.mrf.mxu0
      %v1953 = vadd.f32 %v1624, %v1952
      %v1954 = vpop.f32.mrf.mxu0
      %v1955 = vadd.f32 %v1626, %v1954
      %1956 = vmatmul.bf16.gmra.mxu0 %v1175
      %v1957 = vpop.f32.mrf.mxu0
      %v1958 = vadd.f32 %v1629, %v1957
      %v1959 = vpop.f32.mrf.mxu0
      %v1960 = vadd.f32 %v1631, %v1959
      %1961 = vmatmul.bf16.gmra.mxu0 %v1177
      %v1962 = vpop.f32.mrf.mxu0
      %v1963 = vadd.f32 %v1634, %v1962
      %v1964 = vpop.f32.mrf.mxu0
      %v1965 = vadd.f32 %v1636, %v1964
      %1966 = vmatmul.bf16.gmra.mxu0 %v1179
      %v1967 = vpop.f32.mrf.mxu0
      %v1968 = vadd.f32 %v1639, %v1967
      %v1969 = vpop.f32.mrf.mxu0
      %v1970 = vadd.f32 %v1641, %v1969
      %1971 = vmatmul.bf16.gmra.mxu0 %v1181
      %v1972 = vpop.f32.mrf.mxu0
      %v1973 = vadd.f32 %v1644, %v1972
      %v1974 = vpop.f32.mrf.mxu0
      %v1975 = vadd.f32 %v1646, %v1974
      %1976 = vmatmul.bf16.gmra.mxu0 %v1183
      %v1977 = vpop.f32.mrf.mxu0
      %v1978 = vadd.f32 %v1649, %v1977
      %v1979 = vpop.f32.mrf.mxu0
      %v1980 = vadd.f32 %v1651, %v1979
      %1981 = vmatmul.bf16.gmra.mxu0 %v1185
      %v1982 = vpop.f32.mrf.mxu0
      %v1983 = vadd.f32 %v1654, %v1982
      %v1984 = vpop.f32.mrf.mxu0
      %v1985 = vadd.f32 %v1656, %v1984
      %1986 = vmatmul.bf16.gmra.mxu0 %v1187
      %v1987 = vpop.f32.mrf.mxu0
      %v1988 = vadd.f32 %v1659, %v1987
      %v1989 = vpop.f32.mrf.mxu0
      %v1990 = vadd.f32 %v1661, %v1989
      %1991 = vmatmul.bf16.gmra.mxu0 %v1189
      %v1992 = vpop.f32.mrf.mxu0
      %v1993 = vadd.f32 %v1664, %v1992
      %v1994 = vpop.f32.mrf.mxu0
      %v1995 = vadd.f32 %v1666, %v1994
      %1996 = vmatmul.bf16.gmra.mxu0 %v1191
      %v1997 = vpop.f32.mrf.mxu0
      %v1998 = vadd.f32 %v1669, %v1997
      %v1999 = vpop.f32.mrf.mxu0
      %v2000 = vadd.f32 %v1671, %v1999
      %2001 = vmatmul.bf16.gmra.mxu0 %v1193
      %v2002 = vpop.f32.mrf.mxu0
      %v2003 = vadd.f32 %v1674, %v2002
      %v2004 = vpop.f32.mrf.mxu0
      %v2005 = vadd.f32 %v1676, %v2004
      %2006 = vmatmul.bf16.gmra.mxu0 %v1195
      %v2007 = vpop.f32.mrf.mxu0
      %v2008 = vadd.f32 %v1679, %v2007
      %v2009 = vpop.f32.mrf.mxu0
      %v2010 = vadd.f32 %v1681, %v2009
      %2011 = vmatmul.bf16.gmra.mxu0 %v1197
      %v2012 = vpop.f32.mrf.mxu0
      %v2013 = vadd.f32 %v1684, %v2012
      %v2014 = vpop.f32.mrf.mxu0
      %v2015 = vadd.f32 %v1686, %v2014
      %2016 = vmatmul.bf16.gmra.mxu0 %v1199
      %v2017 = vpop.f32.mrf.mxu0
      %v2018 = vadd.f32 %v1689, %v2017
      %v2019 = vpop.f32.mrf.mxu0
      %v2020 = vadd.f32 %v1691, %v2019
      %2021 = vmatmul.bf16.gmra.mxu0 %v1201
      %v2022 = vpop.f32.mrf.mxu0
      %v2023 = vadd.f32 %v1694, %v2022
      %v2024 = vpop.f32.mrf.mxu0
      %v2025 = vadd.f32 %v1696, %v2024
      %2026 = vmatmul.bf16.gmra.mxu0 %v1203
      %v2027 = vpop.f32.mrf.mxu0
      %v2028 = vadd.f32 %v1699, %v2027
      %v2029 = vpop.f32.mrf.mxu0
      %v2030 = vadd.f32 %v1701, %v2029
      %2031 = vmatmul.bf16.gmra.mxu0 %v1205
      %v2032 = vpop.f32.mrf.mxu0
      %v2033 = vadd.f32 %v1704, %v2032
      %v2034 = vpop.f32.mrf.mxu0
      %v2035 = vadd.f32 %v1706, %v2034
      %2036 = vmatmul.bf16.gmra.mxu0 %v1207
      %v2037 = vpop.f32.mrf.mxu0
      %v2038 = vadd.f32 %v1709, %v2037
      %v2039 = vpop.f32.mrf.mxu0
      %v2040 = vadd.f32 %v1711, %v2039
      %2041 = vmatmul.bf16.gmra.mxu0 %v1209
      %v2042 = vpop.f32.mrf.mxu0
      %v2043 = vadd.f32 %v1714, %v2042
      %v2044 = vpop.f32.mrf.mxu0
      %v2045 = vadd.f32 %v1716, %v2044
      %2046 = vmatmul.bf16.gmra.mxu0 %v1211
      %v2047 = vpop.f32.mrf.mxu0
      %v2048 = vadd.f32 %v1719, %v2047
      %v2049 = vpop.f32.mrf.mxu0
      %v2050 = vadd.f32 %v1721, %v2049
      %2051 = vmatmul.bf16.gmra.mxu0 %v1213
      %v2052 = vpop.f32.mrf.mxu0
      %v2053 = vadd.f32 %v1724, %v2052
      %v2054 = vpop.f32.mrf.mxu0
      %v2055 = vadd.f32 %v1726, %v2054
      %2056 = vmatmul.bf16.gmra.mxu0 %v1215
      %v2057 = vpop.f32.mrf.mxu0
      %v2058 = vadd.f32 %v1729, %v2057
      %v2059 = vpop.f32.mrf.mxu0
      %v2060 = vadd.f32 %v1731, %v2059
      %2061 = vmatmul.bf16.gmra.mxu0 %v1217
      %v2062 = vpop.f32.mrf.mxu0
      %v2063 = vadd.f32 %v1734, %v2062
      %v2064 = vpop.f32.mrf.mxu0
      %v2065 = vadd.f32 %v1736, %v2064
      %2066 = vmatmul.bf16.gmra.mxu0 %v1219
      %v2067 = vpop.f32.mrf.mxu0
      %v2068 = vadd.f32 %v1739, %v2067
      %v2069 = vpop.f32.mrf.mxu0
      %v2070 = vadd.f32 %v1741, %v2069
      %2071 = vmatmul.bf16.gmra.mxu0 %v1221
      %v2072 = vpop.f32.mrf.mxu0
      %v2073 = vadd.f32 %v1744, %v2072
      %v2074 = vpop.f32.mrf.mxu0
      %v2075 = vadd.f32 %v1746, %v2074
      %2076 = vmatmul.bf16.gmra.mxu0 %v1223
      %v2077 = vpop.f32.mrf.mxu0
      %v2078 = vadd.f32 %v1749, %v2077
      %v2079 = vpop.f32.mrf.mxu0
      %v2080 = vadd.f32 %v1751, %v2079
      %2081 = vmatmul.bf16.gmra.mxu0 %v1225
      %v2082 = vpop.f32.mrf.mxu0
      %v2083 = vadd.f32 %v1754, %v2082
      %v2084 = vpop.f32.mrf.mxu0
      %v2085 = vadd.f32 %v1756, %v2084
      %2086 = vmatmul.bf16.gmra.mxu0 %v1227
      %v2087 = vpop.f32.mrf.mxu0
      %v2088 = vadd.f32 %v1759, %v2087
      %v2089 = vpop.f32.mrf.mxu0
      %v2090 = vadd.f32 %v1761, %v2089
      %2091 = vmatmul.bf16.gmra.mxu0 %v1229
      %v2092 = vpop.f32.mrf.mxu0
      %v2093 = vadd.f32 %v1764, %v2092
      %v2094 = vpop.f32.mrf.mxu0
      %v2095 = vadd.f32 %v1766, %v2094
      %2096 = vmatmul.bf16.gmra.mxu0 %v1231
      %v2097 = vpop.f32.mrf.mxu0
      %v2098 = vadd.f32 %v1769, %v2097
      %v2099 = vpop.f32.mrf.mxu0
      %v2100 = vadd.f32 %v1771, %v2099
      %2101 = vmatmul.bf16.gmra.mxu0 %v1233
      %v2102 = vpop.f32.mrf.mxu0
      %v2103 = vadd.f32 %v1774, %v2102
      %v2104 = vpop.f32.mrf.mxu0
      %v2105 = vadd.f32 %v1776, %v2104
      %2106 = vmatmul.bf16.gmra.mxu0 %v1235
      %v2107 = vpop.f32.mrf.mxu0
      %v2108 = vadd.f32 %v1779, %v2107
      %v2109 = vpop.f32.mrf.mxu0
      %v2110 = vadd.f32 %v1781, %v2109
      %2111 = vmatmul.bf16.gmra.mxu0 %v1237
      %v2112 = vpop.f32.mrf.mxu0
      %v2113 = vadd.f32 %v1784, %v2112
      %v2114 = vpop.f32.mrf.mxu0
      %v2115 = vadd.f32 %v1786, %v2114
      %2116 = vmatmul.bf16.gmra.mxu0 %v1239
      %v2117 = vpop.f32.mrf.mxu0
      %v2118 = vadd.f32 %v1789, %v2117
      %v2119 = vpop.f32.mrf.mxu0
      %v2120 = vadd.f32 %v1791, %v2119
      %2121 = vdwg.mxu0
      %v2122 = vadd.f32 %v440, %v1803
      %v2123 = vadd.f32 %v441, %v1805
      %v2124 = vadd.f32 %v442, %v1808
      %v2125 = vadd.f32 %v443, %v1810
      %v2126 = vadd.f32 %v444, %v1813
      %v2127 = vadd.f32 %v445, %v1815
      %v2128 = vadd.f32 %v446, %v1818
      %v2129 = vadd.f32 %v447, %v1820
      %v2130 = vadd.f32 %v448, %v1823
      %v2131 = vadd.f32 %v449, %v1825
      %v2132 = vadd.f32 %v450, %v1828
      %v2133 = vadd.f32 %v451, %v1830
      %v2134 = vadd.f32 %v452, %v1833
      %v2135 = vadd.f32 %v453, %v1835
      %v2136 = vadd.f32 %v454, %v1838
      %v2137 = vadd.f32 %v455, %v1840
      %v2138 = vadd.f32 %v456, %v1843
      %v2139 = vadd.f32 %v457, %v1845
      %v2140 = vadd.f32 %v458, %v1848
      %v2141 = vadd.f32 %v459, %v1850
      %v2142 = vadd.f32 %v460, %v1853
      %v2143 = vadd.f32 %v461, %v1855
      %v2144 = vadd.f32 %v462, %v1858
      %v2145 = vadd.f32 %v463, %v1860
      %v2146 = vadd.f32 %v464, %v1863
      %v2147 = vadd.f32 %v465, %v1865
      %v2148 = vadd.f32 %v466, %v1868
      %v2149 = vadd.f32 %v467, %v1870
      %v2150 = vadd.f32 %v468, %v1873
      %v2151 = vadd.f32 %v469, %v1875
      %v2152 = vadd.f32 %v470, %v1878
      %v2153 = vadd.f32 %v471, %v1880
      %v2154 = vadd.f32 %v472, %v1883
      %v2155 = vadd.f32 %v473, %v1885
      %v2156 = vadd.f32 %v474, %v1888
      %v2157 = vadd.f32 %v475, %v1890
      %v2158 = vadd.f32 %v476, %v1893
      %v2159 = vadd.f32 %v477, %v1895
      %v2160 = vadd.f32 %v478, %v1898
      %v2161 = vadd.f32 %v479, %v1900
      %v2162 = vadd.f32 %v480, %v1903
      %v2163 = vadd.f32 %v481, %v1905
      %v2164 = vadd.f32 %v482, %v1908
      %v2165 = vadd.f32 %v483, %v1910
      %v2166 = vadd.f32 %v484, %v1913
      %v2167 = vadd.f32 %v485, %v1915
      %v2168 = vadd.f32 %v486, %v1918
      %v2169 = vadd.f32 %v487, %v1920
      %v2170 = vadd.f32 %v488, %v1923
      %v2171 = vadd.f32 %v489, %v1925
      %v2172 = vadd.f32 %v490, %v1928
      %v2173 = vadd.f32 %v491, %v1930
      %v2174 = vadd.f32 %v492, %v1933
      %v2175 = vadd.f32 %v493, %v1935
      %v2176 = vadd.f32 %v494, %v1938
      %v2177 = vadd.f32 %v495, %v1940
      %v2178 = vadd.f32 %v496, %v1943
      %v2179 = vadd.f32 %v497, %v1945
      %v2180 = vadd.f32 %v498, %v1948
      %v2181 = vadd.f32 %v499, %v1950
      %v2182 = vadd.f32 %v500, %v1953
      %v2183 = vadd.f32 %v501, %v1955
      %v2184 = vadd.f32 %v502, %v1958
      %v2185 = vadd.f32 %v503, %v1960
      %v2186 = vadd.f32 %v504, %v1963
      %v2187 = vadd.f32 %v505, %v1965
      %v2188 = vadd.f32 %v506, %v1968
      %v2189 = vadd.f32 %v507, %v1970
      %v2190 = vadd.f32 %v508, %v1973
      %v2191 = vadd.f32 %v509, %v1975
      %v2192 = vadd.f32 %v510, %v1978
      %v2193 = vadd.f32 %v511, %v1980
      %v2194 = vadd.f32 %v512, %v1983
      %v2195 = vadd.f32 %v513, %v1985
      %v2196 = vadd.f32 %v514, %v1988
      %v2197 = vadd.f32 %v515, %v1990
      %v2198 = vadd.f32 %v516, %v1993
      %v2199 = vadd.f32 %v517, %v1995
      %v2200 = vadd.f32 %v518, %v1998
      %v2201 = vadd.f32 %v519, %v2000
      %v2202 = vadd.f32 %v520, %v2003
      %v2203 = vadd.f32 %v521, %v2005
      %v2204 = vadd.f32 %v522, %v2008
      %v2205 = vadd.f32 %v523, %v2010
      %v2206 = vadd.f32 %v524, %v2013
      %v2207 = vadd.f32 %v525, %v2015
      %v2208 = vadd.f32 %v526, %v2018
      %v2209 = vadd.f32 %v527, %v2020
      %v2210 = vadd.f32 %v528, %v2023
      %v2211 = vadd.f32 %v529, %v2025
      %v2212 = vadd.f32 %v530, %v2028
      %v2213 = vadd.f32 %v531, %v2030
      %v2214 = vadd.f32 %v532, %v2033
      %v2215 = vadd.f32 %v533, %v2035
      %v2216 = vadd.f32 %v534, %v2038
      %v2217 = vadd.f32 %v535, %v2040
      %v2218 = vadd.f32 %v536, %v2043
      %v2219 = vadd.f32 %v537, %v2045
      %v2220 = vadd.f32 %v538, %v2048
      %v2221 = vadd.f32 %v539, %v2050
      %v2222 = vadd.f32 %v540, %v2053
      %v2223 = vadd.f32 %v541, %v2055
      %v2224 = vadd.f32 %v542, %v2058
      %v2225 = vadd.f32 %v543, %v2060
      %v2226 = vadd.f32 %v544, %v2063
      %v2227 = vadd.f32 %v545, %v2065
      %v2228 = vadd.f32 %v546, %v2068
      %v2229 = vadd.f32 %v547, %v2070
      %v2230 = vadd.f32 %v548, %v2073
      %v2231 = vadd.f32 %v549, %v2075
      %v2232 = vadd.f32 %v550, %v2078
      %v2233 = vadd.f32 %v551, %v2080
      %v2234 = vadd.f32 %v552, %v2083
      %v2235 = vadd.f32 %v553, %v2085
      %v2236 = vadd.f32 %v554, %v2088
      %v2237 = vadd.f32 %v555, %v2090
      %v2238 = vadd.f32 %v556, %v2093
      %v2239 = vadd.f32 %v557, %v2095
      %v2240 = vadd.f32 %v558, %v2098
      %v2241 = vadd.f32 %v559, %v2100
      %v2242 = vadd.f32 %v560, %v2103
      %v2243 = vadd.f32 %v561, %v2105
      %v2244 = vadd.f32 %v562, %v2108
      %v2245 = vadd.f32 %v563, %v2110
      %v2246 = vadd.f32 %v564, %v2113
      %v2247 = vadd.f32 %v565, %v2115
      %v2248 = vadd.f32 %v566, %v2118
      %v2249 = vadd.f32 %v567, %v2120
      %2250 = vst [vmem:[#allocation2] sm:$0xff] %v2122
      %2251 = vst [vmem:[#allocation2 + $0x8] sm:$0xff] %v2123
      %2252 = vst [vmem:[#allocation2 + $0x10] sm:$0xff] %v2124
      %2253 = vst [vmem:[#allocation2 + $0x18] sm:$0xff] %v2125
      %2254 = vst [vmem:[#allocation2 + $0x20] sm:$0xff] %v2126
      %2255 = vst [vmem:[#allocation2 + $0x28] sm:$0xff] %v2127
      %2256 = vst [vmem:[#allocation2 + $0x30] sm:$0xff] %v2128
      %2257 = vst [vmem:[#allocation2 + $0x38] sm:$0xff] %v2129
      %2258 = vst [vmem:[#allocation2 + $0x40] sm:$0xff] %v2130
      %2259 = vst [vmem:[#allocation2 + $0x48] sm:$0xff] %v2131
      %2260 = vst [vmem:[#allocation2 + $0x50] sm:$0xff] %v2132
      %2261 = vst [vmem:[#allocation2 + $0x58] sm:$0xff] %v2133
      %2262 = vst [vmem:[#allocation2 + $0x60] sm:$0xff] %v2134
      %2263 = vst [vmem:[#allocation2 + $0x68] sm:$0xff] %v2135
      %2264 = vst [vmem:[#allocation2 + $0x70] sm:$0xff] %v2136
      %2265 = vst [vmem:[#allocation2 + $0x78] sm:$0xff] %v2137
      %2266 = vst [vmem:[#allocation2 + $0x80] sm:$0xff] %v2138
      %2267 = vst [vmem:[#allocation2 + $0x88] sm:$0xff] %v2139
      %2268 = vst [vmem:[#allocation2 + $0x90] sm:$0xff] %v2140
      %2269 = vst [vmem:[#allocation2 + $0x98] sm:$0xff] %v2141
      %2270 = vst [vmem:[#allocation2 + $0xa0] sm:$0xff] %v2142
      %2271 = vst [vmem:[#allocation2 + $0xa8] sm:$0xff] %v2143
      %2272 = vst [vmem:[#allocation2 + $0xb0] sm:$0xff] %v2144
      %2273 = vst [vmem:[#allocation2 + $0xb8] sm:$0xff] %v2145
      %2274 = vst [vmem:[#allocation2 + $0xc0] sm:$0xff] %v2146
      %2275 = vst [vmem:[#allocation2 + $0xc8] sm:$0xff] %v2147
      %2276 = vst [vmem:[#allocation2 + $0xd0] sm:$0xff] %v2148
      %2277 = vst [vmem:[#allocation2 + $0xd8] sm:$0xff] %v2149
      %2278 = vst [vmem:[#allocation2 + $0xe0] sm:$0xff] %v2150
      %2279 = vst [vmem:[#allocation2 + $0xe8] sm:$0xff] %v2151
      %2280 = vst [vmem:[#allocation2 + $0xf0] sm:$0xff] %v2152
      %2281 = vst [vmem:[#allocation2 + $0xf8] sm:$0xff] %v2153
      %2282 = vst [vmem:[#allocation2 + $0x100] sm:$0xff] %v2154
      %2283 = vst [vmem:[#allocation2 + $0x108] sm:$0xff] %v2155
      %2284 = vst [vmem:[#allocation2 + $0x110] sm:$0xff] %v2156
      %2285 = vst [vmem:[#allocation2 + $0x118] sm:$0xff] %v2157
      %2286 = vst [vmem:[#allocation2 + $0x120] sm:$0xff] %v2158
      %2287 = vst [vmem:[#allocation2 + $0x128] sm:$0xff] %v2159
      %2288 = vst [vmem:[#allocation2 + $0x130] sm:$0xff] %v2160
      %2289 = vst [vmem:[#allocation2 + $0x138] sm:$0xff] %v2161
      %2290 = vst [vmem:[#allocation2 + $0x140] sm:$0xff] %v2162
      %2291 = vst [vmem:[#allocation2 + $0x148] sm:$0xff] %v2163
      %2292 = vst [vmem:[#allocation2 + $0x150] sm:$0xff] %v2164
      %2293 = vst [vmem:[#allocation2 + $0x158] sm:$0xff] %v2165
      %2294 = vst [vmem:[#allocation2 + $0x160] sm:$0xff] %v2166
      %2295 = vst [vmem:[#allocation2 + $0x168] sm:$0xff] %v2167
      %2296 = vst [vmem:[#allocation2 + $0x170] sm:$0xff] %v2168
      %2297 = vst [vmem:[#allocation2 + $0x178] sm:$0xff] %v2169
      %2298 = vst [vmem:[#allocation2 + $0x180] sm:$0xff] %v2170
      %2299 = vst [vmem:[#allocation2 + $0x188] sm:$0xff] %v2171
      %2300 = vst [vmem:[#allocation2 + $0x190] sm:$0xff] %v2172
      %2301 = vst [vmem:[#allocation2 + $0x198] sm:$0xff] %v2173
      %2302 = vst [vmem:[#allocation2 + $0x1a0] sm:$0xff] %v2174
      %2303 = vst [vmem:[#allocation2 + $0x1a8] sm:$0xff] %v2175
      %2304 = vst [vmem:[#allocation2 + $0x1b0] sm:$0xff] %v2176
      %2305 = vst [vmem:[#allocation2 + $0x1b8] sm:$0xff] %v2177
      %2306 = vst [vmem:[#allocation2 + $0x1c0] sm:$0xff] %v2178
      %2307 = vst [vmem:[#allocation2 + $0x1c8] sm:$0xff] %v2179
      %2308 = vst [vmem:[#allocation2 + $0x1d0] sm:$0xff] %v2180
      %2309 = vst [vmem:[#allocation2 + $0x1d8] sm:$0xff] %v2181
      %2310 = vst [vmem:[#allocation2 + $0x1e0] sm:$0xff] %v2182
      %2311 = vst [vmem:[#allocation2 + $0x1e8] sm:$0xff] %v2183
      %2312 = vst [vmem:[#allocation2 + $0x1f0] sm:$0xff] %v2184
      %2313 = vst [vmem:[#allocation2 + $0x1f8] sm:$0xff] %v2185
      %2314 = vst [vmem:[#allocation2 + $0x200] sm:$0xff] %v2186
      %2315 = vst [vmem:[#allocation2 + $0x208] sm:$0xff] %v2187
      %2316 = vst [vmem:[#allocation2 + $0x210] sm:$0xff] %v2188
      %2317 = vst [vmem:[#allocation2 + $0x218] sm:$0xff] %v2189
      %2318 = vst [vmem:[#allocation2 + $0x220] sm:$0xff] %v2190
      %2319 = vst [vmem:[#allocation2 + $0x228] sm:$0xff] %v2191
      %2320 = vst [vmem:[#allocation2 + $0x230] sm:$0xff] %v2192
      %2321 = vst [vmem:[#allocation2 + $0x238] sm:$0xff] %v2193
      %2322 = vst [vmem:[#allocation2 + $0x240] sm:$0xff] %v2194
      %2323 = vst [vmem:[#allocation2 + $0x248] sm:$0xff] %v2195
      %2324 = vst [vmem:[#allocation2 + $0x250] sm:$0xff] %v2196
      %2325 = vst [vmem:[#allocation2 + $0x258] sm:$0xff] %v2197
      %2326 = vst [vmem:[#allocation2 + $0x260] sm:$0xff] %v2198
      %2327 = vst [vmem:[#allocation2 + $0x268] sm:$0xff] %v2199
      %2328 = vst [vmem:[#allocation2 + $0x270] sm:$0xff] %v2200
      %2329 = vst [vmem:[#allocation2 + $0x278] sm:$0xff] %v2201
      %2330 = vst [vmem:[#allocation2 + $0x280] sm:$0xff] %v2202
      %2331 = vst [vmem:[#allocation2 + $0x288] sm:$0xff] %v2203
      %2332 = vst [vmem:[#allocation2 + $0x290] sm:$0xff] %v2204
      %2333 = vst [vmem:[#allocation2 + $0x298] sm:$0xff] %v2205
      %2334 = vst [vmem:[#allocation2 + $0x2a0] sm:$0xff] %v2206
      %2335 = vst [vmem:[#allocation2 + $0x2a8] sm:$0xff] %v2207
      %2336 = vst [vmem:[#allocation2 + $0x2b0] sm:$0xff] %v2208
      %2337 = vst [vmem:[#allocation2 + $0x2b8] sm:$0xff] %v2209
      %2338 = vst [vmem:[#allocation2 + $0x2c0] sm:$0xff] %v2210
      %2339 = vst [vmem:[#allocation2 + $0x2c8] sm:$0xff] %v2211
      %2340 = vst [vmem:[#allocation2 + $0x2d0] sm:$0xff] %v2212
      %2341 = vst [vmem:[#allocation2 + $0x2d8] sm:$0xff] %v2213
      %2342 = vst [vmem:[#allocation2 + $0x2e0] sm:$0xff] %v2214
      %2343 = vst [vmem:[#allocation2 + $0x2e8] sm:$0xff] %v2215
      %2344 = vst [vmem:[#allocation2 + $0x2f0] sm:$0xff] %v2216
      %2345 = vst [vmem:[#allocation2 + $0x2f8] sm:$0xff] %v2217
      %2346 = vst [vmem:[#allocation2 + $0x300] sm:$0xff] %v2218
      %2347 = vst [vmem:[#allocation2 + $0x308] sm:$0xff] %v2219
      %2348 = vst [vmem:[#allocation2 + $0x310] sm:$0xff] %v2220
      %2349 = vst [vmem:[#allocation2 + $0x318] sm:$0xff] %v2221
      %2350 = vst [vmem:[#allocation2 + $0x320] sm:$0xff] %v2222
      %2351 = vst [vmem:[#allocation2 + $0x328] sm:$0xff] %v2223
      %2352 = vst [vmem:[#allocation2 + $0x330] sm:$0xff] %v2224
      %2353 = vst [vmem:[#allocation2 + $0x338] sm:$0xff] %v2225
      %2354 = vst [vmem:[#allocation2 + $0x340] sm:$0xff] %v2226
      %2355 = vst [vmem:[#allocation2 + $0x348] sm:$0xff] %v2227
      %2356 = vst [vmem:[#allocation2 + $0x350] sm:$0xff] %v2228
      %2357 = vst [vmem:[#allocation2 + $0x358] sm:$0xff] %v2229
      %2358 = vst [vmem:[#allocation2 + $0x360] sm:$0xff] %v2230
      %2359 = vst [vmem:[#allocation2 + $0x368] sm:$0xff] %v2231
      %2360 = vst [vmem:[#allocation2 + $0x370] sm:$0xff] %v2232
      %2361 = vst [vmem:[#allocation2 + $0x378] sm:$0xff] %v2233
      %2362 = vst [vmem:[#allocation2 + $0x380] sm:$0xff] %v2234
      %2363 = vst [vmem:[#allocation2 + $0x388] sm:$0xff] %v2235
      %2364 = vst [vmem:[#allocation2 + $0x390] sm:$0xff] %v2236
      %2365 = vst [vmem:[#allocation2 + $0x398] sm:$0xff] %v2237
      %2366 = vst [vmem:[#allocation2 + $0x3a0] sm:$0xff] %v2238
      %2367 = vst [vmem:[#allocation2 + $0x3a8] sm:$0xff] %v2239
      %2368 = vst [vmem:[#allocation2 + $0x3b0] sm:$0xff] %v2240
      %2369 = vst [vmem:[#allocation2 + $0x3b8] sm:$0xff] %v2241
      %2370 = vst [vmem:[#allocation2 + $0x3c0] sm:$0xff] %v2242
      %2371 = vst [vmem:[#allocation2 + $0x3c8] sm:$0xff] %v2243
      %2372 = vst [vmem:[#allocation2 + $0x3d0] sm:$0xff] %v2244
      %2373 = vst [vmem:[#allocation2 + $0x3d8] sm:$0xff] %v2245
      %2374 = vst [vmem:[#allocation2 + $0x3e0] sm:$0xff] %v2246
      %2375 = vst [vmem:[#allocation2 + $0x3e8] sm:$0xff] %v2247
      %2376 = vst [vmem:[#allocation2 + $0x3f0] sm:$0xff] %v2248
      %2377 = vst [vmem:[#allocation2 + $0x3f8] sm:$0xff] %v2249
      // Predicated region
      $region41: #{_stem_forward.1} parent=35 // pred_check
        %p2378 = pneg %p308
      $region42: #{_stem_forward.1} parent=35 // pred_check_branch
        %2380 = sbr.rel (%p2378) target = $region44
      $region43: #{_stem_forward.1} parent=35 // pred_region
        %v2381 = vld [vmem:[#allocation2] sm:$0xff]
        %v2382 = vld [vmem:[#allocation2 + $0x8] sm:$0xff]
        %v2383 = vld [vmem:[#allocation2 + $0x10] sm:$0xff]
        %v2384 = vld [vmem:[#allocation2 + $0x18] sm:$0xff]
        %v2385 = vld [vmem:[#allocation2 + $0x20] sm:$0xff]
        %v2386 = vld [vmem:[#allocation2 + $0x28] sm:$0xff]
        %v2387 = vld [vmem:[#allocation2 + $0x30] sm:$0xff]
        %v2388 = vld [vmem:[#allocation2 + $0x38] sm:$0xff]
        %v2389 = vld [vmem:[#allocation2 + $0x40] sm:$0xff]
        %v2390 = vld [vmem:[#allocation2 + $0x48] sm:$0xff]
        %v2391 = vld [vmem:[#allocation2 + $0x50] sm:$0xff]
        %v2392 = vld [vmem:[#allocation2 + $0x58] sm:$0xff]
        %v2393 = vld [vmem:[#allocation2 + $0x60] sm:$0xff]
        %v2394 = vld [vmem:[#allocation2 + $0x68] sm:$0xff]
        %v2395 = vld [vmem:[#allocation2 + $0x70] sm:$0xff]
        %v2396 = vld [vmem:[#allocation2 + $0x78] sm:$0xff]
        %v2397 = vld [vmem:[#allocation2 + $0x80] sm:$0xff]
        %v2398 = vld [vmem:[#allocation2 + $0x88] sm:$0xff]
        %v2399 = vld [vmem:[#allocation2 + $0x90] sm:$0xff]
        %v2400 = vld [vmem:[#allocation2 + $0x98] sm:$0xff]
        %v2401 = vld [vmem:[#allocation2 + $0xa0] sm:$0xff]
        %v2402 = vld [vmem:[#allocation2 + $0xa8] sm:$0xff]
        %v2403 = vld [vmem:[#allocation2 + $0xb0] sm:$0xff]
        %v2404 = vld [vmem:[#allocation2 + $0xb8] sm:$0xff]
        %v2405 = vld [vmem:[#allocation2 + $0xc0] sm:$0xff]
        %v2406 = vld [vmem:[#allocation2 + $0xc8] sm:$0xff]
        %v2407 = vld [vmem:[#allocation2 + $0xd0] sm:$0xff]
        %v2408 = vld [vmem:[#allocation2 + $0xd8] sm:$0xff]
        %v2409 = vld [vmem:[#allocation2 + $0xe0] sm:$0xff]
        %v2410 = vld [vmem:[#allocation2 + $0xe8] sm:$0xff]
        %v2411 = vld [vmem:[#allocation2 + $0xf0] sm:$0xff]
        %v2412 = vld [vmem:[#allocation2 + $0xf8] sm:$0xff]
        %v2413 = vld [vmem:[#allocation2 + $0x100] sm:$0xff]
        %v2414 = vld [vmem:[#allocation2 + $0x108] sm:$0xff]
        %v2415 = vld [vmem:[#allocation2 + $0x110] sm:$0xff]
        %v2416 = vld [vmem:[#allocation2 + $0x118] sm:$0xff]
        %v2417 = vld [vmem:[#allocation2 + $0x120] sm:$0xff]
        %v2418 = vld [vmem:[#allocation2 + $0x128] sm:$0xff]
        %v2419 = vld [vmem:[#allocation2 + $0x130] sm:$0xff]
        %v2420 = vld [vmem:[#allocation2 + $0x138] sm:$0xff]
        %v2421 = vld [vmem:[#allocation2 + $0x140] sm:$0xff]
        %v2422 = vld [vmem:[#allocation2 + $0x148] sm:$0xff]
        %v2423 = vld [vmem:[#allocation2 + $0x150] sm:$0xff]
        %v2424 = vld [vmem:[#allocation2 + $0x158] sm:$0xff]
        %v2425 = vld [vmem:[#allocation2 + $0x160] sm:$0xff]
        %v2426 = vld [vmem:[#allocation2 + $0x168] sm:$0xff]
        %v2427 = vld [vmem:[#allocation2 + $0x170] sm:$0xff]
        %v2428 = vld [vmem:[#allocation2 + $0x178] sm:$0xff]
        %v2429 = vld [vmem:[#allocation2 + $0x180] sm:$0xff]
        %v2430 = vld [vmem:[#allocation2 + $0x188] sm:$0xff]
        %v2431 = vld [vmem:[#allocation2 + $0x190] sm:$0xff]
        %v2432 = vld [vmem:[#allocation2 + $0x198] sm:$0xff]
        %v2433 = vld [vmem:[#allocation2 + $0x1a0] sm:$0xff]
        %v2434 = vld [vmem:[#allocation2 + $0x1a8] sm:$0xff]
        %v2435 = vld [vmem:[#allocation2 + $0x1b0] sm:$0xff]
        %v2436 = vld [vmem:[#allocation2 + $0x1b8] sm:$0xff]
        %v2437 = vld [vmem:[#allocation2 + $0x1c0] sm:$0xff]
        %v2438 = vld [vmem:[#allocation2 + $0x1c8] sm:$0xff]
        %v2439 = vld [vmem:[#allocation2 + $0x1d0] sm:$0xff]
        %v2440 = vld [vmem:[#allocation2 + $0x1d8] sm:$0xff]
        %v2441 = vld [vmem:[#allocation2 + $0x1e0] sm:$0xff]
        %v2442 = vld [vmem:[#allocation2 + $0x1e8] sm:$0xff]
        %v2443 = vld [vmem:[#allocation2 + $0x1f0] sm:$0xff]
        %v2444 = vld [vmem:[#allocation2 + $0x1f8] sm:$0xff]
        %v2445 = vld [vmem:[#allocation2 + $0x200] sm:$0xff]
        %v2446 = vld [vmem:[#allocation2 + $0x208] sm:$0xff]
        %v2447 = vld [vmem:[#allocation2 + $0x210] sm:$0xff]
        %v2448 = vld [vmem:[#allocation2 + $0x218] sm:$0xff]
        %v2449 = vld [vmem:[#allocation2 + $0x220] sm:$0xff]
        %v2450 = vld [vmem:[#allocation2 + $0x228] sm:$0xff]
        %v2451 = vld [vmem:[#allocation2 + $0x230] sm:$0xff]
        %v2452 = vld [vmem:[#allocation2 + $0x238] sm:$0xff]
        %v2453 = vld [vmem:[#allocation2 + $0x240] sm:$0xff]
        %v2454 = vld [vmem:[#allocation2 + $0x248] sm:$0xff]
        %v2455 = vld [vmem:[#allocation2 + $0x250] sm:$0xff]
        %v2456 = vld [vmem:[#allocation2 + $0x258] sm:$0xff]
        %v2457 = vld [vmem:[#allocation2 + $0x260] sm:$0xff]
        %v2458 = vld [vmem:[#allocation2 + $0x268] sm:$0xff]
        %v2459 = vld [vmem:[#allocation2 + $0x270] sm:$0xff]
        %v2460 = vld [vmem:[#allocation2 + $0x278] sm:$0xff]
        %v2461 = vld [vmem:[#allocation2 + $0x280] sm:$0xff]
        %v2462 = vld [vmem:[#allocation2 + $0x288] sm:$0xff]
        %v2463 = vld [vmem:[#allocation2 + $0x290] sm:$0xff]
        %v2464 = vld [vmem:[#allocation2 + $0x298] sm:$0xff]
        %v2465 = vld [vmem:[#allocation2 + $0x2a0] sm:$0xff]
        %v2466 = vld [vmem:[#allocation2 + $0x2a8] sm:$0xff]
        %v2467 = vld [vmem:[#allocation2 + $0x2b0] sm:$0xff]
        %v2468 = vld [vmem:[#allocation2 + $0x2b8] sm:$0xff]
        %v2469 = vld [vmem:[#allocation2 + $0x2c0] sm:$0xff]
        %v2470 = vld [vmem:[#allocation2 + $0x2c8] sm:$0xff]
        %v2471 = vld [vmem:[#allocation2 + $0x2d0] sm:$0xff]
        %v2472 = vld [vmem:[#allocation2 + $0x2d8] sm:$0xff]
        %v2473 = vld [vmem:[#allocation2 + $0x2e0] sm:$0xff]
        %v2474 = vld [vmem:[#allocation2 + $0x2e8] sm:$0xff]
        %v2475 = vld [vmem:[#allocation2 + $0x2f0] sm:$0xff]
        %v2476 = vld [vmem:[#allocation2 + $0x2f8] sm:$0xff]
        %v2477 = vld [vmem:[#allocation2 + $0x300] sm:$0xff]
        %v2478 = vld [vmem:[#allocation2 + $0x308] sm:$0xff]
        %v2479 = vld [vmem:[#allocation2 + $0x310] sm:$0xff]
        %v2480 = vld [vmem:[#allocation2 + $0x318] sm:$0xff]
        %v2481 = vld [vmem:[#allocation2 + $0x320] sm:$0xff]
        %v2482 = vld [vmem:[#allocation2 + $0x328] sm:$0xff]
        %v2483 = vld [vmem:[#allocation2 + $0x330] sm:$0xff]
        %v2484 = vld [vmem:[#allocation2 + $0x338] sm:$0xff]
        %v2485 = vld [vmem:[#allocation2 + $0x340] sm:$0xff]
        %v2486 = vld [vmem:[#allocation2 + $0x348] sm:$0xff]
        %v2487 = vld [vmem:[#allocation2 + $0x350] sm:$0xff]
        %v2488 = vld [vmem:[#allocation2 + $0x358] sm:$0xff]
        %v2489 = vld [vmem:[#allocation2 + $0x360] sm:$0xff]
        %v2490 = vld [vmem:[#allocation2 + $0x368] sm:$0xff]
        %v2491 = vld [vmem:[#allocation2 + $0x370] sm:$0xff]
        %v2492 = vld [vmem:[#allocation2 + $0x378] sm:$0xff]
        %v2493 = vld [vmem:[#allocation2 + $0x380] sm:$0xff]
        %v2494 = vld [vmem:[#allocation2 + $0x388] sm:$0xff]
        %v2495 = vld [vmem:[#allocation2 + $0x390] sm:$0xff]
        %v2496 = vld [vmem:[#allocation2 + $0x398] sm:$0xff]
        %v2497 = vld [vmem:[#allocation2 + $0x3a0] sm:$0xff]
        %v2498 = vld [vmem:[#allocation2 + $0x3a8] sm:$0xff]
        %v2499 = vld [vmem:[#allocation2 + $0x3b0] sm:$0xff]
        %v2500 = vld [vmem:[#allocation2 + $0x3b8] sm:$0xff]
        %v2501 = vld [vmem:[#allocation2 + $0x3c0] sm:$0xff]
        %v2502 = vld [vmem:[#allocation2 + $0x3c8] sm:$0xff]
        %v2503 = vld [vmem:[#allocation2 + $0x3d0] sm:$0xff]
        %v2504 = vld [vmem:[#allocation2 + $0x3d8] sm:$0xff]
        %v2505 = vld [vmem:[#allocation2 + $0x3e0] sm:$0xff]
        %v2506 = vld [vmem:[#allocation2 + $0x3e8] sm:$0xff]
        %v2507 = vld [vmem:[#allocation2 + $0x3f0] sm:$0xff]
        %v2508 = vld [vmem:[#allocation2 + $0x3f8] sm:$0xff]
        %v2509 = vld [vmem:[%s295] sm:$0x1]
        %v2511 = vperm.slane %v2509, 0
        %v2513 = vmul.f32 %v2381, %v2511
        %v2514 = vmul.f32 %v2382, %v2511
        %v2515 = vmul.f32 %v2383, %v2511
        %v2516 = vmul.f32 %v2384, %v2511
        %v2517 = vmul.f32 %v2385, %v2511
        %v2518 = vmul.f32 %v2386, %v2511
        %v2519 = vmul.f32 %v2387, %v2511
        %v2520 = vmul.f32 %v2388, %v2511
        %v2521 = vmul.f32 %v2389, %v2511
        %v2522 = vmul.f32 %v2390, %v2511
        %v2523 = vmul.f32 %v2391, %v2511
        %v2524 = vmul.f32 %v2392, %v2511
        %v2525 = vmul.f32 %v2393, %v2511
        %v2526 = vmul.f32 %v2394, %v2511
        %v2527 = vmul.f32 %v2395, %v2511
        %v2528 = vmul.f32 %v2396, %v2511
        %v2529 = vmul.f32 %v2397, %v2511
        %v2530 = vmul.f32 %v2398, %v2511
        %v2531 = vmul.f32 %v2399, %v2511
        %v2532 = vmul.f32 %v2400, %v2511
        %v2533 = vmul.f32 %v2401, %v2511
        %v2534 = vmul.f32 %v2402, %v2511
        %v2535 = vmul.f32 %v2403, %v2511
        %v2536 = vmul.f32 %v2404, %v2511
        %v2537 = vmul.f32 %v2405, %v2511
        %v2538 = vmul.f32 %v2406, %v2511
        %v2539 = vmul.f32 %v2407, %v2511
        %v2540 = vmul.f32 %v2408, %v2511
        %v2541 = vmul.f32 %v2409, %v2511
        %v2542 = vmul.f32 %v2410, %v2511
        %v2543 = vmul.f32 %v2411, %v2511
        %v2544 = vmul.f32 %v2412, %v2511
        %v2545 = vmul.f32 %v2413, %v2511
        %v2546 = vmul.f32 %v2414, %v2511
        %v2547 = vmul.f32 %v2415, %v2511
        %v2548 = vmul.f32 %v2416, %v2511
        %v2549 = vmul.f32 %v2417, %v2511
        %v2550 = vmul.f32 %v2418, %v2511
        %v2551 = vmul.f32 %v2419, %v2511
        %v2552 = vmul.f32 %v2420, %v2511
        %v2553 = vmul.f32 %v2421, %v2511
        %v2554 = vmul.f32 %v2422, %v2511
        %v2555 = vmul.f32 %v2423, %v2511
        %v2556 = vmul.f32 %v2424, %v2511
        %v2557 = vmul.f32 %v2425, %v2511
        %v2558 = vmul.f32 %v2426, %v2511
        %v2559 = vmul.f32 %v2427, %v2511
        %v2560 = vmul.f32 %v2428, %v2511
        %v2561 = vmul.f32 %v2429, %v2511
        %v2562 = vmul.f32 %v2430, %v2511
        %v2563 = vmul.f32 %v2431, %v2511
        %v2564 = vmul.f32 %v2432, %v2511
        %v2565 = vmul.f32 %v2433, %v2511
        %v2566 = vmul.f32 %v2434, %v2511
        %v2567 = vmul.f32 %v2435, %v2511
        %v2568 = vmul.f32 %v2436, %v2511
        %v2569 = vmul.f32 %v2437, %v2511
        %v2570 = vmul.f32 %v2438, %v2511
        %v2571 = vmul.f32 %v2439, %v2511
        %v2572 = vmul.f32 %v2440, %v2511
        %v2573 = vmul.f32 %v2441, %v2511
        %v2574 = vmul.f32 %v2442, %v2511
        %v2575 = vmul.f32 %v2443, %v2511
        %v2576 = vmul.f32 %v2444, %v2511
        %v2577 = vmul.f32 %v2445, %v2511
        %v2578 = vmul.f32 %v2446, %v2511
        %v2579 = vmul.f32 %v2447, %v2511
        %v2580 = vmul.f32 %v2448, %v2511
        %v2581 = vmul.f32 %v2449, %v2511
        %v2582 = vmul.f32 %v2450, %v2511
        %v2583 = vmul.f32 %v2451, %v2511
        %v2584 = vmul.f32 %v2452, %v2511
        %v2585 = vmul.f32 %v2453, %v2511
        %v2586 = vmul.f32 %v2454, %v2511
        %v2587 = vmul.f32 %v2455, %v2511
        %v2588 = vmul.f32 %v2456, %v2511
        %v2589 = vmul.f32 %v2457, %v2511
        %v2590 = vmul.f32 %v2458, %v2511
        %v2591 = vmul.f32 %v2459, %v2511
        %v2592 = vmul.f32 %v2460, %v2511
        %v2593 = vmul.f32 %v2461, %v2511
        %v2594 = vmul.f32 %v2462, %v2511
        %v2595 = vmul.f32 %v2463, %v2511
        %v2596 = vmul.f32 %v2464, %v2511
        %v2597 = vmul.f32 %v2465, %v2511
        %v2598 = vmul.f32 %v2466, %v2511
        %v2599 = vmul.f32 %v2467, %v2511
        %v2600 = vmul.f32 %v2468, %v2511
        %v2601 = vmul.f32 %v2469, %v2511
        %v2602 = vmul.f32 %v2470, %v2511
        %v2603 = vmul.f32 %v2471, %v2511
        %v2604 = vmul.f32 %v2472, %v2511
        %v2605 = vmul.f32 %v2473, %v2511
        %v2606 = vmul.f32 %v2474, %v2511
        %v2607 = vmul.f32 %v2475, %v2511
        %v2608 = vmul.f32 %v2476, %v2511
        %v2609 = vmul.f32 %v2477, %v2511
        %v2610 = vmul.f32 %v2478, %v2511
        %v2611 = vmul.f32 %v2479, %v2511
        %v2612 = vmul.f32 %v2480, %v2511
        %v2613 = vmul.f32 %v2481, %v2511
        %v2614 = vmul.f32 %v2482, %v2511
        %v2615 = vmul.f32 %v2483, %v2511
        %v2616 = vmul.f32 %v2484, %v2511
        %v2617 = vmul.f32 %v2485, %v2511
        %v2618 = vmul.f32 %v2486, %v2511
        %v2619 = vmul.f32 %v2487, %v2511
        %v2620 = vmul.f32 %v2488, %v2511
        %v2621 = vmul.f32 %v2489, %v2511
        %v2622 = vmul.f32 %v2490, %v2511
        %v2623 = vmul.f32 %v2491, %v2511
        %v2624 = vmul.f32 %v2492, %v2511
        %v2625 = vmul.f32 %v2493, %v2511
        %v2626 = vmul.f32 %v2494, %v2511
        %v2627 = vmul.f32 %v2495, %v2511
        %v2628 = vmul.f32 %v2496, %v2511
        %v2629 = vmul.f32 %v2497, %v2511
        %v2630 = vmul.f32 %v2498, %v2511
        %v2631 = vmul.f32 %v2499, %v2511
        %v2632 = vmul.f32 %v2500, %v2511
        %v2633 = vmul.f32 %v2501, %v2511
        %v2634 = vmul.f32 %v2502, %v2511
        %v2635 = vmul.f32 %v2503, %v2511
        %v2636 = vmul.f32 %v2504, %v2511
        %v2637 = vmul.f32 %v2505, %v2511
        %v2638 = vmul.f32 %v2506, %v2511
        %v2639 = vmul.f32 %v2507, %v2511
        %v2640 = vmul.f32 %v2508, %v2511
        %v2641 = vld [vmem:[%s298] sm:$0x1]
        %v2643 = vperm.slane %v2641, 0
        %v2645 = vadd.f32 %v2513, %v2643
        %v2646 = vadd.f32 %v2514, %v2643
        %v2647 = vadd.f32 %v2515, %v2643
        %v2648 = vadd.f32 %v2516, %v2643
        %v2649 = vadd.f32 %v2517, %v2643
        %v2650 = vadd.f32 %v2518, %v2643
        %v2651 = vadd.f32 %v2519, %v2643
        %v2652 = vadd.f32 %v2520, %v2643
        %v2653 = vadd.f32 %v2521, %v2643
        %v2654 = vadd.f32 %v2522, %v2643
        %v2655 = vadd.f32 %v2523, %v2643
        %v2656 = vadd.f32 %v2524, %v2643
        %v2657 = vadd.f32 %v2525, %v2643
        %v2658 = vadd.f32 %v2526, %v2643
        %v2659 = vadd.f32 %v2527, %v2643
        %v2660 = vadd.f32 %v2528, %v2643
        %v2661 = vadd.f32 %v2529, %v2643
        %v2662 = vadd.f32 %v2530, %v2643
        %v2663 = vadd.f32 %v2531, %v2643
        %v2664 = vadd.f32 %v2532, %v2643
        %v2665 = vadd.f32 %v2533, %v2643
        %v2666 = vadd.f32 %v2534, %v2643
        %v2667 = vadd.f32 %v2535, %v2643
        %v2668 = vadd.f32 %v2536, %v2643
        %v2669 = vadd.f32 %v2537, %v2643
        %v2670 = vadd.f32 %v2538, %v2643
        %v2671 = vadd.f32 %v2539, %v2643
        %v2672 = vadd.f32 %v2540, %v2643
        %v2673 = vadd.f32 %v2541, %v2643
        %v2674 = vadd.f32 %v2542, %v2643
        %v2675 = vadd.f32 %v2543, %v2643
        %v2676 = vadd.f32 %v2544, %v2643
        %v2677 = vadd.f32 %v2545, %v2643
        %v2678 = vadd.f32 %v2546, %v2643
        %v2679 = vadd.f32 %v2547, %v2643
        %v2680 = vadd.f32 %v2548, %v2643
        %v2681 = vadd.f32 %v2549, %v2643
        %v2682 = vadd.f32 %v2550, %v2643
        %v2683 = vadd.f32 %v2551, %v2643
        %v2684 = vadd.f32 %v2552, %v2643
        %v2685 = vadd.f32 %v2553, %v2643
        %v2686 = vadd.f32 %v2554, %v2643
        %v2687 = vadd.f32 %v2555, %v2643
        %v2688 = vadd.f32 %v2556, %v2643
        %v2689 = vadd.f32 %v2557, %v2643
        %v2690 = vadd.f32 %v2558, %v2643
        %v2691 = vadd.f32 %v2559, %v2643
        %v2692 = vadd.f32 %v2560, %v2643
        %v2693 = vadd.f32 %v2561, %v2643
        %v2694 = vadd.f32 %v2562, %v2643
        %v2695 = vadd.f32 %v2563, %v2643
        %v2696 = vadd.f32 %v2564, %v2643
        %v2697 = vadd.f32 %v2565, %v2643
        %v2698 = vadd.f32 %v2566, %v2643
        %v2699 = vadd.f32 %v2567, %v2643
        %v2700 = vadd.f32 %v2568, %v2643
        %v2701 = vadd.f32 %v2569, %v2643
        %v2702 = vadd.f32 %v2570, %v2643
        %v2703 = vadd.f32 %v2571, %v2643
        %v2704 = vadd.f32 %v2572, %v2643
        %v2705 = vadd.f32 %v2573, %v2643
        %v2706 = vadd.f32 %v2574, %v2643
        %v2707 = vadd.f32 %v2575, %v2643
        %v2708 = vadd.f32 %v2576, %v2643
        %v2709 = vadd.f32 %v2577, %v2643
        %v2710 = vadd.f32 %v2578, %v2643
        %v2711 = vadd.f32 %v2579, %v2643
        %v2712 = vadd.f32 %v2580, %v2643
        %v2713 = vadd.f32 %v2581, %v2643
        %v2714 = vadd.f32 %v2582, %v2643
        %v2715 = vadd.f32 %v2583, %v2643
        %v2716 = vadd.f32 %v2584, %v2643
        %v2717 = vadd.f32 %v2585, %v2643
        %v2718 = vadd.f32 %v2586, %v2643
        %v2719 = vadd.f32 %v2587, %v2643
        %v2720 = vadd.f32 %v2588, %v2643
        %v2721 = vadd.f32 %v2589, %v2643
        %v2722 = vadd.f32 %v2590, %v2643
        %v2723 = vadd.f32 %v2591, %v2643
        %v2724 = vadd.f32 %v2592, %v2643
        %v2725 = vadd.f32 %v2593, %v2643
        %v2726 = vadd.f32 %v2594, %v2643
        %v2727 = vadd.f32 %v2595, %v2643
        %v2728 = vadd.f32 %v2596, %v2643
        %v2729 = vadd.f32 %v2597, %v2643
        %v2730 = vadd.f32 %v2598, %v2643
        %v2731 = vadd.f32 %v2599, %v2643
        %v2732 = vadd.f32 %v2600, %v2643
        %v2733 = vadd.f32 %v2601, %v2643
        %v2734 = vadd.f32 %v2602, %v2643
        %v2735 = vadd.f32 %v2603, %v2643
        %v2736 = vadd.f32 %v2604, %v2643
        %v2737 = vadd.f32 %v2605, %v2643
        %v2738 = vadd.f32 %v2606, %v2643
        %v2739 = vadd.f32 %v2607, %v2643
        %v2740 = vadd.f32 %v2608, %v2643
        %v2741 = vadd.f32 %v2609, %v2643
        %v2742 = vadd.f32 %v2610, %v2643
        %v2743 = vadd.f32 %v2611, %v2643
        %v2744 = vadd.f32 %v2612, %v2643
        %v2745 = vadd.f32 %v2613, %v2643
        %v2746 = vadd.f32 %v2614, %v2643
        %v2747 = vadd.f32 %v2615, %v2643
        %v2748 = vadd.f32 %v2616, %v2643
        %v2749 = vadd.f32 %v2617, %v2643
        %v2750 = vadd.f32 %v2618, %v2643
        %v2751 = vadd.f32 %v2619, %v2643
        %v2752 = vadd.f32 %v2620, %v2643
        %v2753 = vadd.f32 %v2621, %v2643
        %v2754 = vadd.f32 %v2622, %v2643
        %v2755 = vadd.f32 %v2623, %v2643
        %v2756 = vadd.f32 %v2624, %v2643
        %v2757 = vadd.f32 %v2625, %v2643
        %v2758 = vadd.f32 %v2626, %v2643
        %v2759 = vadd.f32 %v2627, %v2643
        %v2760 = vadd.f32 %v2628, %v2643
        %v2761 = vadd.f32 %v2629, %v2643
        %v2762 = vadd.f32 %v2630, %v2643
        %v2763 = vadd.f32 %v2631, %v2643
        %v2764 = vadd.f32 %v2632, %v2643
        %v2765 = vadd.f32 %v2633, %v2643
        %v2766 = vadd.f32 %v2634, %v2643
        %v2767 = vadd.f32 %v2635, %v2643
        %v2768 = vadd.f32 %v2636, %v2643
        %v2769 = vadd.f32 %v2637, %v2643
        %v2770 = vadd.f32 %v2638, %v2643
        %v2771 = vadd.f32 %v2639, %v2643
        %v2772 = vadd.f32 %v2640, %v2643
        %v2773 = vmax.f32 %v2645, 0.0
        %v2774 = vmax.f32 %v2646, 0.0
        %v2775 = vmax.f32 %v2647, 0.0
        %v2776 = vmax.f32 %v2648, 0.0
        %v2777 = vmax.f32 %v2649, 0.0
        %v2778 = vmax.f32 %v2650, 0.0
        %v2779 = vmax.f32 %v2651, 0.0
        %v2780 = vmax.f32 %v2652, 0.0
        %v2781 = vmax.f32 %v2653, 0.0
        %v2782 = vmax.f32 %v2654, 0.0
        %v2783 = vmax.f32 %v2655, 0.0
        %v2784 = vmax.f32 %v2656, 0.0
        %v2785 = vmax.f32 %v2657, 0.0
        %v2786 = vmax.f32 %v2658, 0.0
        %v2787 = vmax.f32 %v2659, 0.0
        %v2788 = vmax.f32 %v2660, 0.0
        %v2789 = vmax.f32 %v2661, 0.0
        %v2790 = vmax.f32 %v2662, 0.0
        %v2791 = vmax.f32 %v2663, 0.0
        %v2792 = vmax.f32 %v2664, 0.0
        %v2793 = vmax.f32 %v2665, 0.0
        %v2794 = vmax.f32 %v2666, 0.0
        %v2795 = vmax.f32 %v2667, 0.0
        %v2796 = vmax.f32 %v2668, 0.0
        %v2797 = vmax.f32 %v2669, 0.0
        %v2798 = vmax.f32 %v2670, 0.0
        %v2799 = vmax.f32 %v2671, 0.0
        %v2800 = vmax.f32 %v2672, 0.0
        %v2801 = vmax.f32 %v2673, 0.0
        %v2802 = vmax.f32 %v2674, 0.0
        %v2803 = vmax.f32 %v2675, 0.0
        %v2804 = vmax.f32 %v2676, 0.0
        %v2805 = vmax.f32 %v2677, 0.0
        %v2806 = vmax.f32 %v2678, 0.0
        %v2807 = vmax.f32 %v2679, 0.0
        %v2808 = vmax.f32 %v2680, 0.0
        %v2809 = vmax.f32 %v2681, 0.0
        %v2810 = vmax.f32 %v2682, 0.0
        %v2811 = vmax.f32 %v2683, 0.0
        %v2812 = vmax.f32 %v2684, 0.0
        %v2813 = vmax.f32 %v2685, 0.0
        %v2814 = vmax.f32 %v2686, 0.0
        %v2815 = vmax.f32 %v2687, 0.0
        %v2816 = vmax.f32 %v2688, 0.0
        %v2817 = vmax.f32 %v2689, 0.0
        %v2818 = vmax.f32 %v2690, 0.0
        %v2819 = vmax.f32 %v2691, 0.0
        %v2820 = vmax.f32 %v2692, 0.0
        %v2821 = vmax.f32 %v2693, 0.0
        %v2822 = vmax.f32 %v2694, 0.0
        %v2823 = vmax.f32 %v2695, 0.0
        %v2824 = vmax.f32 %v2696, 0.0
        %v2825 = vmax.f32 %v2697, 0.0
        %v2826 = vmax.f32 %v2698, 0.0
        %v2827 = vmax.f32 %v2699, 0.0
        %v2828 = vmax.f32 %v2700, 0.0
        %v2829 = vmax.f32 %v2701, 0.0
        %v2830 = vmax.f32 %v2702, 0.0
        %v2831 = vmax.f32 %v2703, 0.0
        %v2832 = vmax.f32 %v2704, 0.0
        %v2833 = vmax.f32 %v2705, 0.0
        %v2834 = vmax.f32 %v2706, 0.0
        %v2835 = vmax.f32 %v2707, 0.0
        %v2836 = vmax.f32 %v2708, 0.0
        %v2837 = vmax.f32 %v2709, 0.0
        %v2838 = vmax.f32 %v2710, 0.0
        %v2839 = vmax.f32 %v2711, 0.0
        %v2840 = vmax.f32 %v2712, 0.0
        %v2841 = vmax.f32 %v2713, 0.0
        %v2842 = vmax.f32 %v2714, 0.0
        %v2843 = vmax.f32 %v2715, 0.0
        %v2844 = vmax.f32 %v2716, 0.0
        %v2845 = vmax.f32 %v2717, 0.0
        %v2846 = vmax.f32 %v2718, 0.0
        %v2847 = vmax.f32 %v2719, 0.0
        %v2848 = vmax.f32 %v2720, 0.0
        %v2849 = vmax.f32 %v2721, 0.0
        %v2850 = vmax.f32 %v2722, 0.0
        %v2851 = vmax.f32 %v2723, 0.0
        %v2852 = vmax.f32 %v2724, 0.0
        %v2853 = vmax.f32 %v2725, 0.0
        %v2854 = vmax.f32 %v2726, 0.0
        %v2855 = vmax.f32 %v2727, 0.0
        %v2856 = vmax.f32 %v2728, 0.0
        %v2857 = vmax.f32 %v2729, 0.0
        %v2858 = vmax.f32 %v2730, 0.0
        %v2859 = vmax.f32 %v2731, 0.0
        %v2860 = vmax.f32 %v2732, 0.0
        %v2861 = vmax.f32 %v2733, 0.0
        %v2862 = vmax.f32 %v2734, 0.0
        %v2863 = vmax.f32 %v2735, 0.0
        %v2864 = vmax.f32 %v2736, 0.0
        %v2865 = vmax.f32 %v2737, 0.0
        %v2866 = vmax.f32 %v2738, 0.0
        %v2867 = vmax.f32 %v2739, 0.0
        %v2868 = vmax.f32 %v2740, 0.0
        %v2869 = vmax.f32 %v2741, 0.0
        %v2870 = vmax.f32 %v2742, 0.0
        %v2871 = vmax.f32 %v2743, 0.0
        %v2872 = vmax.f32 %v2744, 0.0
        %v2873 = vmax.f32 %v2745, 0.0
        %v2874 = vmax.f32 %v2746, 0.0
        %v2875 = vmax.f32 %v2747, 0.0
        %v2876 = vmax.f32 %v2748, 0.0
        %v2877 = vmax.f32 %v2749, 0.0
        %v2878 = vmax.f32 %v2750, 0.0
        %v2879 = vmax.f32 %v2751, 0.0
        %v2880 = vmax.f32 %v2752, 0.0
        %v2881 = vmax.f32 %v2753, 0.0
        %v2882 = vmax.f32 %v2754, 0.0
        %v2883 = vmax.f32 %v2755, 0.0
        %v2884 = vmax.f32 %v2756, 0.0
        %v2885 = vmax.f32 %v2757, 0.0
        %v2886 = vmax.f32 %v2758, 0.0
        %v2887 = vmax.f32 %v2759, 0.0
        %v2888 = vmax.f32 %v2760, 0.0
        %v2889 = vmax.f32 %v2761, 0.0
        %v2890 = vmax.f32 %v2762, 0.0
        %v2891 = vmax.f32 %v2763, 0.0
        %v2892 = vmax.f32 %v2764, 0.0
        %v2893 = vmax.f32 %v2765, 0.0
        %v2894 = vmax.f32 %v2766, 0.0
        %v2895 = vmax.f32 %v2767, 0.0
        %v2896 = vmax.f32 %v2768, 0.0
        %v2897 = vmax.f32 %v2769, 0.0
        %v2898 = vmax.f32 %v2770, 0.0
        %v2899 = vmax.f32 %v2771, 0.0
        %v2900 = vmax.f32 %v2772, 0.0
        %v2901 = vpack.c.bf16 %v2773, %v2773
        %v2902 = vpack.c.bf16 %v2774, %v2774
        %v2903 = vpack.c.bf16 %v2775, %v2775
        %v2904 = vpack.c.bf16 %v2776, %v2776
        %v2905 = vpack.c.bf16 %v2777, %v2777
        %v2906 = vpack.c.bf16 %v2778, %v2778
        %v2907 = vpack.c.bf16 %v2779, %v2779
        %v2908 = vpack.c.bf16 %v2780, %v2780
        %v2909 = vpack.c.bf16 %v2781, %v2781
        %v2910 = vpack.c.bf16 %v2782, %v2782
        %v2911 = vpack.c.bf16 %v2783, %v2783
        %v2912 = vpack.c.bf16 %v2784, %v2784
        %v2913 = vpack.c.bf16 %v2785, %v2785
        %v2914 = vpack.c.bf16 %v2786, %v2786
        %v2915 = vpack.c.bf16 %v2787, %v2787
        %v2916 = vpack.c.bf16 %v2788, %v2788
        %v2917 = vpack.c.bf16 %v2789, %v2789
        %v2918 = vpack.c.bf16 %v2790, %v2790
        %v2919 = vpack.c.bf16 %v2791, %v2791
        %v2920 = vpack.c.bf16 %v2792, %v2792
        %v2921 = vpack.c.bf16 %v2793, %v2793
        %v2922 = vpack.c.bf16 %v2794, %v2794
        %v2923 = vpack.c.bf16 %v2795, %v2795
        %v2924 = vpack.c.bf16 %v2796, %v2796
        %v2925 = vpack.c.bf16 %v2797, %v2797
        %v2926 = vpack.c.bf16 %v2798, %v2798
        %v2927 = vpack.c.bf16 %v2799, %v2799
        %v2928 = vpack.c.bf16 %v2800, %v2800
        %v2929 = vpack.c.bf16 %v2801, %v2801
        %v2930 = vpack.c.bf16 %v2802, %v2802
        %v2931 = vpack.c.bf16 %v2803, %v2803
        %v2932 = vpack.c.bf16 %v2804, %v2804
        %v2933 = vpack.c.bf16 %v2805, %v2805
        %v2934 = vpack.c.bf16 %v2806, %v2806
        %v2935 = vpack.c.bf16 %v2807, %v2807
        %v2936 = vpack.c.bf16 %v2808, %v2808
        %v2937 = vpack.c.bf16 %v2809, %v2809
        %v2938 = vpack.c.bf16 %v2810, %v2810
        %v2939 = vpack.c.bf16 %v2811, %v2811
        %v2940 = vpack.c.bf16 %v2812, %v2812
        %v2941 = vpack.c.bf16 %v2813, %v2813
        %v2942 = vpack.c.bf16 %v2814, %v2814
        %v2943 = vpack.c.bf16 %v2815, %v2815
        %v2944 = vpack.c.bf16 %v2816, %v2816
        %v2945 = vpack.c.bf16 %v2817, %v2817
        %v2946 = vpack.c.bf16 %v2818, %v2818
        %v2947 = vpack.c.bf16 %v2819, %v2819
        %v2948 = vpack.c.bf16 %v2820, %v2820
        %v2949 = vpack.c.bf16 %v2821, %v2821
        %v2950 = vpack.c.bf16 %v2822, %v2822
        %v2951 = vpack.c.bf16 %v2823, %v2823
        %v2952 = vpack.c.bf16 %v2824, %v2824
        %v2953 = vpack.c.bf16 %v2825, %v2825
        %v2954 = vpack.c.bf16 %v2826, %v2826
        %v2955 = vpack.c.bf16 %v2827, %v2827
        %v2956 = vpack.c.bf16 %v2828, %v2828
        %v2957 = vpack.c.bf16 %v2829, %v2829
        %v2958 = vpack.c.bf16 %v2830, %v2830
        %v2959 = vpack.c.bf16 %v2831, %v2831
        %v2960 = vpack.c.bf16 %v2832, %v2832
        %v2961 = vpack.c.bf16 %v2833, %v2833
        %v2962 = vpack.c.bf16 %v2834, %v2834
        %v2963 = vpack.c.bf16 %v2835, %v2835
        %v2964 = vpack.c.bf16 %v2836, %v2836
        %v2965 = vpack.c.bf16 %v2837, %v2837
        %v2966 = vpack.c.bf16 %v2838, %v2838
        %v2967 = vpack.c.bf16 %v2839, %v2839
        %v2968 = vpack.c.bf16 %v2840, %v2840
        %v2969 = vpack.c.bf16 %v2841, %v2841
        %v2970 = vpack.c.bf16 %v2842, %v2842
        %v2971 = vpack.c.bf16 %v2843, %v2843
        %v2972 = vpack.c.bf16 %v2844, %v2844
        %v2973 = vpack.c.bf16 %v2845, %v2845
        %v2974 = vpack.c.bf16 %v2846, %v2846
        %v2975 = vpack.c.bf16 %v2847, %v2847
        %v2976 = vpack.c.bf16 %v2848, %v2848
        %v2977 = vpack.c.bf16 %v2849, %v2849
        %v2978 = vpack.c.bf16 %v2850, %v2850
        %v2979 = vpack.c.bf16 %v2851, %v2851
        %v2980 = vpack.c.bf16 %v2852, %v2852
        %v2981 = vpack.c.bf16 %v2853, %v2853
        %v2982 = vpack.c.bf16 %v2854, %v2854
        %v2983 = vpack.c.bf16 %v2855, %v2855
        %v2984 = vpack.c.bf16 %v2856, %v2856
        %v2985 = vpack.c.bf16 %v2857, %v2857
        %v2986 = vpack.c.bf16 %v2858, %v2858
        %v2987 = vpack.c.bf16 %v2859, %v2859
        %v2988 = vpack.c.bf16 %v2860, %v2860
        %v2989 = vpack.c.bf16 %v2861, %v2861
        %v2990 = vpack.c.bf16 %v2862, %v2862
        %v2991 = vpack.c.bf16 %v2863, %v2863
        %v2992 = vpack.c.bf16 %v2864, %v2864
        %v2993 = vpack.c.bf16 %v2865, %v2865
        %v2994 = vpack.c.bf16 %v2866, %v2866
        %v2995 = vpack.c.bf16 %v2867, %v2867
        %v2996 = vpack.c.bf16 %v2868, %v2868
        %v2997 = vpack.c.bf16 %v2869, %v2869
        %v2998 = vpack.c.bf16 %v2870, %v2870
        %v2999 = vpack.c.bf16 %v2871, %v2871
        %v3000 = vpack.c.bf16 %v2872, %v2872
        %v3001 = vpack.c.bf16 %v2873, %v2873
        %v3002 = vpack.c.bf16 %v2874, %v2874
        %v3003 = vpack.c.bf16 %v2875, %v2875
        %v3004 = vpack.c.bf16 %v2876, %v2876
        %v3005 = vpack.c.bf16 %v2877, %v2877
        %v3006 = vpack.c.bf16 %v2878, %v2878
        %v3007 = vpack.c.bf16 %v2879, %v2879
        %v3008 = vpack.c.bf16 %v2880, %v2880
        %v3009 = vpack.c.bf16 %v2881, %v2881
        %v3010 = vpack.c.bf16 %v2882, %v2882
        %v3011 = vpack.c.bf16 %v2883, %v2883
        %v3012 = vpack.c.bf16 %v2884, %v2884
        %v3013 = vpack.c.bf16 %v2885, %v2885
        %v3014 = vpack.c.bf16 %v2886, %v2886
        %v3015 = vpack.c.bf16 %v2887, %v2887
        %v3016 = vpack.c.bf16 %v2888, %v2888
        %v3017 = vpack.c.bf16 %v2889, %v2889
        %v3018 = vpack.c.bf16 %v2890, %v2890
        %v3019 = vpack.c.bf16 %v2891, %v2891
        %v3020 = vpack.c.bf16 %v2892, %v2892
        %v3021 = vpack.c.bf16 %v2893, %v2893
        %v3022 = vpack.c.bf16 %v2894, %v2894
        %v3023 = vpack.c.bf16 %v2895, %v2895
        %v3024 = vpack.c.bf16 %v2896, %v2896
        %v3025 = vpack.c.bf16 %v2897, %v2897
        %v3026 = vpack.c.bf16 %v2898, %v2898
        %v3027 = vpack.c.bf16 %v2899, %v2899
        %v3028 = vpack.c.bf16 %v2900, %v2900
        %3029 = vst [vmem:[%s306] sm:$0xf] %v2901
        %3030 = vst [vmem:[%s306 + $0x4] sm:$0xf] %v2902
        %3031 = vst [vmem:[%s306 + $0x8] sm:$0xf] %v2903
        %3032 = vst [vmem:[%s306 + $0xc] sm:$0xf] %v2904
        %3033 = vst [vmem:[%s306 + $0x10] sm:$0xf] %v2905
        %3034 = vst [vmem:[%s306 + $0x14] sm:$0xf] %v2906
        %3035 = vst [vmem:[%s306 + $0x18] sm:$0xf] %v2907
        %3036 = vst [vmem:[%s306 + $0x1c] sm:$0xf] %v2908
        %3037 = vst [vmem:[%s306 + $0x20] sm:$0xf] %v2909
        %3038 = vst [vmem:[%s306 + $0x24] sm:$0xf] %v2910
        %3039 = vst [vmem:[%s306 + $0x28] sm:$0xf] %v2911
        %3040 = vst [vmem:[%s306 + $0x2c] sm:$0xf] %v2912
        %3041 = vst [vmem:[%s306 + $0x30] sm:$0xf] %v2913
        %3042 = vst [vmem:[%s306 + $0x34] sm:$0xf] %v2914
        %3043 = vst [vmem:[%s306 + $0x38] sm:$0xf] %v2915
        %3044 = vst [vmem:[%s306 + $0x3c] sm:$0xf] %v2916
        %3045 = vst [vmem:[%s306 + $0x40] sm:$0xf] %v2917
        %3046 = vst [vmem:[%s306 + $0x44] sm:$0xf] %v2918
        %3047 = vst [vmem:[%s306 + $0x48] sm:$0xf] %v2919
        %3048 = vst [vmem:[%s306 + $0x4c] sm:$0xf] %v2920
        %3049 = vst [vmem:[%s306 + $0x50] sm:$0xf] %v2921
        %3050 = vst [vmem:[%s306 + $0x54] sm:$0xf] %v2922
        %3051 = vst [vmem:[%s306 + $0x58] sm:$0xf] %v2923
        %3052 = vst [vmem:[%s306 + $0x5c] sm:$0xf] %v2924
        %3053 = vst [vmem:[%s306 + $0x60] sm:$0xf] %v2925
        %3054 = vst [vmem:[%s306 + $0x64] sm:$0xf] %v2926
        %3055 = vst [vmem:[%s306 + $0x68] sm:$0xf] %v2927
        %3056 = vst [vmem:[%s306 + $0x6c] sm:$0xf] %v2928
        %3057 = vst [vmem:[%s306 + $0x70] sm:$0xf] %v2929
        %3058 = vst [vmem:[%s306 + $0x74] sm:$0xf] %v2930
        %3059 = vst [vmem:[%s306 + $0x78] sm:$0xf] %v2931
        %3060 = vst [vmem:[%s306 + $0x7c] sm:$0xf] %v2932
        %3061 = vst [vmem:[%s306 + $0x80] sm:$0xf] %v2933
        %3062 = vst [vmem:[%s306 + $0x84] sm:$0xf] %v2934
        %3063 = vst [vmem:[%s306 + $0x88] sm:$0xf] %v2935
        %3064 = vst [vmem:[%s306 + $0x8c] sm:$0xf] %v2936
        %3065 = vst [vmem:[%s306 + $0x90] sm:$0xf] %v2937
        %3066 = vst [vmem:[%s306 + $0x94] sm:$0xf] %v2938
        %3067 = vst [vmem:[%s306 + $0x98] sm:$0xf] %v2939
        %3068 = vst [vmem:[%s306 + $0x9c] sm:$0xf] %v2940
        %3069 = vst [vmem:[%s306 + $0xa0] sm:$0xf] %v2941
        %3070 = vst [vmem:[%s306 + $0xa4] sm:$0xf] %v2942
        %3071 = vst [vmem:[%s306 + $0xa8] sm:$0xf] %v2943
        %3072 = vst [vmem:[%s306 + $0xac] sm:$0xf] %v2944
        %3073 = vst [vmem:[%s306 + $0xb0] sm:$0xf] %v2945
        %3074 = vst [vmem:[%s306 + $0xb4] sm:$0xf] %v2946
        %3075 = vst [vmem:[%s306 + $0xb8] sm:$0xf] %v2947
        %3076 = vst [vmem:[%s306 + $0xbc] sm:$0xf] %v2948
        %3077 = vst [vmem:[%s306 + $0xc0] sm:$0xf] %v2949
        %3078 = vst [vmem:[%s306 + $0xc4] sm:$0xf] %v2950
        %3079 = vst [vmem:[%s306 + $0xc8] sm:$0xf] %v2951
        %3080 = vst [vmem:[%s306 + $0xcc] sm:$0xf] %v2952
        %3081 = vst [vmem:[%s306 + $0xd0] sm:$0xf] %v2953
        %3082 = vst [vmem:[%s306 + $0xd4] sm:$0xf] %v2954
        %3083 = vst [vmem:[%s306 + $0xd8] sm:$0xf] %v2955
        %3084 = vst [vmem:[%s306 + $0xdc] sm:$0xf] %v2956
        %3085 = vst [vmem:[%s306 + $0xe0] sm:$0xf] %v2957
        %3086 = vst [vmem:[%s306 + $0xe4] sm:$0xf] %v2958
        %3087 = vst [vmem:[%s306 + $0xe8] sm:$0xf] %v2959
        %3088 = vst [vmem:[%s306 + $0xec] sm:$0xf] %v2960
        %3089 = vst [vmem:[%s306 + $0xf0] sm:$0xf] %v2961
        %3090 = vst [vmem:[%s306 + $0xf4] sm:$0xf] %v2962
        %3091 = vst [vmem:[%s306 + $0xf8] sm:$0xf] %v2963
        %3092 = vst [vmem:[%s306 + $0xfc] sm:$0xf] %v2964
        %3093 = vst [vmem:[%s306 + $0x100] sm:$0xf] %v2965
        %3094 = vst [vmem:[%s306 + $0x104] sm:$0xf] %v2966
        %3095 = vst [vmem:[%s306 + $0x108] sm:$0xf] %v2967
        %3096 = vst [vmem:[%s306 + $0x10c] sm:$0xf] %v2968
        %3097 = vst [vmem:[%s306 + $0x110] sm:$0xf] %v2969
        %3098 = vst [vmem:[%s306 + $0x114] sm:$0xf] %v2970
        %3099 = vst [vmem:[%s306 + $0x118] sm:$0xf] %v2971
        %3100 = vst [vmem:[%s306 + $0x11c] sm:$0xf] %v2972
        %3101 = vst [vmem:[%s306 + $0x120] sm:$0xf] %v2973
        %3102 = vst [vmem:[%s306 + $0x124] sm:$0xf] %v2974
        %3103 = vst [vmem:[%s306 + $0x128] sm:$0xf] %v2975
        %3104 = vst [vmem:[%s306 + $0x12c] sm:$0xf] %v2976
        %3105 = vst [vmem:[%s306 + $0x130] sm:$0xf] %v2977
        %3106 = vst [vmem:[%s306 + $0x134] sm:$0xf] %v2978
        %3107 = vst [vmem:[%s306 + $0x138] sm:$0xf] %v2979
        %3108 = vst [vmem:[%s306 + $0x13c] sm:$0xf] %v2980
        %3109 = vst [vmem:[%s306 + $0x140] sm:$0xf] %v2981
        %3110 = vst [vmem:[%s306 + $0x144] sm:$0xf] %v2982
        %3111 = vst [vmem:[%s306 + $0x148] sm:$0xf] %v2983
        %3112 = vst [vmem:[%s306 + $0x14c] sm:$0xf] %v2984
        %3113 = vst [vmem:[%s306 + $0x150] sm:$0xf] %v2985
        %3114 = vst [vmem:[%s306 + $0x154] sm:$0xf] %v2986
        %3115 = vst [vmem:[%s306 + $0x158] sm:$0xf] %v2987
        %3116 = vst [vmem:[%s306 + $0x15c] sm:$0xf] %v2988
        %3117 = vst [vmem:[%s306 + $0x160] sm:$0xf] %v2989
        %3118 = vst [vmem:[%s306 + $0x164] sm:$0xf] %v2990
        %3119 = vst [vmem:[%s306 + $0x168] sm:$0xf] %v2991
        %3120 = vst [vmem:[%s306 + $0x16c] sm:$0xf] %v2992
        %3121 = vst [vmem:[%s306 + $0x170] sm:$0xf] %v2993
        %3122 = vst [vmem:[%s306 + $0x174] sm:$0xf] %v2994
        %3123 = vst [vmem:[%s306 + $0x178] sm:$0xf] %v2995
        %3124 = vst [vmem:[%s306 + $0x17c] sm:$0xf] %v2996
        %3125 = vst [vmem:[%s306 + $0x180] sm:$0xf] %v2997
        %3126 = vst [vmem:[%s306 + $0x184] sm:$0xf] %v2998
        %3127 = vst [vmem:[%s306 + $0x188] sm:$0xf] %v2999
        %3128 = vst [vmem:[%s306 + $0x18c] sm:$0xf] %v3000
        %3129 = vst [vmem:[%s306 + $0x190] sm:$0xf] %v3001
        %3130 = vst [vmem:[%s306 + $0x194] sm:$0xf] %v3002
        %3131 = vst [vmem:[%s306 + $0x198] sm:$0xf] %v3003
        %3132 = vst [vmem:[%s306 + $0x19c] sm:$0xf] %v3004
        %3133 = vst [vmem:[%s306 + $0x1a0] sm:$0xf] %v3005
        %3134 = vst [vmem:[%s306 + $0x1a4] sm:$0xf] %v3006
        %3135 = vst [vmem:[%s306 + $0x1a8] sm:$0xf] %v3007
        %3136 = vst [vmem:[%s306 + $0x1ac] sm:$0xf] %v3008
        %3137 = vst [vmem:[%s306 + $0x1b0] sm:$0xf] %v3009
        %3138 = vst [vmem:[%s306 + $0x1b4] sm:$0xf] %v3010
        %3139 = vst [vmem:[%s306 + $0x1b8] sm:$0xf] %v3011
        %3140 = vst [vmem:[%s306 + $0x1bc] sm:$0xf] %v3012
        %3141 = vst [vmem:[%s306 + $0x1c0] sm:$0xf] %v3013
        %3142 = vst [vmem:[%s306 + $0x1c4] sm:$0xf] %v3014
        %3143 = vst [vmem:[%s306 + $0x1c8] sm:$0xf] %v3015
        %3144 = vst [vmem:[%s306 + $0x1cc] sm:$0xf] %v3016
        %3145 = vst [vmem:[%s306 + $0x1d0] sm:$0xf] %v3017
        %3146 = vst [vmem:[%s306 + $0x1d4] sm:$0xf] %v3018
        %3147 = vst [vmem:[%s306 + $0x1d8] sm:$0xf] %v3019
        %3148 = vst [vmem:[%s306 + $0x1dc] sm:$0xf] %v3020
        %3149 = vst [vmem:[%s306 + $0x1e0] sm:$0xf] %v3021
        %3150 = vst [vmem:[%s306 + $0x1e4] sm:$0xf] %v3022
        %3151 = vst [vmem:[%s306 + $0x1e8] sm:$0xf] %v3023
        %3152 = vst [vmem:[%s306 + $0x1ec] sm:$0xf] %v3024
        %3153 = vst [vmem:[%s306 + $0x1f0] sm:$0xf] %v3025
        %3154 = vst [vmem:[%s306 + $0x1f4] sm:$0xf] %v3026
        %3155 = vst [vmem:[%s306 + $0x1f8] sm:$0xf] %v3027
        %3156 = vst [vmem:[%s306 + $0x1fc] sm:$0xf] %v3028
      $region44: #{_stem_forward.1} parent=35 // pred_fallthru
        _
      %s3157 = smul.u32 128, %s20
      %p3158 = scmp.lt.s32.totalorder %s3157, 255
      %s3159 = scalar_select %p3158, %s3157, 255
      %p3160 = scmp.lt.s32.totalorder %s21, 0
      %s3161 = scalar_select %p3160, %s21, 0
      %s3162 = sadd.s32 %s3161, %s3159
      %s3163 = smul.addr %s3162, 4
      %s3164 = scalar_lea.vmem %s4, %s3163
      // Predicated region
      $region45: #{_stem_forward.1} parent=35 // pred_check
        %p3165 = pneg %p162
      $region46: #{_stem_forward.1} parent=35 // pred_check_branch
        %3167 = sbr.rel (%p3165) target = $region48
      $region47: #{_stem_forward.1} parent=35 // pred_region
        %s3168 = smul.u32 128, %s20
      $region48: #{_stem_forward.1} parent=35 // pred_fallthru
        _
    $region36: #{_stem_forward.1} parent=5 // pred_fallthru
      _
    %p3169 = scmp.le.s32.totalorder 2, %s10
    // Predicated region
    $region49: #{_stem_forward.1} parent=5 // pred_check
      %p3170 = pneg %p3169
    $region50: #{_stem_forward.1} parent=5 // pred_check_branch
      %3172 = sbr.rel (%p3170) target = $region52
    $region51: #{_stem_forward.1} parent=5 // pred_region
      %s3173 = ssub.s32 %s10, 2
      // Predicated region
      $region53: #{_stem_forward.1} parent=51 // pred_check
        %p3174 = pneg %p168
      $region54: #{_stem_forward.1} parent=51 // pred_check_branch
        %3176 = sbr.rel (%p3174) target = $region56
      $region55: #{_stem_forward.1} parent=51 // pred_region
        %s3177 = smul.u32 128, %s23
        %p3178 = scmp.lt.s32.totalorder %s3177, 255
        %s3179 = scalar_select %p3178, %s3177, 255
        %p3180 = scmp.lt.s32.totalorder %s24, 0
        %s3181 = scalar_select %p3180, %s24, 0
        %s3182 = sadd.s32 %s3181, %s3179
        %s3183 = smul.addr %s3182, 4
        %s3184 = scalar_lea.vmem %s4, %s3183
      $region56: #{_stem_forward.1} parent=51 // pred_fallthru
        _
    $region52: #{_stem_forward.1} parent=5 // pred_fallthru
      _
  $region6: #{_stem_forward.1} parent=0 // loop_footer
    %s14 = sadd.s32 1, %s10
  $region7: #{_stem_forward.1} parent=0 // loop_footer_branch
    %9 = sbr.rel target = $region3
  $region8: #{_stem_forward.1} parent=0 // loop_exit
    _

</llo_original>
